<compile_context>
chip_gen: v7x
topology: tpu7x:2x2x1
jax: 0.10.0
libtpu: 0.0.40
codegen_flags: <defaults>
</compile_context>

<pallas_src>
import functools

import jax
import jax.numpy as jnp
from jax.experimental import pallas as pl
from jax.experimental.pallas import tpu as pltpu


def _decomposition_kernel(xw_ref, wf_ref, bf_ref, lf_ref, hf_ref, *,
                          tile_h, W, Wp, C, compute_dtype):
    """One (batch, row-tile) grid step.

    xw_ref : (1, tile_h+5, Wp, C)  pre-padded overlapping input window (NHWC)
    wf_ref : (9, C, C)             fused taps (center tap = w3[1,1] - w1),
                                   already in the matmul compute dtype
    bf_ref : (1, C)                fused bias b3 - b1 (f32)
    lf_ref : (1, tile_h, W, C)     LF output tile
    hf_ref : (1, tile_h, W, C)     HF output tile
    """
    f32 = jnp.float32
    WR = tile_h + 5                 # 2 top halo + tile_h + 2 bottom halo + 1 spare
    Nf = tile_h * Wp                # flat rows computed per step (incl. junk cols)

    # Free reshape: Wp is a multiple of 8, so flattening rows is a pure view.
    x_flat = xw_ref[0].reshape(WR * Wp, C)
    x_mm = x_flat if x_flat.dtype == compute_dtype else x_flat.astype(compute_dtype)

    # Fused D3(x) - D1(x): 9 matmuls on contiguous flat taps over the padded
    # width (the 1x1 conv is folded into the center tap's weights).
    acc = None
    for kh in range(3):
        for kw in range(3):
            off = 2 * kh * Wp + 2 * kw
            tap = x_mm[off:off + Nf]
            d = jnp.dot(tap, wf_ref[kh * 3 + kw], preferred_element_type=f32)
            acc = d if acc is None else acc + d

    # sigmoid(D3 - D1 + (b3 - b1)) == 1 - sigmoid(D1 - D3) == 1 - HF_Weight
    one_minus_hfw = jax.nn.sigmoid(acc + bf_ref[0])

    # Center pixels (the original x of this tile), f32 for the epilogue.
    xc = x_flat[2 * Wp + 2: 2 * Wp + 2 + Nf].astype(f32)
    lf = one_minus_hfw * xc
    hf = lf * xc

    # Drop the junk columns introduced by computing over the padded width.
    lf_ref[0] = lf.reshape(tile_h, Wp, C)[:, :W, :].astype(lf_ref.dtype)
    hf_ref[0] = hf.reshape(tile_h, Wp, C)[:, :W, :].astype(hf_ref.dtype)


def _vmem_capacity_bytes():
    """Per-core VMEM capacity; conservative (v7x) fallback if the query fails."""
    try:
        info = pltpu.get_tpu_info()
        cap = getattr(info, "vmem_capacity_bytes", None)
        if cap:
            return int(cap)
    except Exception:
        pass
    return 64 * 1024 * 1024


def _choose_tile_h(H, W, Wp, C, vmem_cap, min_tiles):
    """Largest divisor of H whose per-step working set fits a VMEM-aware budget.

    Per-row estimate: double-buffered padded input rows, double-buffered LF/HF
    output rows, plus ~2 rows of f32 intermediates (acc / lf / hf)."""
    per_row = 4 * C * (4 * Wp + 4 * W)
    budget = max(vmem_cap // 5, 4 * 1024 * 1024)
    max_rows = max(1, budget // per_row)
    best = 1
    for t in range(1, H + 1):
        if H % t == 0 and t <= max_rows and (H // t) >= min_tiles:
            best = t
    return best


def decomposition_forward_nhwc(x, w1, b1, w3, b3, *, tile_h=None,
                               compute_dtype=jnp.float32,
                               out_dtype=jnp.float32):
    """Core NHWC implementation (transpose-free entry point for NHWC models).

    x  : (B, H, W, C)        w1 : (C, C)   b1 : (C,)
    w3 : (3, 3, C, C) (HWIO) b3 : (C,)
    Returns (LF, HF), both (B, H, W, C) in `out_dtype`.
    (PyTorch weights map as w1 = D1.weight[:, :, 0, 0].T,
     w3 = D3.weight.permute(2, 3, 1, 0).)
    """
    x = x.astype(jnp.float32)
    B, H, W, Cin = x.shape
    Cout = w1.shape[-1]
    assert Cin == Cout, "LF = (1 - HF_Weight) * x requires out_dim == in_dim"
    C = Cin

    # Padded width, rounded up to a multiple of 8 so in-kernel flat reshapes
    # are pure views (no VMEM re-tiling).
    Wp = W + 4
    Wp += (-Wp) % 8

    vmem_cap = _vmem_capacity_bytes()
    min_tiles = 2 if (B == 1 and H >= 2) else 1       # keep both v7x cores busy
    if tile_h is None:
        tile_h = _choose_tile_h(H, W, Wp, C, vmem_cap, min_tiles)
    if H % tile_h != 0:
        raise ValueError(f"tile_h={tile_h} must evenly divide H={H}")
    n_r = H // tile_h
    WR = tile_h + 5

    # Single wrapper pass: zero-pad H and W and materialise the overlapping
    # row windows, so the kernel needs ONE input stream, no halo masking and
    # no VMEM->VMEM assembly.
    # TODO(synk): pl.Element-indexed overlapping H blocks would remove the
    # (tile_h+5)/tile_h duplication and this HBM pass entirely.
    xp = jnp.pad(x, ((0, 0), (2, 3), (2, Wp - W - 2), (0, 0)))
    xwin = jnp.stack([xp[:, r * tile_h:r * tile_h + WR] for r in range(n_r)],
                     axis=1).reshape(B * n_r, WR, Wp, C)

    # Fused weights: 9 taps, 1x1 conv folded into the center tap, pre-cast to
    # the matmul compute dtype (no per-tap casts inside the kernel).
    wf = w3.astype(jnp.float32).reshape(9, C, C)
    wf = wf.at[4].add(-w1.astype(jnp.float32))
    wf = wf.astype(compute_dtype)
    bf = (b3.astype(jnp.float32) - b1.astype(jnp.float32)).reshape(1, C)

    kernel = functools.partial(_decomposition_kernel, tile_h=tile_h, W=W, Wp=Wp,
                               C=C, compute_dtype=compute_dtype)

    in_specs = [
        pl.BlockSpec((1, WR, Wp, C), lambda b, r: (b * n_r + r, 0, 0, 0)),
        pl.BlockSpec((9, C, C), lambda b, r: (0, 0, 0)),
        pl.BlockSpec((1, C), lambda b, r: (0, 0)),
    ]
    out_spec = pl.BlockSpec((1, tile_h, W, C), lambda b, r: (b, r, 0, 0))

    vmem_limit = min(int(vmem_cap * 3 // 4), 128 * 1024 * 1024)

    cost = pl.CostEstimate(
        flops=2 * 9 * B * H * Wp * C * C + 4 * B * H * W * C,
        transcendentals=B * H * Wp * C,
        bytes_accessed=4 * (B * n_r * WR * Wp * C + 2 * B * H * W * C
                            + 9 * C * C + C),
    )

    lf, hf = pl.pallas_call(
        kernel,
        grid=(B, n_r),
        in_specs=in_specs,
        out_specs=[out_spec, out_spec],
        out_shape=[jax.ShapeDtypeStruct((B, H, W, C), out_dtype),
                   jax.ShapeDtypeStruct((B, H, W, C), out_dtype)],
        compiler_params=pltpu.CompilerParams(
            dimension_semantics=("parallel", "parallel"),
            vmem_limit_bytes=vmem_limit),
        cost_estimate=cost,
    )(xwin, wf, bf)
    return lf, hf


def decomposition_forward(x_nchw, w1, b1, w3, b3, *, tile_h=None,
                          compute_dtype=jnp.float32, out_dtype=jnp.float32):
    """PyTorch-compatible entry point: NCHW in, (LF, HF) NCHW out.

    If the surrounding model is NHWC, call `decomposition_forward_nhwc`
    directly and skip these transposes (each is an extra HBM pass)."""
    x = jnp.transpose(x_nchw, (0, 2, 3, 1))
    lf, hf = decomposition_forward_nhwc(x, w1, b1, w3, b3, tile_h=tile_h,
                                        compute_dtype=compute_dtype,
                                        out_dtype=out_dtype)
    return jnp.transpose(lf, (0, 3, 1, 2)), jnp.transpose(hf, (0, 3, 1, 2))


def _reference_forward(x_nchw, w1, b1, w3, b3):
    """Pure-JAX reference (NHWC convs via lax.conv_general_dilated)."""
    x = jnp.transpose(x_nchw.astype(jnp.float32), (0, 2, 3, 1))
    dn = ("NHWC", "HWIO", "NHWC")
    d1 = jax.lax.conv_general_dilated(
        x, w1.reshape(1, 1, *w1.shape), window_strides=(1, 1),
        padding=((0, 0), (0, 0)), dimension_numbers=dn) + b1
    d3 = jax.lax.conv_general_dilated(
        x, w3, window_strides=(1, 1), padding=((2, 2), (2, 2)),
        rhs_dilation=(2, 2), dimension_numbers=dn) + b3
    hf_w = jax.nn.sigmoid(d1 - d3)
    lf = (1.0 - hf_w) * x
    hf = lf * x
    return (jnp.transpose(lf, (0, 3, 1, 2)), jnp.transpose(hf, (0, 3, 1, 2)))


if __name__ == "__main__":
    # Small shapes consistent with the module (in_dim == out_dim).
    B, C, H, W = 2, 4, 16, 16

    key = jax.random.PRNGKey(0)
    k_x, k_w1, k_b1, k_w3, k_b3 = jax.random.split(key, 5)

    x = jax.random.normal(k_x, (B, C, H, W), dtype=jnp.float32)

    # Synthetic parameters (IO / HWIO layouts; PyTorch weights would be
    # w1 = torch_w1[:, :, 0, 0].T and w3 = torch_w3.permute(2, 3, 1, 0)).
    w1 = 0.1 * jax.random.normal(k_w1, (C, C), dtype=jnp.float32)
    b1 = 0.1 * jax.random.normal(k_b1, (C,), dtype=jnp.float32)
    w3 = 0.1 * jax.random.normal(k_w3, (3, 3, C, C), dtype=jnp.float32)
    b3 = 0.1 * jax.random.normal(k_b3, (C,), dtype=jnp.float32)

    lf_ref, hf_ref = _reference_forward(x, w1, b1, w3, b3)

    # 1) Auto tile height (whole image per step at this small size).
    lf, hf = decomposition_forward(x, w1, b1, w3, b3)
    jax.block_until_ready((lf, hf))
    assert jnp.allclose(lf, lf_ref, atol=1e-4, rtol=1e-4), "LF mismatch (auto tile)"
    assert jnp.allclose(hf, hf_ref, atol=1e-4, rtol=1e-4), "HF mismatch (auto tile)"

    # 2) Explicit small row tile: exercises the multi-tile overlapping-window
    #    path (grid = (B, 4)).
    lf_t, hf_t = decomposition_forward(x, w1, b1, w3, b3, tile_h=4)
    jax.block_until_ready((lf_t, hf_t))
    assert jnp.allclose(lf_t, lf_ref, atol=1e-4, rtol=1e-4), "LF mismatch (tiled)"
    assert jnp.allclose(hf_t, hf_ref, atol=1e-4, rtol=1e-4), "HF mismatch (tiled)"

    # 3) Optional bf16 matmul inputs (f32 accumulation / epilogue); loose check.
    lf_b, hf_b = decomposition_forward(x, w1, b1, w3, b3, tile_h=8,
                                       compute_dtype=jnp.bfloat16)
    jax.block_until_ready((lf_b, hf_b))
    assert jnp.allclose(lf_b, lf_ref, atol=1e-1, rtol=1e-1), "LF mismatch (bf16)"
    assert jnp.allclose(hf_b, hf_ref, atol=1e-1, rtol=1e-1), "HF mismatch (bf16)"

    print("KERNEL_OK")
</pallas_src>

<mosaic_0001>
module attributes {stable_mosaic.version = 11 : i64} {
  func.func @_decomposition_kernel(%arg0: i32, %arg1: i32, %arg2: memref<1x21x24x4xf32, #tpu.memory_space<vmem>>, %arg3: memref<9x4x4xf32, #tpu.memory_space<vmem>>, %arg4: memref<1x4xf32, #tpu.memory_space<vmem>>, %arg5: memref<1x16x16x4xf32, #tpu.memory_space<vmem>>, %arg6: memref<1x16x16x4xf32, #tpu.memory_space<vmem>>) attributes {dimension_semantics = [#tpu.dimension_semantics<parallel>, #tpu.dimension_semantics<parallel>], iteration_bounds = array<i64: 2, 1>, scalar_prefetch = 0 : i64, scratch_operands = 0 : i64, tpu.core_type = #tpu.core_type<tc>, window_params = [{transform_indices = @transform_0, window_bounds = array<i64: 1, 21, 24, 4>}, {pipeline_mode = #tpu.pipeline_mode<synchronous>, transform_indices = @transform_1, window_bounds = array<i64: 9, 4, 4>}, {pipeline_mode = #tpu.pipeline_mode<synchronous>, transform_indices = @transform_2, window_bounds = array<i64: 1, 4>}, {transform_indices = @transform_3, window_bounds = array<i64: 1, 16, 16, 4>}, {transform_indices = @transform_4, window_bounds = array<i64: 1, 16, 16, 4>}]} {
    %c0 = arith.constant 0 : index
    %c0_0 = arith.constant 0 : index
    %c0_1 = arith.constant 0 : index
    %c0_2 = arith.constant 0 : index
    %0 = vector.load %arg2[%c0, %c0_0, %c0_1, %c0_2] : memref<1x21x24x4xf32, #tpu.memory_space<vmem>>, vector<1x21x24x4xf32>
    %1 = vector.shape_cast %0 : vector<1x21x24x4xf32> to vector<21x24x4xf32>
    %2 = vector.shape_cast %1 : vector<21x24x4xf32> to vector<504x4xf32>
    %3 = vector.extract_strided_slice %2 {offsets = [0, 0], sizes = [384, 4], strides = [1, 1]} : vector<504x4xf32> to vector<384x4xf32>
    %c0_3 = arith.constant 0 : index
    %c0_4 = arith.constant 0 : index
    %c0_5 = arith.constant 0 : index
    %4 = vector.load %arg3[%c0_3, %c0_4, %c0_5] : memref<9x4x4xf32, #tpu.memory_space<vmem>>, vector<1x4x4xf32>
    %5 = vector.shape_cast %4 : vector<1x4x4xf32> to vector<4x4xf32>
    %cst = arith.constant dense<0.000000e+00> : vector<384x4xf32>
    %6 = tpu.matmul %3, %5, %cst {dimension_numbers = #tpu.dot_dimension_numbers<[1], [0], [0], [1], [0, 0, 1, 1], [], []>} : vector<384x4xf32>, vector<4x4xf32>, vector<384x4xf32> -> vector<384x4xf32>
    %7 = vector.extract_strided_slice %2 {offsets = [2, 0], sizes = [384, 4], strides = [1, 1]} : vector<504x4xf32> to vector<384x4xf32>
    %c1 = arith.constant 1 : index
    %c0_6 = arith.constant 0 : index
    %c0_7 = arith.constant 0 : index
    %8 = vector.load %arg3[%c1, %c0_6, %c0_7] : memref<9x4x4xf32, #tpu.memory_space<vmem>>, vector<1x4x4xf32>
    %9 = vector.shape_cast %8 : vector<1x4x4xf32> to vector<4x4xf32>
    %cst_8 = arith.constant dense<0.000000e+00> : vector<384x4xf32>
    %10 = tpu.matmul %7, %9, %cst_8 {dimension_numbers = #tpu.dot_dimension_numbers<[1], [0], [0], [1], [0, 0, 1, 1], [], []>} : vector<384x4xf32>, vector<4x4xf32>, vector<384x4xf32> -> vector<384x4xf32>
    %11 = arith.addf %6, %10 : vector<384x4xf32>
    %12 = vector.extract_strided_slice %2 {offsets = [4, 0], sizes = [384, 4], strides = [1, 1]} : vector<504x4xf32> to vector<384x4xf32>
    %c2 = arith.constant 2 : index
    %c0_9 = arith.constant 0 : index
    %c0_10 = arith.constant 0 : index
    %13 = vector.load %arg3[%c2, %c0_9, %c0_10] : memref<9x4x4xf32, #tpu.memory_space<vmem>>, vector<1x4x4xf32>
    %14 = vector.shape_cast %13 : vector<1x4x4xf32> to vector<4x4xf32>
    %cst_11 = arith.constant dense<0.000000e+00> : vector<384x4xf32>
    %15 = tpu.matmul %12, %14, %cst_11 {dimension_numbers = #tpu.dot_dimension_numbers<[1], [0], [0], [1], [0, 0, 1, 1], [], []>} : vector<384x4xf32>, vector<4x4xf32>, vector<384x4xf32> -> vector<384x4xf32>
    %16 = arith.addf %11, %15 : vector<384x4xf32>
    %17 = vector.extract_strided_slice %2 {offsets = [48, 0], sizes = [384, 4], strides = [1, 1]} : vector<504x4xf32> to vector<384x4xf32>
    %c3 = arith.constant 3 : index
    %c0_12 = arith.constant 0 : index
    %c0_13 = arith.constant 0 : index
    %18 = vector.load %arg3[%c3, %c0_12, %c0_13] : memref<9x4x4xf32, #tpu.memory_space<vmem>>, vector<1x4x4xf32>
    %19 = vector.shape_cast %18 : vector<1x4x4xf32> to vector<4x4xf32>
    %cst_14 = arith.constant dense<0.000000e+00> : vector<384x4xf32>
    %20 = tpu.matmul %17, %19, %cst_14 {dimension_numbers = #tpu.dot_dimension_numbers<[1], [0], [0], [1], [0, 0, 1, 1], [], []>} : vector<384x4xf32>, vector<4x4xf32>, vector<384x4xf32> -> vector<384x4xf32>
    %21 = arith.addf %16, %20 : vector<384x4xf32>
    %22 = vector.extract_strided_slice %2 {offsets = [50, 0], sizes = [384, 4], strides = [1, 1]} : vector<504x4xf32> to vector<384x4xf32>
    %c4 = arith.constant 4 : index
    %c0_15 = arith.constant 0 : index
    %c0_16 = arith.constant 0 : index
    %23 = vector.load %arg3[%c4, %c0_15, %c0_16] : memref<9x4x4xf32, #tpu.memory_space<vmem>>, vector<1x4x4xf32>
    %24 = vector.shape_cast %23 : vector<1x4x4xf32> to vector<4x4xf32>
    %cst_17 = arith.constant dense<0.000000e+00> : vector<384x4xf32>
    %25 = tpu.matmul %22, %24, %cst_17 {dimension_numbers = #tpu.dot_dimension_numbers<[1], [0], [0], [1], [0, 0, 1, 1], [], []>} : vector<384x4xf32>, vector<4x4xf32>, vector<384x4xf32> -> vector<384x4xf32>
    %26 = arith.addf %21, %25 : vector<384x4xf32>
    %27 = vector.extract_strided_slice %2 {offsets = [52, 0], sizes = [384, 4], strides = [1, 1]} : vector<504x4xf32> to vector<384x4xf32>
    %c5 = arith.constant 5 : index
    %c0_18 = arith.constant 0 : index
    %c0_19 = arith.constant 0 : index
    %28 = vector.load %arg3[%c5, %c0_18, %c0_19] : memref<9x4x4xf32, #tpu.memory_space<vmem>>, vector<1x4x4xf32>
    %29 = vector.shape_cast %28 : vector<1x4x4xf32> to vector<4x4xf32>
    %cst_20 = arith.constant dense<0.000000e+00> : vector<384x4xf32>
    %30 = tpu.matmul %27, %29, %cst_20 {dimension_numbers = #tpu.dot_dimension_numbers<[1], [0], [0], [1], [0, 0, 1, 1], [], []>} : vector<384x4xf32>, vector<4x4xf32>, vector<384x4xf32> -> vector<384x4xf32>
    %31 = arith.addf %26, %30 : vector<384x4xf32>
    %32 = vector.extract_strided_slice %2 {offsets = [96, 0], sizes = [384, 4], strides = [1, 1]} : vector<504x4xf32> to vector<384x4xf32>
    %c6 = arith.constant 6 : index
    %c0_21 = arith.constant 0 : index
    %c0_22 = arith.constant 0 : index
    %33 = vector.load %arg3[%c6, %c0_21, %c0_22] : memref<9x4x4xf32, #tpu.memory_space<vmem>>, vector<1x4x4xf32>
    %34 = vector.shape_cast %33 : vector<1x4x4xf32> to vector<4x4xf32>
    %cst_23 = arith.constant dense<0.000000e+00> : vector<384x4xf32>
    %35 = tpu.matmul %32, %34, %cst_23 {dimension_numbers = #tpu.dot_dimension_numbers<[1], [0], [0], [1], [0, 0, 1, 1], [], []>} : vector<384x4xf32>, vector<4x4xf32>, vector<384x4xf32> -> vector<384x4xf32>
    %36 = arith.addf %31, %35 : vector<384x4xf32>
    %37 = vector.extract_strided_slice %2 {offsets = [98, 0], sizes = [384, 4], strides = [1, 1]} : vector<504x4xf32> to vector<384x4xf32>
    %c7 = arith.constant 7 : index
    %c0_24 = arith.constant 0 : index
    %c0_25 = arith.constant 0 : index
    %38 = vector.load %arg3[%c7, %c0_24, %c0_25] : memref<9x4x4xf32, #tpu.memory_space<vmem>>, vector<1x4x4xf32>
    %39 = vector.shape_cast %38 : vector<1x4x4xf32> to vector<4x4xf32>
    %cst_26 = arith.constant dense<0.000000e+00> : vector<384x4xf32>
    %40 = tpu.matmul %37, %39, %cst_26 {dimension_numbers = #tpu.dot_dimension_numbers<[1], [0], [0], [1], [0, 0, 1, 1], [], []>} : vector<384x4xf32>, vector<4x4xf32>, vector<384x4xf32> -> vector<384x4xf32>
    %41 = arith.addf %36, %40 : vector<384x4xf32>
    %42 = vector.extract_strided_slice %2 {offsets = [100, 0], sizes = [384, 4], strides = [1, 1]} : vector<504x4xf32> to vector<384x4xf32>
    %c8 = arith.constant 8 : index
    %c0_27 = arith.constant 0 : index
    %c0_28 = arith.constant 0 : index
    %43 = vector.load %arg3[%c8, %c0_27, %c0_28] : memref<9x4x4xf32, #tpu.memory_space<vmem>>, vector<1x4x4xf32>
    %44 = vector.shape_cast %43 : vector<1x4x4xf32> to vector<4x4xf32>
    %cst_29 = arith.constant dense<0.000000e+00> : vector<384x4xf32>
    %45 = tpu.matmul %42, %44, %cst_29 {dimension_numbers = #tpu.dot_dimension_numbers<[1], [0], [0], [1], [0, 0, 1, 1], [], []>} : vector<384x4xf32>, vector<4x4xf32>, vector<384x4xf32> -> vector<384x4xf32>
    %46 = arith.addf %41, %45 : vector<384x4xf32>
    %c0_30 = arith.constant 0 : index
    %c0_31 = arith.constant 0 : index
    %47 = vector.load %arg4[%c0_30, %c0_31] : memref<1x4xf32, #tpu.memory_space<vmem>>, vector<1x4xf32>
    %48 = vector.shape_cast %47 : vector<1x4xf32> to vector<4xf32>
    %49 = vector.shape_cast %48 : vector<4xf32> to vector<1x4xf32>
    %50 = vector.broadcast %49 : vector<1x4xf32> to vector<384x4xf32>
    %51 = arith.addf %46, %50 : vector<384x4xf32>
    %52 = arith.negf %51 : vector<384x4xf32>
    %53 = math.exp %52 : vector<384x4xf32>
    %cst_32 = arith.constant 1.000000e+00 : f32
    %54 = vector.broadcast %cst_32 : f32 to vector<384x4xf32>
    %55 = arith.addf %54, %53 : vector<384x4xf32>
    %56 = arith.divf %54, %55 : vector<384x4xf32>
    %57 = vector.extract_strided_slice %2 {offsets = [50, 0], sizes = [384, 4], strides = [1, 1]} : vector<504x4xf32> to vector<384x4xf32>
    %58 = arith.mulf %56, %57 : vector<384x4xf32>
    %59 = arith.mulf %58, %57 : vector<384x4xf32>
    %60 = vector.shape_cast %58 : vector<384x4xf32> to vector<16x24x4xf32>
    %61 = vector.extract_strided_slice %60 {offsets = [0, 0, 0], sizes = [16, 16, 4], strides = [1, 1, 1]} : vector<16x24x4xf32> to vector<16x16x4xf32>
    %c0_33 = arith.constant 0 : index
    %c0_34 = arith.constant 0 : index
    %c0_35 = arith.constant 0 : index
    %c0_36 = arith.constant 0 : index
    %62 = vector.load %arg5[%c0_33, %c0_34, %c0_35, %c0_36] : memref<1x16x16x4xf32, #tpu.memory_space<vmem>>, vector<1x16x16x4xf32>
    %63 = vector.shape_cast %62 : vector<1x16x16x4xf32> to vector<16x16x4xf32>
    %64 = vector.shape_cast %61 : vector<16x16x4xf32> to vector<1x16x16x4xf32>
    tpu.vector_store %arg5[%c0_33, %c0_34, %c0_35, %c0_36], %64 {strides = array<i32>} : memref<1x16x16x4xf32, #tpu.memory_space<vmem>>, vector<1x16x16x4xf32>,
    %65 = vector.shape_cast %59 : vector<384x4xf32> to vector<16x24x4xf32>
    %66 = vector.extract_strided_slice %65 {offsets = [0, 0, 0], sizes = [16, 16, 4], strides = [1, 1, 1]} : vector<16x24x4xf32> to vector<16x16x4xf32>
    %c0_37 = arith.constant 0 : index
    %c0_38 = arith.constant 0 : index
    %c0_39 = arith.constant 0 : index
    %c0_40 = arith.constant 0 : index
    %67 = vector.load %arg6[%c0_37, %c0_38, %c0_39, %c0_40] : memref<1x16x16x4xf32, #tpu.memory_space<vmem>>, vector<1x16x16x4xf32>
    %68 = vector.shape_cast %67 : vector<1x16x16x4xf32> to vector<16x16x4xf32>
    %69 = vector.shape_cast %66 : vector<16x16x4xf32> to vector<1x16x16x4xf32>
    tpu.vector_store %arg6[%c0_37, %c0_38, %c0_39, %c0_40], %69 {strides = array<i32>} : memref<1x16x16x4xf32, #tpu.memory_space<vmem>>, vector<1x16x16x4xf32>,
    return
  }
  func.func @transform_0(%arg0: i32, %arg1: i32) -> (i32, i32, i32, i32) {
    %c1_i32 = arith.constant 1 : i32
    %0 = arith.muli %arg0, %c1_i32 : i32
    %1 = arith.addi %0, %arg1 : i32
    %c0_i32 = arith.constant 0 : i32
    %c0_i32_0 = arith.constant 0 : i32
    %c0_i32_1 = arith.constant 0 : i32
    %c0_i32_2 = arith.constant 0 : i32
    return %1, %c0_i32, %c0_i32_0, %c0_i32_1 : i32, i32, i32, i32
  }
  func.func @transform_1(%arg0: i32, %arg1: i32) -> (i32, i32, i32) {
    %c0_i32 = arith.constant 0 : i32
    %c0_i32_0 = arith.constant 0 : i32
    %c0_i32_1 = arith.constant 0 : i32
    %c0_i32_2 = arith.constant 0 : i32
    return %c0_i32, %c0_i32_0, %c0_i32_1 : i32, i32, i32
  }
  func.func @transform_2(%arg0: i32, %arg1: i32) -> (i32, i32) {
    %c0_i32 = arith.constant 0 : i32
    %c0_i32_0 = arith.constant 0 : i32
    %c0_i32_1 = arith.constant 0 : i32
    return %c0_i32, %c0_i32_0 : i32, i32
  }
  func.func @transform_3(%arg0: i32, %arg1: i32) -> (i32, i32, i32, i32) {
    %c0_i32 = arith.constant 0 : i32
    %c0_i32_0 = arith.constant 0 : i32
    %c0_i32_1 = arith.constant 0 : i32
    return %arg0, %arg1, %c0_i32, %c0_i32_0 : i32, i32, i32, i32
  }
  func.func @transform_4(%arg0: i32, %arg1: i32) -> (i32, i32, i32, i32) {
    %c0_i32 = arith.constant 0 : i32
    %c0_i32_0 = arith.constant 0 : i32
    %c0_i32_1 = arith.constant 0 : i32
    return %arg0, %arg1, %c0_i32, %c0_i32_0 : i32, i32, i32, i32
  }
}

</mosaic_0001>

<llo_original>
// kernel: tpu_custom_call.1
$region0: #{tpu_custom_call.1}
  #allocation0 [shape = 'u32[]', space=smem, size = 0x4, offset = 0x4, fixed_abs, tag = 'smem constant byte address 0x4 - core index']
  #allocation1 [shape = 'u32[144,128]{1,0:T(1,128)}', space=vmem, size = 0x12000, scoped, tag = 'internal scratch']
  %s0 = inlined_call_operand.vmem [shape: f32[2,21,24,4], index: 0, kind: input, shape index: {}]
  %s1 = inlined_call_operand.vmem [shape: f32[9,4,4], index: 1, kind: input, shape index: {}]
  %s2 = inlined_call_operand.vmem [shape: f32[1,4], index: 2, kind: input, shape index: {}]
  %s3 = inlined_call_operand.vmem [shape: f32[2,16,16,4], index: 3, kind: output, shape index: {0}]
  %s4 = inlined_call_operand.vmem [shape: f32[2,16,16,4], index: 4, kind: output, shape index: {1}]
  %5 = xla_tuple %s3, %s4
  %s6 = sld [smem:[#allocation0]]
  $region53: #{tpu_custom_call.1} parent=0
    _
  %s8 = ssub.s32 1, %s6
  %s9 = scalar_select 0, %s8, %s6
  loop: start=0, step=1, limit=4
  $region2: #{tpu_custom_call.1} parent=0 // loop_pre_header
    _
  $region3: #{tpu_custom_call.1} parent=0 // loop_header
    %s11 = sphi 0, %s15
    %p12 = scmp.ge.s32.totalorder %s11, 4
    %s18 = sphi 0, %s30
    %s19 = sphi 0, %s26
    %s20 = sphi 0, %s18
    %s21 = sphi 0, %s19
    %s22 = sphi 0, %s20
    %s23 = sphi 0, %s21
    %s35 = sphi 0, %s37
    %s38 = sphi 0, %s35
    %s39 = sphi 0, %s38
    %s55 = sphi 0, %s39
    %s59 = sphi 0, %s59
    %s61 = sphi 0, %s59
    %s62 = sphi 0, %s61
    %s76 = sphi 0, %s62
    %s80 = sphi 0, %s80
    %s82 = sphi 0, %s80
    %s83 = sphi 0, %s82
    %s97 = sphi 0, %s83
    %s105 = sphi 0, %s107
    %s108 = sphi 0, %s105
    %s109 = sphi 0, %s108
    %s125 = sphi 0, %s109
    %s133 = sphi 0, %s135
    %s136 = sphi 0, %s133
    %s137 = sphi 0, %s136
    %s153 = sphi 0, %s137
  $region4: #{tpu_custom_call.1} parent=0 // loop_header_branch
    %14 = sbr.rel (%p12) target = $region8
  $region5: #{tpu_custom_call.1} parent=0 // loop_body
    %s16 = ssub.s32 %s11, 1
    %s17 = ssub.s32 %s11, 2
    %s24 = sadd.s32 1, %s19
    %p25 = scmp.ge.s32.totalorder %s24, 1
    %s26 = scalar_select %p25, 0, %s24
    %s27 = sadd.s32 1, %s18
    %s28 = scalar_select %p25, %s27, %s18
    %p29 = scmp.ge.s32.totalorder %s28, 2
    %s30 = scalar_select %p29, 0, %s28
    %s31 = sadd.s32 %s18, %s19
    %s32 = sadd.s32 %s30, %s26
    %s33 = ssub.s32 %s31, %s32
    %p34 = scmp.eq.s32.totalorder %s33, 0
    %s36 = sadd.s32 %s35, 1
    %s37 = scalar_select %p34, %s35, %s36
    %p40 = pneg %p34
    %p41 = scmp.eq.s32.totalorder %s11, 1
    %p42 = por %p40, %p41
    %p43 = scmp.ne.s32.totalorder %s35, %s38
    %p44 = scmp.eq.s32.totalorder %s11, 0
    %p45 = por %p43, %p44
    %p46 = scmp.ne.s32.totalorder %s35, %s38
    %p47 = scmp.eq.s32.totalorder %s16, 1
    %p48 = por %p46, %p47
    %p49 = scmp.ne.s32.totalorder %s38, %s39
    %p50 = scmp.eq.s32.totalorder %s16, 0
    %p51 = por %p49, %p50
    %p52 = scmp.ne.s32.totalorder %s38, %s39
    %p53 = scmp.eq.s32.totalorder %s17, 1
    %p54 = por %p52, %p53
    %p56 = scmp.ne.s32.totalorder %s39, %s55
    %p57 = scmp.eq.s32.totalorder %s17, 0
    %p58 = por %p56, %p57
    %s60 = sadd.s32 %s59, 1
    %p63 = scmp.eq.s32.totalorder %s11, 1
    %p64 = scmp.ne.s32.totalorder %s59, %s61
    %p65 = scmp.eq.s32.totalorder %s11, 0
    %p66 = por %p64, %p65
    %p67 = scmp.ne.s32.totalorder %s59, %s61
    %p68 = scmp.eq.s32.totalorder %s16, 1
    %p69 = por %p67, %p68
    %p70 = scmp.ne.s32.totalorder %s61, %s62
    %p71 = scmp.eq.s32.totalorder %s16, 0
    %p72 = por %p70, %p71
    %p73 = scmp.ne.s32.totalorder %s61, %s62
    %p74 = scmp.eq.s32.totalorder %s17, 1
    %p75 = por %p73, %p74
    %p77 = scmp.ne.s32.totalorder %s62, %s76
    %p78 = scmp.eq.s32.totalorder %s17, 0
    %p79 = por %p77, %p78
    %s81 = sadd.s32 %s80, 1
    %p84 = scmp.eq.s32.totalorder %s11, 1
    %p85 = scmp.ne.s32.totalorder %s80, %s82
    %p86 = scmp.eq.s32.totalorder %s11, 0
    %p87 = por %p85, %p86
    %p88 = scmp.ne.s32.totalorder %s80, %s82
    %p89 = scmp.eq.s32.totalorder %s16, 1
    %p90 = por %p88, %p89
    %p91 = scmp.ne.s32.totalorder %s82, %s83
    %p92 = scmp.eq.s32.totalorder %s16, 0
    %p93 = por %p91, %p92
    %p94 = scmp.ne.s32.totalorder %s82, %s83
    %p95 = scmp.eq.s32.totalorder %s17, 1
    %p96 = por %p94, %p95
    %p98 = scmp.ne.s32.totalorder %s83, %s97
    %p99 = scmp.eq.s32.totalorder %s17, 0
    %p100 = por %p98, %p99
    %s101 = ssub.s32 %s18, %s30
    %s102 = ssub.s32 %s19, %s26
    %s103 = sor.u32 %s101, %s102
    %p104 = scmp.eq.s32.totalorder %s103, 0
    %s106 = sadd.s32 %s105, 1
    %s107 = scalar_select %p104, %s105, %s106
    %p110 = pneg %p104
    %p111 = scmp.eq.s32.totalorder %s11, 1
    %p112 = por %p110, %p111
    %p113 = scmp.ne.s32.totalorder %s105, %s108
    %p114 = scmp.eq.s32.totalorder %s11, 0
    %p115 = por %p113, %p114
    %p116 = scmp.ne.s32.totalorder %s105, %s108
    %p117 = scmp.eq.s32.totalorder %s16, 1
    %p118 = por %p116, %p117
    %p119 = scmp.ne.s32.totalorder %s108, %s109
    %p120 = scmp.eq.s32.totalorder %s16, 0
    %p121 = por %p119, %p120
    %p122 = scmp.ne.s32.totalorder %s108, %s109
    %p123 = scmp.eq.s32.totalorder %s17, 1
    %p124 = por %p122, %p123
    %p126 = scmp.ne.s32.totalorder %s109, %s125
    %p127 = scmp.eq.s32.totalorder %s17, 0
    %p128 = por %p126, %p127
    %s129 = ssub.s32 %s18, %s30
    %s130 = ssub.s32 %s19, %s26
    %s131 = sor.u32 %s129, %s130
    %p132 = scmp.eq.s32.totalorder %s131, 0
    %s134 = sadd.s32 %s133, 1
    %s135 = scalar_select %p132, %s133, %s134
    %p138 = pneg %p132
    %p139 = scmp.eq.s32.totalorder %s11, 1
    %p140 = por %p138, %p139
    %p141 = scmp.ne.s32.totalorder %s133, %s136
    %p142 = scmp.eq.s32.totalorder %s11, 0
    %p143 = por %p141, %p142
    %p144 = scmp.ne.s32.totalorder %s133, %s136
    %p145 = scmp.eq.s32.totalorder %s16, 1
    %p146 = por %p144, %p145
    %p147 = scmp.ne.s32.totalorder %s136, %s137
    %p148 = scmp.eq.s32.totalorder %s16, 0
    %p149 = por %p147, %p148
    %p150 = scmp.ne.s32.totalorder %s136, %s137
    %p151 = scmp.eq.s32.totalorder %s17, 1
    %p152 = por %p150, %p151
    %p154 = scmp.ne.s32.totalorder %s137, %s153
    %p155 = scmp.eq.s32.totalorder %s17, 0
    %p156 = por %p154, %p155
    %p157 = scmp.le.s32.totalorder 1, %s11
    %p158 = scmp.lt.s32.totalorder %s11, 3
    %p159 = pnand %p157, %p158
    %p160 = pneg %p159
    // Predicated region
    $region9: #{tpu_custom_call.1} parent=5 // pred_check
      _
    $region10: #{tpu_custom_call.1} parent=5 // pred_check_branch
      %162 = sbr.rel (%p159) target = $region12
    $region11: #{tpu_custom_call.1} parent=5 // pred_region
      %s163 = ssub.s32 %s11, 1
      // Predicated region
      $region13: #{tpu_custom_call.1} parent=11 // pred_check
        %p164 = pneg %p72
      $region14: #{tpu_custom_call.1} parent=11 // pred_check_branch
        %166 = sbr.rel (%p164) target = $region16
      $region15: #{tpu_custom_call.1} parent=11 // pred_region
        _
      $region16: #{tpu_custom_call.1} parent=11 // pred_fallthru
        _
      // Predicated region
      $region17: #{tpu_custom_call.1} parent=11 // pred_check
        %p167 = pneg %p93
      $region18: #{tpu_custom_call.1} parent=11 // pred_check_branch
        %169 = sbr.rel (%p167) target = $region20
      $region19: #{tpu_custom_call.1} parent=11 // pred_region
        _
      $region20: #{tpu_custom_call.1} parent=11 // pred_fallthru
        _
    $region12: #{tpu_custom_call.1} parent=5 // pred_fallthru
      _
    %p170 = scmp.lt.s32.totalorder %s11, 2
    // Predicated region
    $region21: #{tpu_custom_call.1} parent=5 // pred_check
      %p171 = pneg %p170
    $region22: #{tpu_custom_call.1} parent=5 // pred_check_branch
      %173 = sbr.rel (%p171) target = $region24
    $region23: #{tpu_custom_call.1} parent=5 // pred_region
      // Predicated region
      $region25: #{tpu_custom_call.1} parent=23 // pred_check
        %p174 = pneg %p45
      $region26: #{tpu_custom_call.1} parent=23 // pred_check_branch
        %176 = sbr.rel (%p174) target = $region28
      $region27: #{tpu_custom_call.1} parent=23 // pred_region
        %s177 = sadd.s32 %s18, %s19
        %p178 = scmp.lt.s32.totalorder %s177, 1
        %s179 = scalar_select %p178, %s177, 1
        %s180 = smul.addr %s179, 63
        %s181 = smul.addr %s180, 8
        %s182 = scalar_lea.vmem %s0, %s181
        %s183 = sadd.s32 %s18, %s19
      $region28: #{tpu_custom_call.1} parent=23 // pred_fallthru
        _
    $region24: #{tpu_custom_call.1} parent=5 // pred_fallthru
      _
    %p184 = scmp.le.s32.totalorder 1, %s11
    %p185 = scmp.lt.s32.totalorder %s11, 3
    %p186 = pnand %p184, %p185
    %p187 = pneg %p186
    // Predicated region
    $region29: #{tpu_custom_call.1} parent=5 // pred_check
      _
    $region30: #{tpu_custom_call.1} parent=5 // pred_check_branch
      %189 = sbr.rel (%p186) target = $region32
    $region31: #{tpu_custom_call.1} parent=5 // pred_region
      %s190 = ssub.s32 %s11, 1
      %s191 = sadd.s32 %s20, %s21
      %p192 = scmp.lt.s32.totalorder %s191, 1
      %s193 = scalar_select %p192, %s191, 1
      %s194 = smul.addr %s193, 63
      %s195 = smul.addr %s194, 8
      %s196 = scalar_lea.vmem %s0, %s195
      %p197 = pneg %p51
      %p198 = pneg %p48
      %p199 = pneg %p72
      %p200 = pneg %p69
      %p201 = pneg %p93
      %p202 = pneg %p90
      %p203 = pneg %p121
      %p204 = pneg %p118
      %s205 = smul.u32 16, %s21
      %p206 = scmp.lt.s32.totalorder %s20, 1
      %s207 = scalar_select %p206, %s20, 1
      %p208 = scmp.lt.s32.totalorder %s205, 15
      %s209 = scalar_select %p208, %s205, 15
      %s210 = smul.addr %s209, 2
      %s211 = smul.addr %s207, 32
      %s212 = sadd.s32 %s210, %s211
      %s213 = smul.addr %s212, 8
      %s214 = scalar_lea.vmem %s3, %s213
      %p215 = pneg %p149
      %p216 = pneg %p146
      %s217 = smul.u32 16, %s21
      %p218 = scmp.lt.s32.totalorder %s20, 1
      %s219 = scalar_select %p218, %s20, 1
      %p220 = scmp.lt.s32.totalorder %s217, 15
      %s221 = scalar_select %p220, %s217, 15
      %s222 = smul.addr %s221, 2
      %s223 = smul.addr %s219, 32
      %s224 = sadd.s32 %s222, %s223
      %s225 = smul.addr %s224, 8
      %s226 = scalar_lea.vmem %s4, %s225
      %s227 = sadd.s32 %s20, %s21
      %p228 = scmp.lt.s32.totalorder %s227, 1
      %s229 = scalar_select %p228, %s227, 1
      %s230 = smul.addr %s229, 63
      %s231 = smul.addr %s230, 8
      %s232 = scalar_lea.vmem %s0, %s231
      %s233 = sadd.s32 %s20, %s21
      %s234 = smul.u32 16, %s21
      %p235 = scmp.lt.s32.totalorder %s20, 1
      %s236 = scalar_select %p235, %s20, 1
      %p237 = scmp.lt.s32.totalorder %s234, 15
      %s238 = scalar_select %p237, %s234, 15
      %s239 = smul.addr %s238, 2
      %s240 = smul.addr %s236, 32
      %s241 = sadd.s32 %s239, %s240
      %s242 = smul.addr %s241, 8
      %s243 = scalar_lea.vmem %s3, %s242
      %s244 = smul.u32 16, %s21
      %s245 = smul.u32 16, %s21
      %p246 = scmp.lt.s32.totalorder %s20, 1
      %s247 = scalar_select %p246, %s20, 1
      %p248 = scmp.lt.s32.totalorder %s245, 15
      %s249 = scalar_select %p248, %s245, 15
      %s250 = smul.addr %s249, 2
      %s251 = smul.addr %s247, 32
      %s252 = sadd.s32 %s250, %s251
      %s253 = smul.addr %s252, 8
      %s254 = scalar_lea.vmem %s4, %s253
      %s255 = smul.u32 16, %s21
      %v256 = vld [vmem:[%s232] sm:$0xff]
      %v257 = vld [vmem:[%s232 + $0x8] sm:$0xff]
      %v258 = vld [vmem:[%s232 + $0x10] sm:$0xff]
      %v259 = vld [vmem:[%s232 + $0x18] sm:$0xff]
      %v260 = vld [vmem:[%s232 + $0x20] sm:$0xff]
      %v261 = vld [vmem:[%s232 + $0x28] sm:$0xff]
      %v262 = vld [vmem:[%s232 + $0x30] sm:$0xff]
      %v263 = vld [vmem:[%s232 + $0x38] sm:$0xff]
      %v264 = vld [vmem:[%s232 + $0x40] sm:$0xff]
      %v265 = vld [vmem:[%s232 + $0x48] sm:$0xff]
      %v266 = vld [vmem:[%s232 + $0x50] sm:$0xff]
      %v267 = vld [vmem:[%s232 + $0x58] sm:$0xff]
      %v268 = vld [vmem:[%s232 + $0x60] sm:$0xff]
      %v269 = vld [vmem:[%s232 + $0x68] sm:$0xff]
      %v270 = vld [vmem:[%s232 + $0x70] sm:$0xff]
      %v271 = vld [vmem:[%s232 + $0x78] sm:$0xff]
      %v272 = vld [vmem:[%s232 + $0x80] sm:$0xff]
      %v273 = vld [vmem:[%s232 + $0x88] sm:$0xff]
      %v274 = vld [vmem:[%s232 + $0x90] sm:$0xff]
      %v275 = vld [vmem:[%s232 + $0x98] sm:$0xff]
      %v276 = vld [vmem:[%s232 + $0xa0] sm:$0xff]
      %v277 = vld [vmem:[%s232 + $0xa8] sm:$0xff]
      %v278 = vld [vmem:[%s232 + $0xb0] sm:$0xff]
      %v279 = vld [vmem:[%s232 + $0xb8] sm:$0xff]
      %v280 = vld [vmem:[%s232 + $0xc0] sm:$0xff]
      %v281 = vld [vmem:[%s232 + $0xc8] sm:$0xff]
      %v282 = vld [vmem:[%s232 + $0xd0] sm:$0xff]
      %v283 = vld [vmem:[%s232 + $0xd8] sm:$0xff]
      %v284 = vld [vmem:[%s232 + $0xe0] sm:$0xff]
      %v285 = vld [vmem:[%s232 + $0xe8] sm:$0xff]
      %v286 = vld [vmem:[%s232 + $0xf0] sm:$0xff]
      %v287 = vld [vmem:[%s232 + $0xf8] sm:$0xff]
      %v288 = vld [vmem:[%s232 + $0x100] sm:$0xff]
      %v289 = vld [vmem:[%s232 + $0x108] sm:$0xff]
      %v290 = vld [vmem:[%s232 + $0x110] sm:$0xff]
      %v291 = vld [vmem:[%s232 + $0x118] sm:$0xff]
      %v292 = vld [vmem:[%s232 + $0x120] sm:$0xff]
      %v293 = vld [vmem:[%s232 + $0x128] sm:$0xff]
      %v294 = vld [vmem:[%s232 + $0x130] sm:$0xff]
      %v295 = vld [vmem:[%s232 + $0x138] sm:$0xff]
      %v296 = vld [vmem:[%s232 + $0x140] sm:$0xff]
      %v297 = vld [vmem:[%s232 + $0x148] sm:$0xff]
      %v298 = vld [vmem:[%s232 + $0x150] sm:$0xff]
      %v299 = vld [vmem:[%s232 + $0x158] sm:$0xff]
      %v300 = vld [vmem:[%s232 + $0x160] sm:$0xff]
      %v301 = vld [vmem:[%s232 + $0x168] sm:$0xff]
      %v302 = vld [vmem:[%s232 + $0x170] sm:$0xff]
      %v303 = vld [vmem:[%s232 + $0x178] sm:$0xff]
      %v304 = vld [vmem:[%s232 + $0x180] sm:$0xff]
      %v305 = vld [vmem:[%s232 + $0x188] sm:$0xff]
      %v306 = vld [vmem:[%s232 + $0x190] sm:$0xff]
      %v307 = vld [vmem:[%s232 + $0x198] sm:$0xff]
      %v308 = vld [vmem:[%s232 + $0x1a0] sm:$0xff]
      %v309 = vld [vmem:[%s232 + $0x1a8] sm:$0xff]
      %v310 = vld [vmem:[%s232 + $0x1b0] sm:$0xff]
      %v311 = vld [vmem:[%s232 + $0x1b8] sm:$0xff]
      %v312 = vld [vmem:[%s232 + $0x1c0] sm:$0xff]
      %v313 = vld [vmem:[%s232 + $0x1c8] sm:$0xff]
      %v314 = vld [vmem:[%s232 + $0x1d0] sm:$0xff]
      %v315 = vld [vmem:[%s232 + $0x1d8] sm:$0xff]
      %v316 = vld [vmem:[%s232 + $0x1e0] sm:$0xff]
      %v317 = vld [vmem:[%s1] sm:$0xf]
      %s318 = scalar_lea.vmem %s1, 4
      %v319 = vld [vmem:[%s318] sm:$0xf]
      %vm369 = vcmask 1045504
      %v370 = vrot.slane %v256, 2
      %v371 = vrot.slane %v257, 2
      %v372 = vsel %vm369, %v370, %v371
      %v373 = vrot.slane %v258, 2
      %v374 = vsel %vm369, %v371, %v373
      %v375 = vrot.slane %v259, 2
      %v376 = vsel %vm369, %v373, %v375
      %v377 = vrot.slane %v260, 2
      %v378 = vsel %vm369, %v375, %v377
      %v379 = vrot.slane %v261, 2
      %v380 = vsel %vm369, %v377, %v379
      %v381 = vrot.slane %v262, 2
      %v382 = vsel %vm369, %v379, %v381
      %v383 = vrot.slane %v263, 2
      %v384 = vsel %vm369, %v381, %v383
      %v385 = vrot.slane %v264, 2
      %v386 = vsel %vm369, %v383, %v385
      %v387 = vrot.slane %v265, 2
      %v388 = vsel %vm369, %v385, %v387
      %v389 = vrot.slane %v266, 2
      %v390 = vsel %vm369, %v387, %v389
      %v391 = vrot.slane %v267, 2
      %v392 = vsel %vm369, %v389, %v391
      %v393 = vrot.slane %v268, 2
      %v394 = vsel %vm369, %v391, %v393
      %v395 = vrot.slane %v269, 2
      %v396 = vsel %vm369, %v393, %v395
      %v397 = vrot.slane %v270, 2
      %v398 = vsel %vm369, %v395, %v397
      %v399 = vrot.slane %v271, 2
      %v400 = vsel %vm369, %v397, %v399
      %v401 = vrot.slane %v272, 2
      %v402 = vsel %vm369, %v399, %v401
      %v403 = vrot.slane %v273, 2
      %v404 = vsel %vm369, %v401, %v403
      %v405 = vrot.slane %v274, 2
      %v406 = vsel %vm369, %v403, %v405
      %v407 = vrot.slane %v275, 2
      %v408 = vsel %vm369, %v405, %v407
      %v409 = vrot.slane %v276, 2
      %v410 = vsel %vm369, %v407, %v409
      %v411 = vrot.slane %v277, 2
      %v412 = vsel %vm369, %v409, %v411
      %v413 = vrot.slane %v278, 2
      %v414 = vsel %vm369, %v411, %v413
      %v415 = vrot.slane %v279, 2
      %v416 = vsel %vm369, %v413, %v415
      %v417 = vrot.slane %v280, 2
      %v418 = vsel %vm369, %v415, %v417
      %v419 = vrot.slane %v281, 2
      %v420 = vsel %vm369, %v417, %v419
      %v421 = vrot.slane %v282, 2
      %v422 = vsel %vm369, %v419, %v421
      %v423 = vrot.slane %v283, 2
      %v424 = vsel %vm369, %v421, %v423
      %v425 = vrot.slane %v284, 2
      %v426 = vsel %vm369, %v423, %v425
      %v427 = vrot.slane %v285, 2
      %v428 = vsel %vm369, %v425, %v427
      %v429 = vrot.slane %v286, 2
      %v430 = vsel %vm369, %v427, %v429
      %v431 = vrot.slane %v287, 2
      %v432 = vsel %vm369, %v429, %v431
      %v433 = vrot.slane %v288, 2
      %v434 = vsel %vm369, %v431, %v433
      %v435 = vrot.slane %v289, 2
      %v436 = vsel %vm369, %v433, %v435
      %v437 = vrot.slane %v290, 2
      %v438 = vsel %vm369, %v435, %v437
      %v439 = vrot.slane %v291, 2
      %v440 = vsel %vm369, %v437, %v439
      %v441 = vrot.slane %v292, 2
      %v442 = vsel %vm369, %v439, %v441
      %v443 = vrot.slane %v293, 2
      %v444 = vsel %vm369, %v441, %v443
      %v445 = vrot.slane %v294, 2
      %v446 = vsel %vm369, %v443, %v445
      %v447 = vrot.slane %v295, 2
      %v448 = vsel %vm369, %v445, %v447
      %v449 = vrot.slane %v296, 2
      %v450 = vsel %vm369, %v447, %v449
      %v451 = vrot.slane %v297, 2
      %v452 = vsel %vm369, %v449, %v451
      %v453 = vrot.slane %v298, 2
      %v454 = vsel %vm369, %v451, %v453
      %v455 = vrot.slane %v299, 2
      %v456 = vsel %vm369, %v453, %v455
      %v457 = vrot.slane %v300, 2
      %v458 = vsel %vm369, %v455, %v457
      %v459 = vrot.slane %v301, 2
      %v460 = vsel %vm369, %v457, %v459
      %v461 = vrot.slane %v302, 2
      %v462 = vsel %vm369, %v459, %v461
      %v463 = vrot.slane %v303, 2
      %v464 = vsel %vm369, %v461, %v463
      %v465 = vrot.slane %v304, 2
      %v466 = vsel %vm369, %v463, %v465
      %vm467 = vcmask 31744
      %v468 = vsel %vm467, %v372, 0
      %v470 = vsel %vm467, %v374, 0
      %v472 = vsel %vm467, %v376, 0
      %v474 = vsel %vm467, %v378, 0
      %v476 = vsel %vm467, %v380, 0
      %v478 = vsel %vm467, %v382, 0
      %v480 = vsel %vm467, %v384, 0
      %v482 = vsel %vm467, %v386, 0
      %v484 = vsel %vm467, %v388, 0
      %v486 = vsel %vm467, %v390, 0
      %v488 = vsel %vm467, %v392, 0
      %v490 = vsel %vm467, %v394, 0
      %v492 = vsel %vm467, %v396, 0
      %v494 = vsel %vm467, %v398, 0
      %v496 = vsel %vm467, %v400, 0
      %v498 = vsel %vm467, %v402, 0
      %v500 = vsel %vm467, %v404, 0
      %v502 = vsel %vm467, %v406, 0
      %v504 = vsel %vm467, %v408, 0
      %v506 = vsel %vm467, %v410, 0
      %v508 = vsel %vm467, %v412, 0
      %v510 = vsel %vm467, %v414, 0
      %v512 = vsel %vm467, %v416, 0
      %v514 = vsel %vm467, %v418, 0
      %v516 = vsel %vm467, %v420, 0
      %v518 = vsel %vm467, %v422, 0
      %v520 = vsel %vm467, %v424, 0
      %v522 = vsel %vm467, %v426, 0
      %v524 = vsel %vm467, %v428, 0
      %v526 = vsel %vm467, %v430, 0
      %v528 = vsel %vm467, %v432, 0
      %v530 = vsel %vm467, %v434, 0
      %v532 = vsel %vm467, %v436, 0
      %v534 = vsel %vm467, %v438, 0
      %v536 = vsel %vm467, %v440, 0
      %v538 = vsel %vm467, %v442, 0
      %v540 = vsel %vm467, %v444, 0
      %v542 = vsel %vm467, %v446, 0
      %v544 = vsel %vm467, %v448, 0
      %v546 = vsel %vm467, %v450, 0
      %v548 = vsel %vm467, %v452, 0
      %v550 = vsel %vm467, %v454, 0
      %v552 = vsel %vm467, %v456, 0
      %v554 = vsel %vm467, %v458, 0
      %v556 = vsel %vm467, %v460, 0
      %v558 = vsel %vm467, %v462, 0
      %v560 = vsel %vm467, %v464, 0
      %v562 = vsel %vm467, %v466, 0
      %vm564 = vcmask 1043456
      %v566 = vsel %vm564, %v319, 0
      %568 = vmatprep.subr.mxu0 0.0
      %569 = vmatpush1.msra.mxu0 %v566
      %570 = vmatprep.subr.mxu0 0.0
      %571 = vmatpush1.msra.mxu0 0.0
      %572 = vmatprep.subr.mxu0 0.0
      %573 = vmatpush1.msra.mxu0 0.0
      %574 = vmatprep.subr.mxu0 0.0
      %575 = vmatpush1.msra.mxu0 0.0
      %576 = vmatprep.subr.mxu0 0.0
      %577 = vmatpush1.msra.mxu0 0.0
      %578 = vmatprep.subr.mxu0 0.0
      %579 = vmatpush1.msra.mxu0 0.0
      %580 = vmatprep.subr.mxu0 0.0
      %581 = vmatpush1.msra.mxu0 0.0
      %582 = vmatprep.subr.mxu0 0.0
      %583 = vmatpush1.msra.mxu0 0.0
      %584 = vmatprep.subr.mxu0 0.0
      %585 = vmatpush1.msra.mxu0 0.0
      %586 = vmatprep.subr.mxu0 0.0
      %587 = vmatpush1.msra.mxu0 0.0
      %588 = vmatprep.subr.mxu0 0.0
      %589 = vmatpush1.msra.mxu0 0.0
      %590 = vmatprep.subr.mxu0 0.0
      %591 = vmatpush1.msra.mxu0 0.0
      %592 = vmatprep.subr.mxu0 0.0
      %593 = vmatpush1.msra.mxu0 0.0
      %594 = vmatprep.subr.mxu0 0.0
      %595 = vmatpush1.msra.mxu0 0.0
      %596 = vmatprep.subr.mxu0 0.0
      %597 = vmatpush1.msra.mxu0 0.0
      %598 = vmatprep.subr.mxu0 0.0
      %599 = vmatpush1.msra.mxu0 0.0
      %600 = vmatprep.subr.mxu0 0.0
      %601 = vmatpush1.msra.mxu0 0.0
      %602 = vmatprep.subr.mxu0 0.0
      %603 = vmatpush1.msra.mxu0 0.0
      %604 = vmatprep.subr.mxu0 0.0
      %605 = vmatpush1.msra.mxu0 0.0
      %606 = vmatprep.subr.mxu0 0.0
      %607 = vmatpush1.msra.mxu0 0.0
      %608 = vmatprep.subr.mxu0 0.0
      %609 = vmatpush1.msra.mxu0 0.0
      %610 = vmatprep.subr.mxu0 0.0
      %611 = vmatpush1.msra.mxu0 0.0
      %612 = vmatprep.subr.mxu0 0.0
      %613 = vmatpush1.msra.mxu0 0.0
      %614 = vmatprep.subr.mxu0 0.0
      %615 = vmatpush1.msra.mxu0 0.0
      %616 = vmatprep.subr.mxu0 0.0
      %617 = vmatpush1.msra.mxu0 0.0
      %618 = vmatprep.subr.mxu0 0.0
      %619 = vmatpush1.msra.mxu0 0.0
      %620 = vmatprep.subr.mxu0 0.0
      %621 = vmatpush1.msra.mxu0 0.0
      %622 = vmatprep.subr.mxu0 0.0
      %623 = vmatpush1.msra.mxu0 0.0
      %624 = vmatprep.subr.mxu0 0.0
      %625 = vmatpush1.msra.mxu0 0.0
      %626 = vmatprep.subr.mxu0 0.0
      %627 = vmatpush1.msra.mxu0 0.0
      %628 = vmatprep.subr.mxu0 0.0
      %629 = vmatpush1.msra.mxu0 0.0
      %630 = vmatprep.subr.mxu0 0.0
      %631 = vmatpush1.msra.mxu0 0.0
      %632 = vmatprep.mubr.f32.mxu0 0.0
      %633 = vmatmul.mubr.f32.gmra.mrb[0].mxu0 %v468
      %v634 = vpop.f32.mrb[0].mxu0
      %v635 = vadd.f32 0.0, %v634
      %v636 = vpop.f32.mrb[0].mxu0
      %637 = vmatprep.mubr.f32.mxu0 0.0
      %638 = vmatmul.mubr.f32.gmra.mrb[0].mxu0 %v470
      %v639 = vpop.f32.mrb[0].mxu0
      %v640 = vadd.f32 0.0, %v639
      %v641 = vpop.f32.mrb[0].mxu0
      %642 = vmatprep.mubr.f32.mxu0 0.0
      %643 = vmatmul.mubr.f32.gmra.mrb[0].mxu0 %v472
      %v644 = vpop.f32.mrb[0].mxu0
      %v645 = vpop.f32.mrb[0].mxu0
      %646 = vmatprep.mubr.f32.mxu0 0.0
      %647 = vmatmul.mubr.f32.gmra.mrb[0].mxu0 %v474
      %v648 = vpop.f32.mrb[0].mxu0
      %v649 = vadd.f32 0.0, %v648
      %v650 = vpop.f32.mrb[0].mxu0
      %651 = vmatprep.mubr.f32.mxu0 0.0
      %652 = vmatmul.mubr.f32.gmra.mrb[0].mxu0 %v476
      %v653 = vpop.f32.mrb[0].mxu0
      %v654 = vadd.f32 0.0, %v653
      %v655 = vpop.f32.mrb[0].mxu0
      %656 = vmatprep.mubr.f32.mxu0 0.0
      %657 = vmatmul.mubr.f32.gmra.mrb[0].mxu0 %v478
      %v658 = vpop.f32.mrb[0].mxu0
      %v659 = vpop.f32.mrb[0].mxu0
      %660 = vmatprep.mubr.f32.mxu0 0.0
      %661 = vmatmul.mubr.f32.gmra.mrb[0].mxu0 %v480
      %v662 = vpop.f32.mrb[0].mxu0
      %v663 = vadd.f32 0.0, %v662
      %v664 = vpop.f32.mrb[0].mxu0
      %665 = vmatprep.mubr.f32.mxu0 0.0
      %666 = vmatmul.mubr.f32.gmra.mrb[0].mxu0 %v482
      %v667 = vpop.f32.mrb[0].mxu0
      %v668 = vadd.f32 0.0, %v667
      %v669 = vpop.f32.mrb[0].mxu0
      %670 = vmatprep.mubr.f32.mxu0 0.0
      %671 = vmatmul.mubr.f32.gmra.mrb[0].mxu0 %v484
      %v672 = vpop.f32.mrb[0].mxu0
      %v673 = vpop.f32.mrb[0].mxu0
      %674 = vmatprep.mubr.f32.mxu0 0.0
      %675 = vmatmul.mubr.f32.gmra.mrb[0].mxu0 %v486
      %v676 = vpop.f32.mrb[0].mxu0
      %v677 = vadd.f32 0.0, %v676
      %v678 = vpop.f32.mrb[0].mxu0
      %679 = vmatprep.mubr.f32.mxu0 0.0
      %680 = vmatmul.mubr.f32.gmra.mrb[0].mxu0 %v488
      %v681 = vpop.f32.mrb[0].mxu0
      %v682 = vadd.f32 0.0, %v681
      %v683 = vpop.f32.mrb[0].mxu0
      %684 = vmatprep.mubr.f32.mxu0 0.0
      %685 = vmatmul.mubr.f32.gmra.mrb[0].mxu0 %v490
      %v686 = vpop.f32.mrb[0].mxu0
      %v687 = vpop.f32.mrb[0].mxu0
      %688 = vmatprep.mubr.f32.mxu0 0.0
      %689 = vmatmul.mubr.f32.gmra.mrb[0].mxu0 %v492
      %v690 = vpop.f32.mrb[0].mxu0
      %v691 = vadd.f32 0.0, %v690
      %v692 = vpop.f32.mrb[0].mxu0
      %693 = vmatprep.mubr.f32.mxu0 0.0
      %694 = vmatmul.mubr.f32.gmra.mrb[0].mxu0 %v494
      %v695 = vpop.f32.mrb[0].mxu0
      %v696 = vadd.f32 0.0, %v695
      %v697 = vpop.f32.mrb[0].mxu0
      %698 = vmatprep.mubr.f32.mxu0 0.0
      %699 = vmatmul.mubr.f32.gmra.mrb[0].mxu0 %v496
      %v700 = vpop.f32.mrb[0].mxu0
      %v701 = vpop.f32.mrb[0].mxu0
      %702 = vmatprep.mubr.f32.mxu0 0.0
      %703 = vmatmul.mubr.f32.gmra.mrb[0].mxu0 %v498
      %v704 = vpop.f32.mrb[0].mxu0
      %v705 = vadd.f32 0.0, %v704
      %v706 = vpop.f32.mrb[0].mxu0
      %707 = vmatprep.mubr.f32.mxu0 0.0
      %708 = vmatmul.mubr.f32.gmra.mrb[0].mxu0 %v500
      %v709 = vpop.f32.mrb[0].mxu0
      %v710 = vadd.f32 0.0, %v709
      %v711 = vpop.f32.mrb[0].mxu0
      %712 = vmatprep.mubr.f32.mxu0 0.0
      %713 = vmatmul.mubr.f32.gmra.mrb[0].mxu0 %v502
      %v714 = vpop.f32.mrb[0].mxu0
      %v715 = vpop.f32.mrb[0].mxu0
      %716 = vmatprep.mubr.f32.mxu0 0.0
      %717 = vmatmul.mubr.f32.gmra.mrb[0].mxu0 %v504
      %v718 = vpop.f32.mrb[0].mxu0
      %v719 = vadd.f32 0.0, %v718
      %v720 = vpop.f32.mrb[0].mxu0
      %721 = vmatprep.mubr.f32.mxu0 0.0
      %722 = vmatmul.mubr.f32.gmra.mrb[0].mxu0 %v506
      %v723 = vpop.f32.mrb[0].mxu0
      %v724 = vadd.f32 0.0, %v723
      %v725 = vpop.f32.mrb[0].mxu0
      %726 = vmatprep.mubr.f32.mxu0 0.0
      %727 = vmatmul.mubr.f32.gmra.mrb[0].mxu0 %v508
      %v728 = vpop.f32.mrb[0].mxu0
      %v729 = vpop.f32.mrb[0].mxu0
      %730 = vmatprep.mubr.f32.mxu0 0.0
      %731 = vmatmul.mubr.f32.gmra.mrb[0].mxu0 %v510
      %v732 = vpop.f32.mrb[0].mxu0
      %v733 = vadd.f32 0.0, %v732
      %v734 = vpop.f32.mrb[0].mxu0
      %735 = vmatprep.mubr.f32.mxu0 0.0
      %736 = vmatmul.mubr.f32.gmra.mrb[0].mxu0 %v512
      %v737 = vpop.f32.mrb[0].mxu0
      %v738 = vadd.f32 0.0, %v737
      %v739 = vpop.f32.mrb[0].mxu0
      %740 = vmatprep.mubr.f32.mxu0 0.0
      %741 = vmatmul.mubr.f32.gmra.mrb[0].mxu0 %v514
      %v742 = vpop.f32.mrb[0].mxu0
      %v743 = vpop.f32.mrb[0].mxu0
      %744 = vmatprep.mubr.f32.mxu0 0.0
      %745 = vmatmul.mubr.f32.gmra.mrb[0].mxu0 %v516
      %v746 = vpop.f32.mrb[0].mxu0
      %v747 = vadd.f32 0.0, %v746
      %v748 = vpop.f32.mrb[0].mxu0
      %749 = vmatprep.mubr.f32.mxu0 0.0
      %750 = vmatmul.mubr.f32.gmra.mrb[0].mxu0 %v518
      %v751 = vpop.f32.mrb[0].mxu0
      %v752 = vadd.f32 0.0, %v751
      %v753 = vpop.f32.mrb[0].mxu0
      %754 = vmatprep.mubr.f32.mxu0 0.0
      %755 = vmatmul.mubr.f32.gmra.mrb[0].mxu0 %v520
      %v756 = vpop.f32.mrb[0].mxu0
      %v757 = vpop.f32.mrb[0].mxu0
      %758 = vmatprep.mubr.f32.mxu0 0.0
      %759 = vmatmul.mubr.f32.gmra.mrb[0].mxu0 %v522
      %v760 = vpop.f32.mrb[0].mxu0
      %v761 = vadd.f32 0.0, %v760
      %v762 = vpop.f32.mrb[0].mxu0
      %763 = vmatprep.mubr.f32.mxu0 0.0
      %764 = vmatmul.mubr.f32.gmra.mrb[0].mxu0 %v524
      %v765 = vpop.f32.mrb[0].mxu0
      %v766 = vadd.f32 0.0, %v765
      %v767 = vpop.f32.mrb[0].mxu0
      %768 = vmatprep.mubr.f32.mxu0 0.0
      %769 = vmatmul.mubr.f32.gmra.mrb[0].mxu0 %v526
      %v770 = vpop.f32.mrb[0].mxu0
      %v771 = vpop.f32.mrb[0].mxu0
      %772 = vmatprep.mubr.f32.mxu0 0.0
      %773 = vmatmul.mubr.f32.gmra.mrb[0].mxu0 %v528
      %v774 = vpop.f32.mrb[0].mxu0
      %v775 = vadd.f32 0.0, %v774
      %v776 = vpop.f32.mrb[0].mxu0
      %777 = vmatprep.mubr.f32.mxu0 0.0
      %778 = vmatmul.mubr.f32.gmra.mrb[0].mxu0 %v530
      %v779 = vpop.f32.mrb[0].mxu0
      %v780 = vadd.f32 0.0, %v779
      %v781 = vpop.f32.mrb[0].mxu0
      %782 = vmatprep.mubr.f32.mxu0 0.0
      %783 = vmatmul.mubr.f32.gmra.mrb[0].mxu0 %v532
      %v784 = vpop.f32.mrb[0].mxu0
      %v785 = vpop.f32.mrb[0].mxu0
      %786 = vmatprep.mubr.f32.mxu0 0.0
      %787 = vmatmul.mubr.f32.gmra.mrb[0].mxu0 %v534
      %v788 = vpop.f32.mrb[0].mxu0
      %v789 = vadd.f32 0.0, %v788
      %v790 = vpop.f32.mrb[0].mxu0
      %791 = vmatprep.mubr.f32.mxu0 0.0
      %792 = vmatmul.mubr.f32.gmra.mrb[0].mxu0 %v536
      %v793 = vpop.f32.mrb[0].mxu0
      %v794 = vadd.f32 0.0, %v793
      %v795 = vpop.f32.mrb[0].mxu0
      %796 = vmatprep.mubr.f32.mxu0 0.0
      %797 = vmatmul.mubr.f32.gmra.mrb[0].mxu0 %v538
      %v798 = vpop.f32.mrb[0].mxu0
      %v799 = vpop.f32.mrb[0].mxu0
      %800 = vmatprep.mubr.f32.mxu0 0.0
      %801 = vmatmul.mubr.f32.gmra.mrb[0].mxu0 %v540
      %v802 = vpop.f32.mrb[0].mxu0
      %v803 = vadd.f32 0.0, %v802
      %v804 = vpop.f32.mrb[0].mxu0
      %805 = vmatprep.mubr.f32.mxu0 0.0
      %806 = vmatmul.mubr.f32.gmra.mrb[0].mxu0 %v542
      %v807 = vpop.f32.mrb[0].mxu0
      %v808 = vadd.f32 0.0, %v807
      %v809 = vpop.f32.mrb[0].mxu0
      %810 = vmatprep.mubr.f32.mxu0 0.0
      %811 = vmatmul.mubr.f32.gmra.mrb[0].mxu0 %v544
      %v812 = vpop.f32.mrb[0].mxu0
      %v813 = vpop.f32.mrb[0].mxu0
      %814 = vmatprep.mubr.f32.mxu0 0.0
      %815 = vmatmul.mubr.f32.gmra.mrb[0].mxu0 %v546
      %v816 = vpop.f32.mrb[0].mxu0
      %v817 = vadd.f32 0.0, %v816
      %v818 = vpop.f32.mrb[0].mxu0
      %819 = vmatprep.mubr.f32.mxu0 0.0
      %820 = vmatmul.mubr.f32.gmra.mrb[0].mxu0 %v548
      %v821 = vpop.f32.mrb[0].mxu0
      %v822 = vadd.f32 0.0, %v821
      %v823 = vpop.f32.mrb[0].mxu0
      %824 = vmatprep.mubr.f32.mxu0 0.0
      %825 = vmatmul.mubr.f32.gmra.mrb[0].mxu0 %v550
      %v826 = vpop.f32.mrb[0].mxu0
      %v827 = vpop.f32.mrb[0].mxu0
      %828 = vmatprep.mubr.f32.mxu0 0.0
      %829 = vmatmul.mubr.f32.gmra.mrb[0].mxu0 %v552
      %v830 = vpop.f32.mrb[0].mxu0
      %v831 = vadd.f32 0.0, %v830
      %v832 = vpop.f32.mrb[0].mxu0
      %833 = vmatprep.mubr.f32.mxu0 0.0
      %834 = vmatmul.mubr.f32.gmra.mrb[0].mxu0 %v554
      %v835 = vpop.f32.mrb[0].mxu0
      %v836 = vadd.f32 0.0, %v835
      %v837 = vpop.f32.mrb[0].mxu0
      %838 = vmatprep.mubr.f32.mxu0 0.0
      %839 = vmatmul.mubr.f32.gmra.mrb[0].mxu0 %v556
      %v840 = vpop.f32.mrb[0].mxu0
      %v841 = vpop.f32.mrb[0].mxu0
      %842 = vmatprep.mubr.f32.mxu0 0.0
      %843 = vmatmul.mubr.f32.gmra.mrb[0].mxu0 %v558
      %v844 = vpop.f32.mrb[0].mxu0
      %v845 = vadd.f32 0.0, %v844
      %v846 = vpop.f32.mrb[0].mxu0
      %847 = vmatprep.mubr.f32.mxu0 0.0
      %848 = vmatmul.mubr.f32.gmra.mrb[0].mxu0 %v560
      %v849 = vpop.f32.mrb[0].mxu0
      %v850 = vadd.f32 0.0, %v849
      %v851 = vpop.f32.mrb[0].mxu0
      %852 = vmatprep.mubr.f32.mxu0 0.0
      %853 = vmatmul.mubr.f32.gmra.mrb[0].mxu0 %v562
      %v854 = vpop.f32.mrb[0].mxu0
      %v855 = vpop.f32.mrb[0].mxu0
      %856 = vdwg.mxu0
      %v857 = vsel %vm467, %v256, 0
      %v859 = vsel %vm467, %v257, 0
      %v861 = vsel %vm467, %v258, 0
      %v863 = vsel %vm467, %v259, 0
      %v865 = vsel %vm467, %v260, 0
      %v867 = vsel %vm467, %v261, 0
      %v869 = vsel %vm467, %v262, 0
      %v871 = vsel %vm467, %v263, 0
      %v873 = vsel %vm467, %v264, 0
      %v875 = vsel %vm467, %v265, 0
      %v877 = vsel %vm467, %v266, 0
      %v879 = vsel %vm467, %v267, 0
      %v881 = vsel %vm467, %v268, 0
      %v883 = vsel %vm467, %v269, 0
      %v885 = vsel %vm467, %v270, 0
      %v887 = vsel %vm467, %v271, 0
      %v889 = vsel %vm467, %v272, 0
      %v891 = vsel %vm467, %v273, 0
      %v893 = vsel %vm467, %v274, 0
      %v895 = vsel %vm467, %v275, 0
      %v897 = vsel %vm467, %v276, 0
      %v899 = vsel %vm467, %v277, 0
      %v901 = vsel %vm467, %v278, 0
      %v903 = vsel %vm467, %v279, 0
      %v905 = vsel %vm467, %v280, 0
      %v907 = vsel %vm467, %v281, 0
      %v909 = vsel %vm467, %v282, 0
      %v911 = vsel %vm467, %v283, 0
      %v913 = vsel %vm467, %v284, 0
      %v915 = vsel %vm467, %v285, 0
      %v917 = vsel %vm467, %v286, 0
      %v919 = vsel %vm467, %v287, 0
      %v921 = vsel %vm467, %v288, 0
      %v923 = vsel %vm467, %v289, 0
      %v925 = vsel %vm467, %v290, 0
      %v927 = vsel %vm467, %v291, 0
      %v929 = vsel %vm467, %v292, 0
      %v931 = vsel %vm467, %v293, 0
      %v933 = vsel %vm467, %v294, 0
      %v935 = vsel %vm467, %v295, 0
      %v937 = vsel %vm467, %v296, 0
      %v939 = vsel %vm467, %v297, 0
      %v941 = vsel %vm467, %v298, 0
      %v943 = vsel %vm467, %v299, 0
      %v945 = vsel %vm467, %v300, 0
      %v947 = vsel %vm467, %v301, 0
      %v949 = vsel %vm467, %v302, 0
      %v951 = vsel %vm467, %v303, 0
      %v954 = vsel %vm564, %v317, 0
      %956 = vmatprep.subr.mxu0 0.0
      %957 = vmatpush1.msra.mxu0 %v954
      %958 = vmatprep.subr.mxu0 0.0
      %959 = vmatpush1.msra.mxu0 0.0
      %960 = vmatprep.subr.mxu0 0.0
      %961 = vmatpush1.msra.mxu0 0.0
      %962 = vmatprep.subr.mxu0 0.0
      %963 = vmatpush1.msra.mxu0 0.0
      %964 = vmatprep.subr.mxu0 0.0
      %965 = vmatpush1.msra.mxu0 0.0
      %966 = vmatprep.subr.mxu0 0.0
      %967 = vmatpush1.msra.mxu0 0.0
      %968 = vmatprep.subr.mxu0 0.0
      %969 = vmatpush1.msra.mxu0 0.0
      %970 = vmatprep.subr.mxu0 0.0
      %971 = vmatpush1.msra.mxu0 0.0
      %972 = vmatprep.subr.mxu0 0.0
      %973 = vmatpush1.msra.mxu0 0.0
      %974 = vmatprep.subr.mxu0 0.0
      %975 = vmatpush1.msra.mxu0 0.0
      %976 = vmatprep.subr.mxu0 0.0
      %977 = vmatpush1.msra.mxu0 0.0
      %978 = vmatprep.subr.mxu0 0.0
      %979 = vmatpush1.msra.mxu0 0.0
      %980 = vmatprep.subr.mxu0 0.0
      %981 = vmatpush1.msra.mxu0 0.0
      %982 = vmatprep.subr.mxu0 0.0
      %983 = vmatpush1.msra.mxu0 0.0
      %984 = vmatprep.subr.mxu0 0.0
      %985 = vmatpush1.msra.mxu0 0.0
      %986 = vmatprep.subr.mxu0 0.0
      %987 = vmatpush1.msra.mxu0 0.0
      %988 = vmatprep.subr.mxu0 0.0
      %989 = vmatpush1.msra.mxu0 0.0
      %990 = vmatprep.subr.mxu0 0.0
      %991 = vmatpush1.msra.mxu0 0.0
      %992 = vmatprep.subr.mxu0 0.0
      %993 = vmatpush1.msra.mxu0 0.0
      %994 = vmatprep.subr.mxu0 0.0
      %995 = vmatpush1.msra.mxu0 0.0
      %996 = vmatprep.subr.mxu0 0.0
      %997 = vmatpush1.msra.mxu0 0.0
      %998 = vmatprep.subr.mxu0 0.0
      %999 = vmatpush1.msra.mxu0 0.0
      %1000 = vmatprep.subr.mxu0 0.0
      %1001 = vmatpush1.msra.mxu0 0.0
      %1002 = vmatprep.subr.mxu0 0.0
      %1003 = vmatpush1.msra.mxu0 0.0
      %1004 = vmatprep.subr.mxu0 0.0
      %1005 = vmatpush1.msra.mxu0 0.0
      %1006 = vmatprep.subr.mxu0 0.0
      %1007 = vmatpush1.msra.mxu0 0.0
      %1008 = vmatprep.subr.mxu0 0.0
      %1009 = vmatpush1.msra.mxu0 0.0
      %1010 = vmatprep.subr.mxu0 0.0
      %1011 = vmatpush1.msra.mxu0 0.0
      %1012 = vmatprep.subr.mxu0 0.0
      %1013 = vmatpush1.msra.mxu0 0.0
      %1014 = vmatprep.subr.mxu0 0.0
      %1015 = vmatpush1.msra.mxu0 0.0
      %1016 = vmatprep.subr.mxu0 0.0
      %1017 = vmatpush1.msra.mxu0 0.0
      %1018 = vmatprep.subr.mxu0 0.0
      %1019 = vmatpush1.msra.mxu0 0.0
      %1020 = vmatprep.mubr.f32.mxu0 0.0
      %1021 = vmatmul.mubr.f32.gmra.mrb[0].mxu0 %v857
      %v1022 = vpop.f32.mrb[0].mxu0
      %v1023 = vadd.f32 %v635, %v1022
      %v1024 = vpop.f32.mrb[0].mxu0
      %1025 = vmatprep.mubr.f32.mxu0 0.0
      %1026 = vmatmul.mubr.f32.gmra.mrb[0].mxu0 %v859
      %v1027 = vpop.f32.mrb[0].mxu0
      %v1028 = vadd.f32 %v640, %v1027
      %v1029 = vpop.f32.mrb[0].mxu0
      %1030 = vmatprep.mubr.f32.mxu0 0.0
      %1031 = vmatmul.mubr.f32.gmra.mrb[0].mxu0 %v861
      %v1032 = vpop.f32.mrb[0].mxu0
      %v1033 = vpop.f32.mrb[0].mxu0
      %1034 = vmatprep.mubr.f32.mxu0 0.0
      %1035 = vmatmul.mubr.f32.gmra.mrb[0].mxu0 %v863
      %v1036 = vpop.f32.mrb[0].mxu0
      %v1037 = vadd.f32 %v649, %v1036
      %v1038 = vpop.f32.mrb[0].mxu0
      %1039 = vmatprep.mubr.f32.mxu0 0.0
      %1040 = vmatmul.mubr.f32.gmra.mrb[0].mxu0 %v865
      %v1041 = vpop.f32.mrb[0].mxu0
      %v1042 = vadd.f32 %v654, %v1041
      %v1043 = vpop.f32.mrb[0].mxu0
      %1044 = vmatprep.mubr.f32.mxu0 0.0
      %1045 = vmatmul.mubr.f32.gmra.mrb[0].mxu0 %v867
      %v1046 = vpop.f32.mrb[0].mxu0
      %v1047 = vpop.f32.mrb[0].mxu0
      %1048 = vmatprep.mubr.f32.mxu0 0.0
      %1049 = vmatmul.mubr.f32.gmra.mrb[0].mxu0 %v869
      %v1050 = vpop.f32.mrb[0].mxu0
      %v1051 = vadd.f32 %v663, %v1050
      %v1052 = vpop.f32.mrb[0].mxu0
      %1053 = vmatprep.mubr.f32.mxu0 0.0
      %1054 = vmatmul.mubr.f32.gmra.mrb[0].mxu0 %v871
      %v1055 = vpop.f32.mrb[0].mxu0
      %v1056 = vadd.f32 %v668, %v1055
      %v1057 = vpop.f32.mrb[0].mxu0
      %1058 = vmatprep.mubr.f32.mxu0 0.0
      %1059 = vmatmul.mubr.f32.gmra.mrb[0].mxu0 %v873
      %v1060 = vpop.f32.mrb[0].mxu0
      %v1061 = vpop.f32.mrb[0].mxu0
      %1062 = vmatprep.mubr.f32.mxu0 0.0
      %1063 = vmatmul.mubr.f32.gmra.mrb[0].mxu0 %v875
      %v1064 = vpop.f32.mrb[0].mxu0
      %v1065 = vadd.f32 %v677, %v1064
      %v1066 = vpop.f32.mrb[0].mxu0
      %1067 = vmatprep.mubr.f32.mxu0 0.0
      %1068 = vmatmul.mubr.f32.gmra.mrb[0].mxu0 %v877
      %v1069 = vpop.f32.mrb[0].mxu0
      %v1070 = vadd.f32 %v682, %v1069
      %v1071 = vpop.f32.mrb[0].mxu0
      %1072 = vmatprep.mubr.f32.mxu0 0.0
      %1073 = vmatmul.mubr.f32.gmra.mrb[0].mxu0 %v879
      %v1074 = vpop.f32.mrb[0].mxu0
      %v1075 = vpop.f32.mrb[0].mxu0
      %1076 = vmatprep.mubr.f32.mxu0 0.0
      %1077 = vmatmul.mubr.f32.gmra.mrb[0].mxu0 %v881
      %v1078 = vpop.f32.mrb[0].mxu0
      %v1079 = vadd.f32 %v691, %v1078
      %v1080 = vpop.f32.mrb[0].mxu0
      %1081 = vmatprep.mubr.f32.mxu0 0.0
      %1082 = vmatmul.mubr.f32.gmra.mrb[0].mxu0 %v883
      %v1083 = vpop.f32.mrb[0].mxu0
      %v1084 = vadd.f32 %v696, %v1083
      %v1085 = vpop.f32.mrb[0].mxu0
      %1086 = vmatprep.mubr.f32.mxu0 0.0
      %1087 = vmatmul.mubr.f32.gmra.mrb[0].mxu0 %v885
      %v1088 = vpop.f32.mrb[0].mxu0
      %v1089 = vpop.f32.mrb[0].mxu0
      %1090 = vmatprep.mubr.f32.mxu0 0.0
      %1091 = vmatmul.mubr.f32.gmra.mrb[0].mxu0 %v887
      %v1092 = vpop.f32.mrb[0].mxu0
      %v1093 = vadd.f32 %v705, %v1092
      %v1094 = vpop.f32.mrb[0].mxu0
      %1095 = vmatprep.mubr.f32.mxu0 0.0
      %1096 = vmatmul.mubr.f32.gmra.mrb[0].mxu0 %v889
      %v1097 = vpop.f32.mrb[0].mxu0
      %v1098 = vadd.f32 %v710, %v1097
      %v1099 = vpop.f32.mrb[0].mxu0
      %1100 = vmatprep.mubr.f32.mxu0 0.0
      %1101 = vmatmul.mubr.f32.gmra.mrb[0].mxu0 %v891
      %v1102 = vpop.f32.mrb[0].mxu0
      %v1103 = vpop.f32.mrb[0].mxu0
      %1104 = vmatprep.mubr.f32.mxu0 0.0
      %1105 = vmatmul.mubr.f32.gmra.mrb[0].mxu0 %v893
      %v1106 = vpop.f32.mrb[0].mxu0
      %v1107 = vadd.f32 %v719, %v1106
      %v1108 = vpop.f32.mrb[0].mxu0
      %1109 = vmatprep.mubr.f32.mxu0 0.0
      %1110 = vmatmul.mubr.f32.gmra.mrb[0].mxu0 %v895
      %v1111 = vpop.f32.mrb[0].mxu0
      %v1112 = vadd.f32 %v724, %v1111
      %v1113 = vpop.f32.mrb[0].mxu0
      %1114 = vmatprep.mubr.f32.mxu0 0.0
      %1115 = vmatmul.mubr.f32.gmra.mrb[0].mxu0 %v897
      %v1116 = vpop.f32.mrb[0].mxu0
      %v1117 = vpop.f32.mrb[0].mxu0
      %1118 = vmatprep.mubr.f32.mxu0 0.0
      %1119 = vmatmul.mubr.f32.gmra.mrb[0].mxu0 %v899
      %v1120 = vpop.f32.mrb[0].mxu0
      %v1121 = vadd.f32 %v733, %v1120
      %v1122 = vpop.f32.mrb[0].mxu0
      %1123 = vmatprep.mubr.f32.mxu0 0.0
      %1124 = vmatmul.mubr.f32.gmra.mrb[0].mxu0 %v901
      %v1125 = vpop.f32.mrb[0].mxu0
      %v1126 = vadd.f32 %v738, %v1125
      %v1127 = vpop.f32.mrb[0].mxu0
      %1128 = vmatprep.mubr.f32.mxu0 0.0
      %1129 = vmatmul.mubr.f32.gmra.mrb[0].mxu0 %v903
      %v1130 = vpop.f32.mrb[0].mxu0
      %v1131 = vpop.f32.mrb[0].mxu0
      %1132 = vmatprep.mubr.f32.mxu0 0.0
      %1133 = vmatmul.mubr.f32.gmra.mrb[0].mxu0 %v905
      %v1134 = vpop.f32.mrb[0].mxu0
      %v1135 = vadd.f32 %v747, %v1134
      %v1136 = vpop.f32.mrb[0].mxu0
      %1137 = vmatprep.mubr.f32.mxu0 0.0
      %1138 = vmatmul.mubr.f32.gmra.mrb[0].mxu0 %v907
      %v1139 = vpop.f32.mrb[0].mxu0
      %v1140 = vadd.f32 %v752, %v1139
      %v1141 = vpop.f32.mrb[0].mxu0
      %1142 = vmatprep.mubr.f32.mxu0 0.0
      %1143 = vmatmul.mubr.f32.gmra.mrb[0].mxu0 %v909
      %v1144 = vpop.f32.mrb[0].mxu0
      %v1145 = vpop.f32.mrb[0].mxu0
      %1146 = vmatprep.mubr.f32.mxu0 0.0
      %1147 = vmatmul.mubr.f32.gmra.mrb[0].mxu0 %v911
      %v1148 = vpop.f32.mrb[0].mxu0
      %v1149 = vadd.f32 %v761, %v1148
      %v1150 = vpop.f32.mrb[0].mxu0
      %1151 = vmatprep.mubr.f32.mxu0 0.0
      %1152 = vmatmul.mubr.f32.gmra.mrb[0].mxu0 %v913
      %v1153 = vpop.f32.mrb[0].mxu0
      %v1154 = vadd.f32 %v766, %v1153
      %v1155 = vpop.f32.mrb[0].mxu0
      %1156 = vmatprep.mubr.f32.mxu0 0.0
      %1157 = vmatmul.mubr.f32.gmra.mrb[0].mxu0 %v915
      %v1158 = vpop.f32.mrb[0].mxu0
      %v1159 = vpop.f32.mrb[0].mxu0
      %1160 = vmatprep.mubr.f32.mxu0 0.0
      %1161 = vmatmul.mubr.f32.gmra.mrb[0].mxu0 %v917
      %v1162 = vpop.f32.mrb[0].mxu0
      %v1163 = vadd.f32 %v775, %v1162
      %v1164 = vpop.f32.mrb[0].mxu0
      %1165 = vmatprep.mubr.f32.mxu0 0.0
      %1166 = vmatmul.mubr.f32.gmra.mrb[0].mxu0 %v919
      %v1167 = vpop.f32.mrb[0].mxu0
      %v1168 = vadd.f32 %v780, %v1167
      %v1169 = vpop.f32.mrb[0].mxu0
      %1170 = vmatprep.mubr.f32.mxu0 0.0
      %1171 = vmatmul.mubr.f32.gmra.mrb[0].mxu0 %v921
      %v1172 = vpop.f32.mrb[0].mxu0
      %v1173 = vpop.f32.mrb[0].mxu0
      %1174 = vmatprep.mubr.f32.mxu0 0.0
      %1175 = vmatmul.mubr.f32.gmra.mrb[0].mxu0 %v923
      %v1176 = vpop.f32.mrb[0].mxu0
      %v1177 = vadd.f32 %v789, %v1176
      %v1178 = vpop.f32.mrb[0].mxu0
      %1179 = vmatprep.mubr.f32.mxu0 0.0
      %1180 = vmatmul.mubr.f32.gmra.mrb[0].mxu0 %v925
      %v1181 = vpop.f32.mrb[0].mxu0
      %v1182 = vadd.f32 %v794, %v1181
      %v1183 = vpop.f32.mrb[0].mxu0
      %1184 = vmatprep.mubr.f32.mxu0 0.0
      %1185 = vmatmul.mubr.f32.gmra.mrb[0].mxu0 %v927
      %v1186 = vpop.f32.mrb[0].mxu0
      %v1187 = vpop.f32.mrb[0].mxu0
      %1188 = vmatprep.mubr.f32.mxu0 0.0
      %1189 = vmatmul.mubr.f32.gmra.mrb[0].mxu0 %v929
      %v1190 = vpop.f32.mrb[0].mxu0
      %v1191 = vadd.f32 %v803, %v1190
      %v1192 = vpop.f32.mrb[0].mxu0
      %1193 = vmatprep.mubr.f32.mxu0 0.0
      %1194 = vmatmul.mubr.f32.gmra.mrb[0].mxu0 %v931
      %v1195 = vpop.f32.mrb[0].mxu0
      %v1196 = vadd.f32 %v808, %v1195
      %v1197 = vpop.f32.mrb[0].mxu0
      %1198 = vmatprep.mubr.f32.mxu0 0.0
      %1199 = vmatmul.mubr.f32.gmra.mrb[0].mxu0 %v933
      %v1200 = vpop.f32.mrb[0].mxu0
      %v1201 = vpop.f32.mrb[0].mxu0
      %1202 = vmatprep.mubr.f32.mxu0 0.0
      %1203 = vmatmul.mubr.f32.gmra.mrb[0].mxu0 %v935
      %v1204 = vpop.f32.mrb[0].mxu0
      %v1205 = vadd.f32 %v817, %v1204
      %v1206 = vpop.f32.mrb[0].mxu0
      %1207 = vmatprep.mubr.f32.mxu0 0.0
      %1208 = vmatmul.mubr.f32.gmra.mrb[0].mxu0 %v937
      %v1209 = vpop.f32.mrb[0].mxu0
      %v1210 = vadd.f32 %v822, %v1209
      %v1211 = vpop.f32.mrb[0].mxu0
      %1212 = vmatprep.mubr.f32.mxu0 0.0
      %1213 = vmatmul.mubr.f32.gmra.mrb[0].mxu0 %v939
      %v1214 = vpop.f32.mrb[0].mxu0
      %v1215 = vpop.f32.mrb[0].mxu0
      %1216 = vmatprep.mubr.f32.mxu0 0.0
      %1217 = vmatmul.mubr.f32.gmra.mrb[0].mxu0 %v941
      %v1218 = vpop.f32.mrb[0].mxu0
      %v1219 = vadd.f32 %v831, %v1218
      %v1220 = vpop.f32.mrb[0].mxu0
      %1221 = vmatprep.mubr.f32.mxu0 0.0
      %1222 = vmatmul.mubr.f32.gmra.mrb[0].mxu0 %v943
      %v1223 = vpop.f32.mrb[0].mxu0
      %v1224 = vadd.f32 %v836, %v1223
      %v1225 = vpop.f32.mrb[0].mxu0
      %1226 = vmatprep.mubr.f32.mxu0 0.0
      %1227 = vmatmul.mubr.f32.gmra.mrb[0].mxu0 %v945
      %v1228 = vpop.f32.mrb[0].mxu0
      %v1229 = vpop.f32.mrb[0].mxu0
      %1230 = vmatprep.mubr.f32.mxu0 0.0
      %1231 = vmatmul.mubr.f32.gmra.mrb[0].mxu0 %v947
      %v1232 = vpop.f32.mrb[0].mxu0
      %v1233 = vadd.f32 %v845, %v1232
      %v1234 = vpop.f32.mrb[0].mxu0
      %1235 = vmatprep.mubr.f32.mxu0 0.0
      %1236 = vmatmul.mubr.f32.gmra.mrb[0].mxu0 %v949
      %v1237 = vpop.f32.mrb[0].mxu0
      %v1238 = vadd.f32 %v850, %v1237
      %v1239 = vpop.f32.mrb[0].mxu0
      %1240 = vmatprep.mubr.f32.mxu0 0.0
      %1241 = vmatmul.mubr.f32.gmra.mrb[0].mxu0 %v951
      %v1242 = vpop.f32.mrb[0].mxu0
      %v1243 = vpop.f32.mrb[0].mxu0
      %1244 = vdwg.mxu0
      %s1245 = scalar_lea.vmem %s1, 8
      %v1246 = vld [vmem:[%s1245] sm:$0xf]
      %v1247 = vrot.slane %v256, 4
      %v1248 = vrot.slane %v257, 4
      %v1249 = vsel %vm564, %v1247, %v1248
      %v1250 = vrot.slane %v258, 4
      %v1251 = vsel %vm564, %v1248, %v1250
      %v1252 = vrot.slane %v259, 4
      %v1253 = vsel %vm564, %v1250, %v1252
      %v1254 = vrot.slane %v260, 4
      %v1255 = vsel %vm564, %v1252, %v1254
      %v1256 = vrot.slane %v261, 4
      %v1257 = vsel %vm564, %v1254, %v1256
      %v1258 = vrot.slane %v262, 4
      %v1259 = vsel %vm564, %v1256, %v1258
      %v1260 = vrot.slane %v263, 4
      %v1261 = vsel %vm564, %v1258, %v1260
      %v1262 = vrot.slane %v264, 4
      %v1263 = vsel %vm564, %v1260, %v1262
      %v1264 = vrot.slane %v265, 4
      %v1265 = vsel %vm564, %v1262, %v1264
      %v1266 = vrot.slane %v266, 4
      %v1267 = vsel %vm564, %v1264, %v1266
      %v1268 = vrot.slane %v267, 4
      %v1269 = vsel %vm564, %v1266, %v1268
      %v1270 = vrot.slane %v268, 4
      %v1271 = vsel %vm564, %v1268, %v1270
      %v1272 = vrot.slane %v269, 4
      %v1273 = vsel %vm564, %v1270, %v1272
      %v1274 = vrot.slane %v270, 4
      %v1275 = vsel %vm564, %v1272, %v1274
      %v1276 = vrot.slane %v271, 4
      %v1277 = vsel %vm564, %v1274, %v1276
      %v1278 = vrot.slane %v272, 4
      %v1279 = vsel %vm564, %v1276, %v1278
      %v1280 = vrot.slane %v273, 4
      %v1281 = vsel %vm564, %v1278, %v1280
      %v1282 = vrot.slane %v274, 4
      %v1283 = vsel %vm564, %v1280, %v1282
      %v1284 = vrot.slane %v275, 4
      %v1285 = vsel %vm564, %v1282, %v1284
      %v1286 = vrot.slane %v276, 4
      %v1287 = vsel %vm564, %v1284, %v1286
      %v1288 = vrot.slane %v277, 4
      %v1289 = vsel %vm564, %v1286, %v1288
      %v1290 = vrot.slane %v278, 4
      %v1291 = vsel %vm564, %v1288, %v1290
      %v1292 = vrot.slane %v279, 4
      %v1293 = vsel %vm564, %v1290, %v1292
      %v1294 = vrot.slane %v280, 4
      %v1295 = vsel %vm564, %v1292, %v1294
      %v1296 = vrot.slane %v281, 4
      %v1297 = vsel %vm564, %v1294, %v1296
      %v1298 = vrot.slane %v282, 4
      %v1299 = vsel %vm564, %v1296, %v1298
      %v1300 = vrot.slane %v283, 4
      %v1301 = vsel %vm564, %v1298, %v1300
      %v1302 = vrot.slane %v284, 4
      %v1303 = vsel %vm564, %v1300, %v1302
      %v1304 = vrot.slane %v285, 4
      %v1305 = vsel %vm564, %v1302, %v1304
      %v1306 = vrot.slane %v286, 4
      %v1307 = vsel %vm564, %v1304, %v1306
      %v1308 = vrot.slane %v287, 4
      %v1309 = vsel %vm564, %v1306, %v1308
      %v1310 = vrot.slane %v288, 4
      %v1311 = vsel %vm564, %v1308, %v1310
      %v1312 = vrot.slane %v289, 4
      %v1313 = vsel %vm564, %v1310, %v1312
      %v1314 = vrot.slane %v290, 4
      %v1315 = vsel %vm564, %v1312, %v1314
      %v1316 = vrot.slane %v291, 4
      %v1317 = vsel %vm564, %v1314, %v1316
      %v1318 = vrot.slane %v292, 4
      %v1319 = vsel %vm564, %v1316, %v1318
      %v1320 = vrot.slane %v293, 4
      %v1321 = vsel %vm564, %v1318, %v1320
      %v1322 = vrot.slane %v294, 4
      %v1323 = vsel %vm564, %v1320, %v1322
      %v1324 = vrot.slane %v295, 4
      %v1325 = vsel %vm564, %v1322, %v1324
      %v1326 = vrot.slane %v296, 4
      %v1327 = vsel %vm564, %v1324, %v1326
      %v1328 = vrot.slane %v297, 4
      %v1329 = vsel %vm564, %v1326, %v1328
      %v1330 = vrot.slane %v298, 4
      %v1331 = vsel %vm564, %v1328, %v1330
      %v1332 = vrot.slane %v299, 4
      %v1333 = vsel %vm564, %v1330, %v1332
      %v1334 = vrot.slane %v300, 4
      %v1335 = vsel %vm564, %v1332, %v1334
      %v1336 = vrot.slane %v301, 4
      %v1337 = vsel %vm564, %v1334, %v1336
      %v1338 = vrot.slane %v302, 4
      %v1339 = vsel %vm564, %v1336, %v1338
      %v1340 = vrot.slane %v303, 4
      %v1341 = vsel %vm564, %v1338, %v1340
      %v1342 = vrot.slane %v304, 4
      %v1343 = vsel %vm564, %v1340, %v1342
      %v1344 = vsel %vm467, %v1249, 0
      %v1346 = vsel %vm467, %v1251, 0
      %v1348 = vsel %vm467, %v1253, 0
      %v1350 = vsel %vm467, %v1255, 0
      %v1352 = vsel %vm467, %v1257, 0
      %v1354 = vsel %vm467, %v1259, 0
      %v1356 = vsel %vm467, %v1261, 0
      %v1358 = vsel %vm467, %v1263, 0
      %v1360 = vsel %vm467, %v1265, 0
      %v1362 = vsel %vm467, %v1267, 0
      %v1364 = vsel %vm467, %v1269, 0
      %v1366 = vsel %vm467, %v1271, 0
      %v1368 = vsel %vm467, %v1273, 0
      %v1370 = vsel %vm467, %v1275, 0
      %v1372 = vsel %vm467, %v1277, 0
      %v1374 = vsel %vm467, %v1279, 0
      %v1376 = vsel %vm467, %v1281, 0
      %v1378 = vsel %vm467, %v1283, 0
      %v1380 = vsel %vm467, %v1285, 0
      %v1382 = vsel %vm467, %v1287, 0
      %v1384 = vsel %vm467, %v1289, 0
      %v1386 = vsel %vm467, %v1291, 0
      %v1388 = vsel %vm467, %v1293, 0
      %v1390 = vsel %vm467, %v1295, 0
      %v1392 = vsel %vm467, %v1297, 0
      %v1394 = vsel %vm467, %v1299, 0
      %v1396 = vsel %vm467, %v1301, 0
      %v1398 = vsel %vm467, %v1303, 0
      %v1400 = vsel %vm467, %v1305, 0
      %v1402 = vsel %vm467, %v1307, 0
      %v1404 = vsel %vm467, %v1309, 0
      %v1406 = vsel %vm467, %v1311, 0
      %v1408 = vsel %vm467, %v1313, 0
      %v1410 = vsel %vm467, %v1315, 0
      %v1412 = vsel %vm467, %v1317, 0
      %v1414 = vsel %vm467, %v1319, 0
      %v1416 = vsel %vm467, %v1321, 0
      %v1418 = vsel %vm467, %v1323, 0
      %v1420 = vsel %vm467, %v1325, 0
      %v1422 = vsel %vm467, %v1327, 0
      %v1424 = vsel %vm467, %v1329, 0
      %v1426 = vsel %vm467, %v1331, 0
      %v1428 = vsel %vm467, %v1333, 0
      %v1430 = vsel %vm467, %v1335, 0
      %v1432 = vsel %vm467, %v1337, 0
      %v1434 = vsel %vm467, %v1339, 0
      %v1436 = vsel %vm467, %v1341, 0
      %v1438 = vsel %vm467, %v1343, 0
      %v1441 = vsel %vm564, %v1246, 0
      %1443 = vmatprep.subr.mxu0 0.0
      %1444 = vmatpush1.msra.mxu0 %v1441
      %1445 = vmatprep.subr.mxu0 0.0
      %1446 = vmatpush1.msra.mxu0 0.0
      %1447 = vmatprep.subr.mxu0 0.0
      %1448 = vmatpush1.msra.mxu0 0.0
      %1449 = vmatprep.subr.mxu0 0.0
      %1450 = vmatpush1.msra.mxu0 0.0
      %1451 = vmatprep.subr.mxu0 0.0
      %1452 = vmatpush1.msra.mxu0 0.0
      %1453 = vmatprep.subr.mxu0 0.0
      %1454 = vmatpush1.msra.mxu0 0.0
      %1455 = vmatprep.subr.mxu0 0.0
      %1456 = vmatpush1.msra.mxu0 0.0
      %1457 = vmatprep.subr.mxu0 0.0
      %1458 = vmatpush1.msra.mxu0 0.0
      %1459 = vmatprep.subr.mxu0 0.0
      %1460 = vmatpush1.msra.mxu0 0.0
      %1461 = vmatprep.subr.mxu0 0.0
      %1462 = vmatpush1.msra.mxu0 0.0
      %1463 = vmatprep.subr.mxu0 0.0
      %1464 = vmatpush1.msra.mxu0 0.0
      %1465 = vmatprep.subr.mxu0 0.0
      %1466 = vmatpush1.msra.mxu0 0.0
      %1467 = vmatprep.subr.mxu0 0.0
      %1468 = vmatpush1.msra.mxu0 0.0
      %1469 = vmatprep.subr.mxu0 0.0
      %1470 = vmatpush1.msra.mxu0 0.0
      %1471 = vmatprep.subr.mxu0 0.0
      %1472 = vmatpush1.msra.mxu0 0.0
      %1473 = vmatprep.subr.mxu0 0.0
      %1474 = vmatpush1.msra.mxu0 0.0
      %1475 = vmatprep.subr.mxu0 0.0
      %1476 = vmatpush1.msra.mxu0 0.0
      %1477 = vmatprep.subr.mxu0 0.0
      %1478 = vmatpush1.msra.mxu0 0.0
      %1479 = vmatprep.subr.mxu0 0.0
      %1480 = vmatpush1.msra.mxu0 0.0
      %1481 = vmatprep.subr.mxu0 0.0
      %1482 = vmatpush1.msra.mxu0 0.0
      %1483 = vmatprep.subr.mxu0 0.0
      %1484 = vmatpush1.msra.mxu0 0.0
      %1485 = vmatprep.subr.mxu0 0.0
      %1486 = vmatpush1.msra.mxu0 0.0
      %1487 = vmatprep.subr.mxu0 0.0
      %1488 = vmatpush1.msra.mxu0 0.0
      %1489 = vmatprep.subr.mxu0 0.0
      %1490 = vmatpush1.msra.mxu0 0.0
      %1491 = vmatprep.subr.mxu0 0.0
      %1492 = vmatpush1.msra.mxu0 0.0
      %1493 = vmatprep.subr.mxu0 0.0
      %1494 = vmatpush1.msra.mxu0 0.0
      %1495 = vmatprep.subr.mxu0 0.0
      %1496 = vmatpush1.msra.mxu0 0.0
      %1497 = vmatprep.subr.mxu0 0.0
      %1498 = vmatpush1.msra.mxu0 0.0
      %1499 = vmatprep.subr.mxu0 0.0
      %1500 = vmatpush1.msra.mxu0 0.0
      %1501 = vmatprep.subr.mxu0 0.0
      %1502 = vmatpush1.msra.mxu0 0.0
      %1503 = vmatprep.subr.mxu0 0.0
      %1504 = vmatpush1.msra.mxu0 0.0
      %1505 = vmatprep.subr.mxu0 0.0
      %1506 = vmatpush1.msra.mxu0 0.0
      %1507 = vmatprep.mubr.f32.mxu0 0.0
      %1508 = vmatmul.mubr.f32.gmra.mrb[0].mxu0 %v1344
      %v1509 = vpop.f32.mrb[0].mxu0
      %v1510 = vadd.f32 0.0, %v1509
      %v1511 = vpop.f32.mrb[0].mxu0
      %1512 = vmatprep.mubr.f32.mxu0 0.0
      %1513 = vmatmul.mubr.f32.gmra.mrb[0].mxu0 %v1346
      %v1514 = vpop.f32.mrb[0].mxu0
      %v1515 = vadd.f32 0.0, %v1514
      %v1516 = vpop.f32.mrb[0].mxu0
      %1517 = vmatprep.mubr.f32.mxu0 0.0
      %1518 = vmatmul.mubr.f32.gmra.mrb[0].mxu0 %v1348
      %v1519 = vpop.f32.mrb[0].mxu0
      %v1520 = vpop.f32.mrb[0].mxu0
      %1521 = vmatprep.mubr.f32.mxu0 0.0
      %1522 = vmatmul.mubr.f32.gmra.mrb[0].mxu0 %v1350
      %v1523 = vpop.f32.mrb[0].mxu0
      %v1524 = vadd.f32 0.0, %v1523
      %v1525 = vpop.f32.mrb[0].mxu0
      %1526 = vmatprep.mubr.f32.mxu0 0.0
      %1527 = vmatmul.mubr.f32.gmra.mrb[0].mxu0 %v1352
      %v1528 = vpop.f32.mrb[0].mxu0
      %v1529 = vadd.f32 0.0, %v1528
      %v1530 = vpop.f32.mrb[0].mxu0
      %1531 = vmatprep.mubr.f32.mxu0 0.0
      %1532 = vmatmul.mubr.f32.gmra.mrb[0].mxu0 %v1354
      %v1533 = vpop.f32.mrb[0].mxu0
      %v1534 = vpop.f32.mrb[0].mxu0
      %1535 = vmatprep.mubr.f32.mxu0 0.0
      %1536 = vmatmul.mubr.f32.gmra.mrb[0].mxu0 %v1356
      %v1537 = vpop.f32.mrb[0].mxu0
      %v1538 = vadd.f32 0.0, %v1537
      %v1539 = vpop.f32.mrb[0].mxu0
      %1540 = vmatprep.mubr.f32.mxu0 0.0
      %1541 = vmatmul.mubr.f32.gmra.mrb[0].mxu0 %v1358
      %v1542 = vpop.f32.mrb[0].mxu0
      %v1543 = vadd.f32 0.0, %v1542
      %v1544 = vpop.f32.mrb[0].mxu0
      %1545 = vmatprep.mubr.f32.mxu0 0.0
      %1546 = vmatmul.mubr.f32.gmra.mrb[0].mxu0 %v1360
      %v1547 = vpop.f32.mrb[0].mxu0
      %v1548 = vpop.f32.mrb[0].mxu0
      %1549 = vmatprep.mubr.f32.mxu0 0.0
      %1550 = vmatmul.mubr.f32.gmra.mrb[0].mxu0 %v1362
      %v1551 = vpop.f32.mrb[0].mxu0
      %v1552 = vadd.f32 0.0, %v1551
      %v1553 = vpop.f32.mrb[0].mxu0
      %1554 = vmatprep.mubr.f32.mxu0 0.0
      %1555 = vmatmul.mubr.f32.gmra.mrb[0].mxu0 %v1364
      %v1556 = vpop.f32.mrb[0].mxu0
      %v1557 = vadd.f32 0.0, %v1556
      %v1558 = vpop.f32.mrb[0].mxu0
      %1559 = vmatprep.mubr.f32.mxu0 0.0
      %1560 = vmatmul.mubr.f32.gmra.mrb[0].mxu0 %v1366
      %v1561 = vpop.f32.mrb[0].mxu0
      %v1562 = vpop.f32.mrb[0].mxu0
      %1563 = vmatprep.mubr.f32.mxu0 0.0
      %1564 = vmatmul.mubr.f32.gmra.mrb[0].mxu0 %v1368
      %v1565 = vpop.f32.mrb[0].mxu0
      %v1566 = vadd.f32 0.0, %v1565
      %v1567 = vpop.f32.mrb[0].mxu0
      %1568 = vmatprep.mubr.f32.mxu0 0.0
      %1569 = vmatmul.mubr.f32.gmra.mrb[0].mxu0 %v1370
      %v1570 = vpop.f32.mrb[0].mxu0
      %v1571 = vadd.f32 0.0, %v1570
      %v1572 = vpop.f32.mrb[0].mxu0
      %1573 = vmatprep.mubr.f32.mxu0 0.0
      %1574 = vmatmul.mubr.f32.gmra.mrb[0].mxu0 %v1372
      %v1575 = vpop.f32.mrb[0].mxu0
      %v1576 = vpop.f32.mrb[0].mxu0
      %1577 = vmatprep.mubr.f32.mxu0 0.0
      %1578 = vmatmul.mubr.f32.gmra.mrb[0].mxu0 %v1374
      %v1579 = vpop.f32.mrb[0].mxu0
      %v1580 = vadd.f32 0.0, %v1579
      %v1581 = vpop.f32.mrb[0].mxu0
      %1582 = vmatprep.mubr.f32.mxu0 0.0
      %1583 = vmatmul.mubr.f32.gmra.mrb[0].mxu0 %v1376
      %v1584 = vpop.f32.mrb[0].mxu0
      %v1585 = vadd.f32 0.0, %v1584
      %v1586 = vpop.f32.mrb[0].mxu0
      %1587 = vmatprep.mubr.f32.mxu0 0.0
      %1588 = vmatmul.mubr.f32.gmra.mrb[0].mxu0 %v1378
      %v1589 = vpop.f32.mrb[0].mxu0
      %v1590 = vpop.f32.mrb[0].mxu0
      %1591 = vmatprep.mubr.f32.mxu0 0.0
      %1592 = vmatmul.mubr.f32.gmra.mrb[0].mxu0 %v1380
      %v1593 = vpop.f32.mrb[0].mxu0
      %v1594 = vadd.f32 0.0, %v1593
      %v1595 = vpop.f32.mrb[0].mxu0
      %1596 = vmatprep.mubr.f32.mxu0 0.0
      %1597 = vmatmul.mubr.f32.gmra.mrb[0].mxu0 %v1382
      %v1598 = vpop.f32.mrb[0].mxu0
      %v1599 = vadd.f32 0.0, %v1598
      %v1600 = vpop.f32.mrb[0].mxu0
      %1601 = vmatprep.mubr.f32.mxu0 0.0
      %1602 = vmatmul.mubr.f32.gmra.mrb[0].mxu0 %v1384
      %v1603 = vpop.f32.mrb[0].mxu0
      %v1604 = vpop.f32.mrb[0].mxu0
      %1605 = vmatprep.mubr.f32.mxu0 0.0
      %1606 = vmatmul.mubr.f32.gmra.mrb[0].mxu0 %v1386
      %v1607 = vpop.f32.mrb[0].mxu0
      %v1608 = vadd.f32 0.0, %v1607
      %v1609 = vpop.f32.mrb[0].mxu0
      %1610 = vmatprep.mubr.f32.mxu0 0.0
      %1611 = vmatmul.mubr.f32.gmra.mrb[0].mxu0 %v1388
      %v1612 = vpop.f32.mrb[0].mxu0
      %v1613 = vadd.f32 0.0, %v1612
      %v1614 = vpop.f32.mrb[0].mxu0
      %1615 = vmatprep.mubr.f32.mxu0 0.0
      %1616 = vmatmul.mubr.f32.gmra.mrb[0].mxu0 %v1390
      %v1617 = vpop.f32.mrb[0].mxu0
      %v1618 = vpop.f32.mrb[0].mxu0
      %1619 = vmatprep.mubr.f32.mxu0 0.0
      %1620 = vmatmul.mubr.f32.gmra.mrb[0].mxu0 %v1392
      %v1621 = vpop.f32.mrb[0].mxu0
      %v1622 = vadd.f32 0.0, %v1621
      %v1623 = vpop.f32.mrb[0].mxu0
      %1624 = vmatprep.mubr.f32.mxu0 0.0
      %1625 = vmatmul.mubr.f32.gmra.mrb[0].mxu0 %v1394
      %v1626 = vpop.f32.mrb[0].mxu0
      %v1627 = vadd.f32 0.0, %v1626
      %v1628 = vpop.f32.mrb[0].mxu0
      %1629 = vmatprep.mubr.f32.mxu0 0.0
      %1630 = vmatmul.mubr.f32.gmra.mrb[0].mxu0 %v1396
      %v1631 = vpop.f32.mrb[0].mxu0
      %v1632 = vpop.f32.mrb[0].mxu0
      %1633 = vmatprep.mubr.f32.mxu0 0.0
      %1634 = vmatmul.mubr.f32.gmra.mrb[0].mxu0 %v1398
      %v1635 = vpop.f32.mrb[0].mxu0
      %v1636 = vadd.f32 0.0, %v1635
      %v1637 = vpop.f32.mrb[0].mxu0
      %1638 = vmatprep.mubr.f32.mxu0 0.0
      %1639 = vmatmul.mubr.f32.gmra.mrb[0].mxu0 %v1400
      %v1640 = vpop.f32.mrb[0].mxu0
      %v1641 = vadd.f32 0.0, %v1640
      %v1642 = vpop.f32.mrb[0].mxu0
      %1643 = vmatprep.mubr.f32.mxu0 0.0
      %1644 = vmatmul.mubr.f32.gmra.mrb[0].mxu0 %v1402
      %v1645 = vpop.f32.mrb[0].mxu0
      %v1646 = vpop.f32.mrb[0].mxu0
      %1647 = vmatprep.mubr.f32.mxu0 0.0
      %1648 = vmatmul.mubr.f32.gmra.mrb[0].mxu0 %v1404
      %v1649 = vpop.f32.mrb[0].mxu0
      %v1650 = vadd.f32 0.0, %v1649
      %v1651 = vpop.f32.mrb[0].mxu0
      %1652 = vmatprep.mubr.f32.mxu0 0.0
      %1653 = vmatmul.mubr.f32.gmra.mrb[0].mxu0 %v1406
      %v1654 = vpop.f32.mrb[0].mxu0
      %v1655 = vadd.f32 0.0, %v1654
      %v1656 = vpop.f32.mrb[0].mxu0
      %1657 = vmatprep.mubr.f32.mxu0 0.0
      %1658 = vmatmul.mubr.f32.gmra.mrb[0].mxu0 %v1408
      %v1659 = vpop.f32.mrb[0].mxu0
      %v1660 = vpop.f32.mrb[0].mxu0
      %1661 = vmatprep.mubr.f32.mxu0 0.0
      %1662 = vmatmul.mubr.f32.gmra.mrb[0].mxu0 %v1410
      %v1663 = vpop.f32.mrb[0].mxu0
      %v1664 = vadd.f32 0.0, %v1663
      %v1665 = vpop.f32.mrb[0].mxu0
      %1666 = vmatprep.mubr.f32.mxu0 0.0
      %1667 = vmatmul.mubr.f32.gmra.mrb[0].mxu0 %v1412
      %v1668 = vpop.f32.mrb[0].mxu0
      %v1669 = vadd.f32 0.0, %v1668
      %v1670 = vpop.f32.mrb[0].mxu0
      %1671 = vmatprep.mubr.f32.mxu0 0.0
      %1672 = vmatmul.mubr.f32.gmra.mrb[0].mxu0 %v1414
      %v1673 = vpop.f32.mrb[0].mxu0
      %v1674 = vpop.f32.mrb[0].mxu0
      %1675 = vmatprep.mubr.f32.mxu0 0.0
      %1676 = vmatmul.mubr.f32.gmra.mrb[0].mxu0 %v1416
      %v1677 = vpop.f32.mrb[0].mxu0
      %v1678 = vadd.f32 0.0, %v1677
      %v1679 = vpop.f32.mrb[0].mxu0
      %1680 = vmatprep.mubr.f32.mxu0 0.0
      %1681 = vmatmul.mubr.f32.gmra.mrb[0].mxu0 %v1418
      %v1682 = vpop.f32.mrb[0].mxu0
      %v1683 = vadd.f32 0.0, %v1682
      %v1684 = vpop.f32.mrb[0].mxu0
      %1685 = vmatprep.mubr.f32.mxu0 0.0
      %1686 = vmatmul.mubr.f32.gmra.mrb[0].mxu0 %v1420
      %v1687 = vpop.f32.mrb[0].mxu0
      %v1688 = vpop.f32.mrb[0].mxu0
      %1689 = vmatprep.mubr.f32.mxu0 0.0
      %1690 = vmatmul.mubr.f32.gmra.mrb[0].mxu0 %v1422
      %v1691 = vpop.f32.mrb[0].mxu0
      %v1692 = vadd.f32 0.0, %v1691
      %v1693 = vpop.f32.mrb[0].mxu0
      %1694 = vmatprep.mubr.f32.mxu0 0.0
      %1695 = vmatmul.mubr.f32.gmra.mrb[0].mxu0 %v1424
      %v1696 = vpop.f32.mrb[0].mxu0
      %v1697 = vadd.f32 0.0, %v1696
      %v1698 = vpop.f32.mrb[0].mxu0
      %1699 = vmatprep.mubr.f32.mxu0 0.0
      %1700 = vmatmul.mubr.f32.gmra.mrb[0].mxu0 %v1426
      %v1701 = vpop.f32.mrb[0].mxu0
      %v1702 = vpop.f32.mrb[0].mxu0
      %1703 = vmatprep.mubr.f32.mxu0 0.0
      %1704 = vmatmul.mubr.f32.gmra.mrb[0].mxu0 %v1428
      %v1705 = vpop.f32.mrb[0].mxu0
      %v1706 = vadd.f32 0.0, %v1705
      %v1707 = vpop.f32.mrb[0].mxu0
      %1708 = vmatprep.mubr.f32.mxu0 0.0
      %1709 = vmatmul.mubr.f32.gmra.mrb[0].mxu0 %v1430
      %v1710 = vpop.f32.mrb[0].mxu0
      %v1711 = vadd.f32 0.0, %v1710
      %v1712 = vpop.f32.mrb[0].mxu0
      %1713 = vmatprep.mubr.f32.mxu0 0.0
      %1714 = vmatmul.mubr.f32.gmra.mrb[0].mxu0 %v1432
      %v1715 = vpop.f32.mrb[0].mxu0
      %v1716 = vpop.f32.mrb[0].mxu0
      %1717 = vmatprep.mubr.f32.mxu0 0.0
      %1718 = vmatmul.mubr.f32.gmra.mrb[0].mxu0 %v1434
      %v1719 = vpop.f32.mrb[0].mxu0
      %v1720 = vadd.f32 0.0, %v1719
      %v1721 = vpop.f32.mrb[0].mxu0
      %1722 = vmatprep.mubr.f32.mxu0 0.0
      %1723 = vmatmul.mubr.f32.gmra.mrb[0].mxu0 %v1436
      %v1724 = vpop.f32.mrb[0].mxu0
      %v1725 = vadd.f32 0.0, %v1724
      %v1726 = vpop.f32.mrb[0].mxu0
      %1727 = vmatprep.mubr.f32.mxu0 0.0
      %1728 = vmatmul.mubr.f32.gmra.mrb[0].mxu0 %v1438
      %v1729 = vpop.f32.mrb[0].mxu0
      %v1730 = vpop.f32.mrb[0].mxu0
      %1731 = vdwg.mxu0
      %v1732 = vadd.f32 %v1023, %v1510
      %v1733 = vadd.f32 %v1028, %v1515
      %v1734 = vadd.f32 %v1037, %v1524
      %v1735 = vadd.f32 %v1042, %v1529
      %v1736 = vadd.f32 %v1051, %v1538
      %v1737 = vadd.f32 %v1056, %v1543
      %v1738 = vadd.f32 %v1065, %v1552
      %v1739 = vadd.f32 %v1070, %v1557
      %v1740 = vadd.f32 %v1079, %v1566
      %v1741 = vadd.f32 %v1084, %v1571
      %v1742 = vadd.f32 %v1093, %v1580
      %v1743 = vadd.f32 %v1098, %v1585
      %v1744 = vadd.f32 %v1107, %v1594
      %v1745 = vadd.f32 %v1112, %v1599
      %v1746 = vadd.f32 %v1121, %v1608
      %v1747 = vadd.f32 %v1126, %v1613
      %v1748 = vadd.f32 %v1135, %v1622
      %v1749 = vadd.f32 %v1140, %v1627
      %v1750 = vadd.f32 %v1149, %v1636
      %v1751 = vadd.f32 %v1154, %v1641
      %v1752 = vadd.f32 %v1163, %v1650
      %v1753 = vadd.f32 %v1168, %v1655
      %v1754 = vadd.f32 %v1177, %v1664
      %v1755 = vadd.f32 %v1182, %v1669
      %v1756 = vadd.f32 %v1191, %v1678
      %v1757 = vadd.f32 %v1196, %v1683
      %v1758 = vadd.f32 %v1205, %v1692
      %v1759 = vadd.f32 %v1210, %v1697
      %v1760 = vadd.f32 %v1219, %v1706
      %v1761 = vadd.f32 %v1224, %v1711
      %v1762 = vadd.f32 %v1233, %v1720
      %v1763 = vadd.f32 %v1238, %v1725
      %s1764 = scalar_lea.vmem %s1, 12
      %v1765 = vld [vmem:[%s1764] sm:$0xf]
      %v1766 = vsel %vm467, %v304, 0
      %v1769 = vsel %vm467, %v305, 0
      %v1772 = vsel %vm467, %v306, 0
      %v1775 = vsel %vm467, %v307, 0
      %v1778 = vsel %vm467, %v308, 0
      %v1781 = vsel %vm467, %v309, 0
      %v1784 = vsel %vm564, %v1765, 0
      %1786 = vmatprep.subr.mxu0 0.0
      %1787 = vmatpush1.msra.mxu0 %v1784
      %1788 = vmatprep.subr.mxu0 0.0
      %1789 = vmatpush1.msra.mxu0 0.0
      %1790 = vmatprep.subr.mxu0 0.0
      %1791 = vmatpush1.msra.mxu0 0.0
      %1792 = vmatprep.subr.mxu0 0.0
      %1793 = vmatpush1.msra.mxu0 0.0
      %1794 = vmatprep.subr.mxu0 0.0
      %1795 = vmatpush1.msra.mxu0 0.0
      %1796 = vmatprep.subr.mxu0 0.0
      %1797 = vmatpush1.msra.mxu0 0.0
      %1798 = vmatprep.subr.mxu0 0.0
      %1799 = vmatpush1.msra.mxu0 0.0
      %1800 = vmatprep.subr.mxu0 0.0
      %1801 = vmatpush1.msra.mxu0 0.0
      %1802 = vmatprep.subr.mxu0 0.0
      %1803 = vmatpush1.msra.mxu0 0.0
      %1804 = vmatprep.subr.mxu0 0.0
      %1805 = vmatpush1.msra.mxu0 0.0
      %1806 = vmatprep.subr.mxu0 0.0
      %1807 = vmatpush1.msra.mxu0 0.0
      %1808 = vmatprep.subr.mxu0 0.0
      %1809 = vmatpush1.msra.mxu0 0.0
      %1810 = vmatprep.subr.mxu0 0.0
      %1811 = vmatpush1.msra.mxu0 0.0
      %1812 = vmatprep.subr.mxu0 0.0
      %1813 = vmatpush1.msra.mxu0 0.0
      %1814 = vmatprep.subr.mxu0 0.0
      %1815 = vmatpush1.msra.mxu0 0.0
      %1816 = vmatprep.subr.mxu0 0.0
      %1817 = vmatpush1.msra.mxu0 0.0
      %1818 = vmatprep.subr.mxu0 0.0
      %1819 = vmatpush1.msra.mxu0 0.0
      %1820 = vmatprep.subr.mxu0 0.0
      %1821 = vmatpush1.msra.mxu0 0.0
      %1822 = vmatprep.subr.mxu0 0.0
      %1823 = vmatpush1.msra.mxu0 0.0
      %1824 = vmatprep.subr.mxu0 0.0
      %1825 = vmatpush1.msra.mxu0 0.0
      %1826 = vmatprep.subr.mxu0 0.0
      %1827 = vmatpush1.msra.mxu0 0.0
      %1828 = vmatprep.subr.mxu0 0.0
      %1829 = vmatpush1.msra.mxu0 0.0
      %1830 = vmatprep.subr.mxu0 0.0
      %1831 = vmatpush1.msra.mxu0 0.0
      %1832 = vmatprep.subr.mxu0 0.0
      %1833 = vmatpush1.msra.mxu0 0.0
      %1834 = vmatprep.subr.mxu0 0.0
      %1835 = vmatpush1.msra.mxu0 0.0
      %1836 = vmatprep.subr.mxu0 0.0
      %1837 = vmatpush1.msra.mxu0 0.0
      %1838 = vmatprep.subr.mxu0 0.0
      %1839 = vmatpush1.msra.mxu0 0.0
      %1840 = vmatprep.subr.mxu0 0.0
      %1841 = vmatpush1.msra.mxu0 0.0
      %1842 = vmatprep.subr.mxu0 0.0
      %1843 = vmatpush1.msra.mxu0 0.0
      %1844 = vmatprep.subr.mxu0 0.0
      %1845 = vmatpush1.msra.mxu0 0.0
      %1846 = vmatprep.subr.mxu0 0.0
      %1847 = vmatpush1.msra.mxu0 0.0
      %1848 = vmatprep.subr.mxu0 0.0
      %1849 = vmatpush1.msra.mxu0 0.0
      %1850 = vmatprep.mubr.f32.mxu0 0.0
      %1851 = vmatmul.mubr.f32.gmra.mrb[0].mxu0 %v869
      %v1852 = vpop.f32.mrb[0].mxu0
      %v1853 = vadd.f32 0.0, %v1852
      %v1854 = vpop.f32.mrb[0].mxu0
      %1855 = vmatprep.mubr.f32.mxu0 0.0
      %1856 = vmatmul.mubr.f32.gmra.mrb[0].mxu0 %v871
      %v1857 = vpop.f32.mrb[0].mxu0
      %v1858 = vadd.f32 0.0, %v1857
      %v1859 = vpop.f32.mrb[0].mxu0
      %1860 = vmatprep.mubr.f32.mxu0 0.0
      %1861 = vmatmul.mubr.f32.gmra.mrb[0].mxu0 %v873
      %v1862 = vpop.f32.mrb[0].mxu0
      %v1863 = vpop.f32.mrb[0].mxu0
      %1864 = vmatprep.mubr.f32.mxu0 0.0
      %1865 = vmatmul.mubr.f32.gmra.mrb[0].mxu0 %v875
      %v1866 = vpop.f32.mrb[0].mxu0
      %v1867 = vadd.f32 0.0, %v1866
      %v1868 = vpop.f32.mrb[0].mxu0
      %1869 = vmatprep.mubr.f32.mxu0 0.0
      %1870 = vmatmul.mubr.f32.gmra.mrb[0].mxu0 %v877
      %v1871 = vpop.f32.mrb[0].mxu0
      %v1872 = vadd.f32 0.0, %v1871
      %v1873 = vpop.f32.mrb[0].mxu0
      %1874 = vmatprep.mubr.f32.mxu0 0.0
      %1875 = vmatmul.mubr.f32.gmra.mrb[0].mxu0 %v879
      %v1876 = vpop.f32.mrb[0].mxu0
      %v1877 = vpop.f32.mrb[0].mxu0
      %1878 = vmatprep.mubr.f32.mxu0 0.0
      %1879 = vmatmul.mubr.f32.gmra.mrb[0].mxu0 %v881
      %v1880 = vpop.f32.mrb[0].mxu0
      %v1881 = vadd.f32 0.0, %v1880
      %v1882 = vpop.f32.mrb[0].mxu0
      %1883 = vmatprep.mubr.f32.mxu0 0.0
      %1884 = vmatmul.mubr.f32.gmra.mrb[0].mxu0 %v883
      %v1885 = vpop.f32.mrb[0].mxu0
      %v1886 = vadd.f32 0.0, %v1885
      %v1887 = vpop.f32.mrb[0].mxu0
      %1888 = vmatprep.mubr.f32.mxu0 0.0
      %1889 = vmatmul.mubr.f32.gmra.mrb[0].mxu0 %v885
      %v1890 = vpop.f32.mrb[0].mxu0
      %v1891 = vpop.f32.mrb[0].mxu0
      %1892 = vmatprep.mubr.f32.mxu0 0.0
      %1893 = vmatmul.mubr.f32.gmra.mrb[0].mxu0 %v887
      %v1894 = vpop.f32.mrb[0].mxu0
      %v1895 = vadd.f32 0.0, %v1894
      %v1896 = vpop.f32.mrb[0].mxu0
      %1897 = vmatprep.mubr.f32.mxu0 0.0
      %1898 = vmatmul.mubr.f32.gmra.mrb[0].mxu0 %v889
      %v1899 = vpop.f32.mrb[0].mxu0
      %v1900 = vadd.f32 0.0, %v1899
      %v1901 = vpop.f32.mrb[0].mxu0
      %1902 = vmatprep.mubr.f32.mxu0 0.0
      %1903 = vmatmul.mubr.f32.gmra.mrb[0].mxu0 %v891
      %v1904 = vpop.f32.mrb[0].mxu0
      %v1905 = vpop.f32.mrb[0].mxu0
      %1906 = vmatprep.mubr.f32.mxu0 0.0
      %1907 = vmatmul.mubr.f32.gmra.mrb[0].mxu0 %v893
      %v1908 = vpop.f32.mrb[0].mxu0
      %v1909 = vadd.f32 0.0, %v1908
      %v1910 = vpop.f32.mrb[0].mxu0
      %1911 = vmatprep.mubr.f32.mxu0 0.0
      %1912 = vmatmul.mubr.f32.gmra.mrb[0].mxu0 %v895
      %v1913 = vpop.f32.mrb[0].mxu0
      %v1914 = vadd.f32 0.0, %v1913
      %v1915 = vpop.f32.mrb[0].mxu0
      %1916 = vmatprep.mubr.f32.mxu0 0.0
      %1917 = vmatmul.mubr.f32.gmra.mrb[0].mxu0 %v897
      %v1918 = vpop.f32.mrb[0].mxu0
      %v1919 = vpop.f32.mrb[0].mxu0
      %1920 = vmatprep.mubr.f32.mxu0 0.0
      %1921 = vmatmul.mubr.f32.gmra.mrb[0].mxu0 %v899
      %v1922 = vpop.f32.mrb[0].mxu0
      %v1923 = vadd.f32 0.0, %v1922
      %v1924 = vpop.f32.mrb[0].mxu0
      %1925 = vmatprep.mubr.f32.mxu0 0.0
      %1926 = vmatmul.mubr.f32.gmra.mrb[0].mxu0 %v901
      %v1927 = vpop.f32.mrb[0].mxu0
      %v1928 = vadd.f32 0.0, %v1927
      %v1929 = vpop.f32.mrb[0].mxu0
      %1930 = vmatprep.mubr.f32.mxu0 0.0
      %1931 = vmatmul.mubr.f32.gmra.mrb[0].mxu0 %v903
      %v1932 = vpop.f32.mrb[0].mxu0
      %v1933 = vpop.f32.mrb[0].mxu0
      %1934 = vmatprep.mubr.f32.mxu0 0.0
      %1935 = vmatmul.mubr.f32.gmra.mrb[0].mxu0 %v905
      %v1936 = vpop.f32.mrb[0].mxu0
      %v1937 = vadd.f32 0.0, %v1936
      %v1938 = vpop.f32.mrb[0].mxu0
      %1939 = vmatprep.mubr.f32.mxu0 0.0
      %1940 = vmatmul.mubr.f32.gmra.mrb[0].mxu0 %v907
      %v1941 = vpop.f32.mrb[0].mxu0
      %v1942 = vadd.f32 0.0, %v1941
      %v1943 = vpop.f32.mrb[0].mxu0
      %1944 = vmatprep.mubr.f32.mxu0 0.0
      %1945 = vmatmul.mubr.f32.gmra.mrb[0].mxu0 %v909
      %v1946 = vpop.f32.mrb[0].mxu0
      %v1947 = vpop.f32.mrb[0].mxu0
      %1948 = vmatprep.mubr.f32.mxu0 0.0
      %1949 = vmatmul.mubr.f32.gmra.mrb[0].mxu0 %v911
      %v1950 = vpop.f32.mrb[0].mxu0
      %v1951 = vadd.f32 0.0, %v1950
      %v1952 = vpop.f32.mrb[0].mxu0
      %1953 = vmatprep.mubr.f32.mxu0 0.0
      %1954 = vmatmul.mubr.f32.gmra.mrb[0].mxu0 %v913
      %v1955 = vpop.f32.mrb[0].mxu0
      %v1956 = vadd.f32 0.0, %v1955
      %v1957 = vpop.f32.mrb[0].mxu0
      %1958 = vmatprep.mubr.f32.mxu0 0.0
      %1959 = vmatmul.mubr.f32.gmra.mrb[0].mxu0 %v915
      %v1960 = vpop.f32.mrb[0].mxu0
      %v1961 = vpop.f32.mrb[0].mxu0
      %1962 = vmatprep.mubr.f32.mxu0 0.0
      %1963 = vmatmul.mubr.f32.gmra.mrb[0].mxu0 %v917
      %v1964 = vpop.f32.mrb[0].mxu0
      %v1965 = vadd.f32 0.0, %v1964
      %v1966 = vpop.f32.mrb[0].mxu0
      %1967 = vmatprep.mubr.f32.mxu0 0.0
      %1968 = vmatmul.mubr.f32.gmra.mrb[0].mxu0 %v919
      %v1969 = vpop.f32.mrb[0].mxu0
      %v1970 = vadd.f32 0.0, %v1969
      %v1971 = vpop.f32.mrb[0].mxu0
      %1972 = vmatprep.mubr.f32.mxu0 0.0
      %1973 = vmatmul.mubr.f32.gmra.mrb[0].mxu0 %v921
      %v1974 = vpop.f32.mrb[0].mxu0
      %v1975 = vpop.f32.mrb[0].mxu0
      %1976 = vmatprep.mubr.f32.mxu0 0.0
      %1977 = vmatmul.mubr.f32.gmra.mrb[0].mxu0 %v923
      %v1978 = vpop.f32.mrb[0].mxu0
      %v1979 = vadd.f32 0.0, %v1978
      %v1980 = vpop.f32.mrb[0].mxu0
      %1981 = vmatprep.mubr.f32.mxu0 0.0
      %1982 = vmatmul.mubr.f32.gmra.mrb[0].mxu0 %v925
      %v1983 = vpop.f32.mrb[0].mxu0
      %v1984 = vadd.f32 0.0, %v1983
      %v1985 = vpop.f32.mrb[0].mxu0
      %1986 = vmatprep.mubr.f32.mxu0 0.0
      %1987 = vmatmul.mubr.f32.gmra.mrb[0].mxu0 %v927
      %v1988 = vpop.f32.mrb[0].mxu0
      %v1989 = vpop.f32.mrb[0].mxu0
      %1990 = vmatprep.mubr.f32.mxu0 0.0
      %1991 = vmatmul.mubr.f32.gmra.mrb[0].mxu0 %v929
      %v1992 = vpop.f32.mrb[0].mxu0
      %v1993 = vadd.f32 0.0, %v1992
      %v1994 = vpop.f32.mrb[0].mxu0
      %1995 = vmatprep.mubr.f32.mxu0 0.0
      %1996 = vmatmul.mubr.f32.gmra.mrb[0].mxu0 %v931
      %v1997 = vpop.f32.mrb[0].mxu0
      %v1998 = vadd.f32 0.0, %v1997
      %v1999 = vpop.f32.mrb[0].mxu0
      %2000 = vmatprep.mubr.f32.mxu0 0.0
      %2001 = vmatmul.mubr.f32.gmra.mrb[0].mxu0 %v933
      %v2002 = vpop.f32.mrb[0].mxu0
      %v2003 = vpop.f32.mrb[0].mxu0
      %2004 = vmatprep.mubr.f32.mxu0 0.0
      %2005 = vmatmul.mubr.f32.gmra.mrb[0].mxu0 %v935
      %v2006 = vpop.f32.mrb[0].mxu0
      %v2007 = vadd.f32 0.0, %v2006
      %v2008 = vpop.f32.mrb[0].mxu0
      %2009 = vmatprep.mubr.f32.mxu0 0.0
      %2010 = vmatmul.mubr.f32.gmra.mrb[0].mxu0 %v937
      %v2011 = vpop.f32.mrb[0].mxu0
      %v2012 = vadd.f32 0.0, %v2011
      %v2013 = vpop.f32.mrb[0].mxu0
      %2014 = vmatprep.mubr.f32.mxu0 0.0
      %2015 = vmatmul.mubr.f32.gmra.mrb[0].mxu0 %v939
      %v2016 = vpop.f32.mrb[0].mxu0
      %v2017 = vpop.f32.mrb[0].mxu0
      %2018 = vmatprep.mubr.f32.mxu0 0.0
      %2019 = vmatmul.mubr.f32.gmra.mrb[0].mxu0 %v941
      %v2020 = vpop.f32.mrb[0].mxu0
      %v2021 = vadd.f32 0.0, %v2020
      %v2022 = vpop.f32.mrb[0].mxu0
      %2023 = vmatprep.mubr.f32.mxu0 0.0
      %2024 = vmatmul.mubr.f32.gmra.mrb[0].mxu0 %v943
      %v2025 = vpop.f32.mrb[0].mxu0
      %v2026 = vadd.f32 0.0, %v2025
      %v2027 = vpop.f32.mrb[0].mxu0
      %2028 = vmatprep.mubr.f32.mxu0 0.0
      %2029 = vmatmul.mubr.f32.gmra.mrb[0].mxu0 %v945
      %v2030 = vpop.f32.mrb[0].mxu0
      %v2031 = vpop.f32.mrb[0].mxu0
      %2032 = vmatprep.mubr.f32.mxu0 0.0
      %2033 = vmatmul.mubr.f32.gmra.mrb[0].mxu0 %v947
      %v2034 = vpop.f32.mrb[0].mxu0
      %v2035 = vadd.f32 0.0, %v2034
      %v2036 = vpop.f32.mrb[0].mxu0
      %2037 = vmatprep.mubr.f32.mxu0 0.0
      %2038 = vmatmul.mubr.f32.gmra.mrb[0].mxu0 %v949
      %v2039 = vpop.f32.mrb[0].mxu0
      %v2040 = vadd.f32 0.0, %v2039
      %v2041 = vpop.f32.mrb[0].mxu0
      %2042 = vmatprep.mubr.f32.mxu0 0.0
      %2043 = vmatmul.mubr.f32.gmra.mrb[0].mxu0 %v951
      %v2044 = vpop.f32.mrb[0].mxu0
      %v2045 = vpop.f32.mrb[0].mxu0
      %2046 = vmatprep.mubr.f32.mxu0 0.0
      %2047 = vmatmul.mubr.f32.gmra.mrb[0].mxu0 %v1766
      %v2048 = vpop.f32.mrb[0].mxu0
      %v2049 = vadd.f32 0.0, %v2048
      %v2050 = vpop.f32.mrb[0].mxu0
      %2051 = vmatprep.mubr.f32.mxu0 0.0
      %2052 = vmatmul.mubr.f32.gmra.mrb[0].mxu0 %v1769
      %v2053 = vpop.f32.mrb[0].mxu0
      %v2054 = vadd.f32 0.0, %v2053
      %v2055 = vpop.f32.mrb[0].mxu0
      %2056 = vmatprep.mubr.f32.mxu0 0.0
      %2057 = vmatmul.mubr.f32.gmra.mrb[0].mxu0 %v1772
      %v2058 = vpop.f32.mrb[0].mxu0
      %v2059 = vpop.f32.mrb[0].mxu0
      %2060 = vmatprep.mubr.f32.mxu0 0.0
      %2061 = vmatmul.mubr.f32.gmra.mrb[0].mxu0 %v1775
      %v2062 = vpop.f32.mrb[0].mxu0
      %v2063 = vadd.f32 0.0, %v2062
      %v2064 = vpop.f32.mrb[0].mxu0
      %2065 = vmatprep.mubr.f32.mxu0 0.0
      %2066 = vmatmul.mubr.f32.gmra.mrb[0].mxu0 %v1778
      %v2067 = vpop.f32.mrb[0].mxu0
      %v2068 = vadd.f32 0.0, %v2067
      %v2069 = vpop.f32.mrb[0].mxu0
      %2070 = vmatprep.mubr.f32.mxu0 0.0
      %2071 = vmatmul.mubr.f32.gmra.mrb[0].mxu0 %v1781
      %v2072 = vpop.f32.mrb[0].mxu0
      %v2073 = vpop.f32.mrb[0].mxu0
      %2074 = vdwg.mxu0
      %v2075 = vadd.f32 %v1732, %v1853
      %v2076 = vadd.f32 %v1733, %v1858
      %v2077 = vadd.f32 %v1734, %v1867
      %v2078 = vadd.f32 %v1735, %v1872
      %v2079 = vadd.f32 %v1736, %v1881
      %v2080 = vadd.f32 %v1737, %v1886
      %v2081 = vadd.f32 %v1738, %v1895
      %v2082 = vadd.f32 %v1739, %v1900
      %v2083 = vadd.f32 %v1740, %v1909
      %v2084 = vadd.f32 %v1741, %v1914
      %v2085 = vadd.f32 %v1742, %v1923
      %v2086 = vadd.f32 %v1743, %v1928
      %v2087 = vadd.f32 %v1744, %v1937
      %v2088 = vadd.f32 %v1745, %v1942
      %v2089 = vadd.f32 %v1746, %v1951
      %v2090 = vadd.f32 %v1747, %v1956
      %v2091 = vadd.f32 %v1748, %v1965
      %v2092 = vadd.f32 %v1749, %v1970
      %v2093 = vadd.f32 %v1750, %v1979
      %v2094 = vadd.f32 %v1751, %v1984
      %v2095 = vadd.f32 %v1752, %v1993
      %v2096 = vadd.f32 %v1753, %v1998
      %v2097 = vadd.f32 %v1754, %v2007
      %v2098 = vadd.f32 %v1755, %v2012
      %v2099 = vadd.f32 %v1756, %v2021
      %v2100 = vadd.f32 %v1757, %v2026
      %v2101 = vadd.f32 %v1758, %v2035
      %v2102 = vadd.f32 %v1759, %v2040
      %v2103 = vadd.f32 %v1760, %v2049
      %v2104 = vadd.f32 %v1761, %v2054
      %v2105 = vadd.f32 %v1762, %v2063
      %v2106 = vadd.f32 %v1763, %v2068
      %s2107 = scalar_lea.vmem %s1, 16
      %v2108 = vld [vmem:[%s2107] sm:$0xf]
      %v2110 = vrot.slane %v305, 2
      %v2111 = vsel %vm369, %v465, %v2110
      %v2112 = vrot.slane %v306, 2
      %v2113 = vsel %vm369, %v2110, %v2112
      %v2114 = vrot.slane %v307, 2
      %v2115 = vsel %vm369, %v2112, %v2114
      %v2116 = vrot.slane %v308, 2
      %v2117 = vsel %vm369, %v2114, %v2116
      %v2118 = vrot.slane %v309, 2
      %v2119 = vsel %vm369, %v2116, %v2118
      %v2120 = vrot.slane %v310, 2
      %v2121 = vsel %vm369, %v2118, %v2120
      %v2122 = vsel %vm467, %v2111, 0
      %v2124 = vsel %vm467, %v2113, 0
      %v2126 = vsel %vm467, %v2115, 0
      %v2128 = vsel %vm467, %v2117, 0
      %v2130 = vsel %vm467, %v2119, 0
      %v2132 = vsel %vm467, %v2121, 0
      %v2135 = vsel %vm564, %v2108, 0
      %2137 = vmatprep.subr.mxu0 0.0
      %2138 = vmatpush1.msra.mxu0 %v2135
      %2139 = vmatprep.subr.mxu0 0.0
      %2140 = vmatpush1.msra.mxu0 0.0
      %2141 = vmatprep.subr.mxu0 0.0
      %2142 = vmatpush1.msra.mxu0 0.0
      %2143 = vmatprep.subr.mxu0 0.0
      %2144 = vmatpush1.msra.mxu0 0.0
      %2145 = vmatprep.subr.mxu0 0.0
      %2146 = vmatpush1.msra.mxu0 0.0
      %2147 = vmatprep.subr.mxu0 0.0
      %2148 = vmatpush1.msra.mxu0 0.0
      %2149 = vmatprep.subr.mxu0 0.0
      %2150 = vmatpush1.msra.mxu0 0.0
      %2151 = vmatprep.subr.mxu0 0.0
      %2152 = vmatpush1.msra.mxu0 0.0
      %2153 = vmatprep.subr.mxu0 0.0
      %2154 = vmatpush1.msra.mxu0 0.0
      %2155 = vmatprep.subr.mxu0 0.0
      %2156 = vmatpush1.msra.mxu0 0.0
      %2157 = vmatprep.subr.mxu0 0.0
      %2158 = vmatpush1.msra.mxu0 0.0
      %2159 = vmatprep.subr.mxu0 0.0
      %2160 = vmatpush1.msra.mxu0 0.0
      %2161 = vmatprep.subr.mxu0 0.0
      %2162 = vmatpush1.msra.mxu0 0.0
      %2163 = vmatprep.subr.mxu0 0.0
      %2164 = vmatpush1.msra.mxu0 0.0
      %2165 = vmatprep.subr.mxu0 0.0
      %2166 = vmatpush1.msra.mxu0 0.0
      %2167 = vmatprep.subr.mxu0 0.0
      %2168 = vmatpush1.msra.mxu0 0.0
      %2169 = vmatprep.subr.mxu0 0.0
      %2170 = vmatpush1.msra.mxu0 0.0
      %2171 = vmatprep.subr.mxu0 0.0
      %2172 = vmatpush1.msra.mxu0 0.0
      %2173 = vmatprep.subr.mxu0 0.0
      %2174 = vmatpush1.msra.mxu0 0.0
      %2175 = vmatprep.subr.mxu0 0.0
      %2176 = vmatpush1.msra.mxu0 0.0
      %2177 = vmatprep.subr.mxu0 0.0
      %2178 = vmatpush1.msra.mxu0 0.0
      %2179 = vmatprep.subr.mxu0 0.0
      %2180 = vmatpush1.msra.mxu0 0.0
      %2181 = vmatprep.subr.mxu0 0.0
      %2182 = vmatpush1.msra.mxu0 0.0
      %2183 = vmatprep.subr.mxu0 0.0
      %2184 = vmatpush1.msra.mxu0 0.0
      %2185 = vmatprep.subr.mxu0 0.0
      %2186 = vmatpush1.msra.mxu0 0.0
      %2187 = vmatprep.subr.mxu0 0.0
      %2188 = vmatpush1.msra.mxu0 0.0
      %2189 = vmatprep.subr.mxu0 0.0
      %2190 = vmatpush1.msra.mxu0 0.0
      %2191 = vmatprep.subr.mxu0 0.0
      %2192 = vmatpush1.msra.mxu0 0.0
      %2193 = vmatprep.subr.mxu0 0.0
      %2194 = vmatpush1.msra.mxu0 0.0
      %2195 = vmatprep.subr.mxu0 0.0
      %2196 = vmatpush1.msra.mxu0 0.0
      %2197 = vmatprep.subr.mxu0 0.0
      %2198 = vmatpush1.msra.mxu0 0.0
      %2199 = vmatprep.subr.mxu0 0.0
      %2200 = vmatpush1.msra.mxu0 0.0
      %2201 = vmatprep.mubr.f32.mxu0 0.0
      %2202 = vmatmul.mubr.f32.gmra.mrb[0].mxu0 %v480
      %v2203 = vpop.f32.mrb[0].mxu0
      %v2204 = vadd.f32 0.0, %v2203
      %v2205 = vpop.f32.mrb[0].mxu0
      %2206 = vmatprep.mubr.f32.mxu0 0.0
      %2207 = vmatmul.mubr.f32.gmra.mrb[0].mxu0 %v482
      %v2208 = vpop.f32.mrb[0].mxu0
      %v2209 = vadd.f32 0.0, %v2208
      %v2210 = vpop.f32.mrb[0].mxu0
      %2211 = vmatprep.mubr.f32.mxu0 0.0
      %2212 = vmatmul.mubr.f32.gmra.mrb[0].mxu0 %v484
      %v2213 = vpop.f32.mrb[0].mxu0
      %v2214 = vpop.f32.mrb[0].mxu0
      %2215 = vmatprep.mubr.f32.mxu0 0.0
      %2216 = vmatmul.mubr.f32.gmra.mrb[0].mxu0 %v486
      %v2217 = vpop.f32.mrb[0].mxu0
      %v2218 = vadd.f32 0.0, %v2217
      %v2219 = vpop.f32.mrb[0].mxu0
      %2220 = vmatprep.mubr.f32.mxu0 0.0
      %2221 = vmatmul.mubr.f32.gmra.mrb[0].mxu0 %v488
      %v2222 = vpop.f32.mrb[0].mxu0
      %v2223 = vadd.f32 0.0, %v2222
      %v2224 = vpop.f32.mrb[0].mxu0
      %2225 = vmatprep.mubr.f32.mxu0 0.0
      %2226 = vmatmul.mubr.f32.gmra.mrb[0].mxu0 %v490
      %v2227 = vpop.f32.mrb[0].mxu0
      %v2228 = vpop.f32.mrb[0].mxu0
      %2229 = vmatprep.mubr.f32.mxu0 0.0
      %2230 = vmatmul.mubr.f32.gmra.mrb[0].mxu0 %v492
      %v2231 = vpop.f32.mrb[0].mxu0
      %v2232 = vadd.f32 0.0, %v2231
      %v2233 = vpop.f32.mrb[0].mxu0
      %2234 = vmatprep.mubr.f32.mxu0 0.0
      %2235 = vmatmul.mubr.f32.gmra.mrb[0].mxu0 %v494
      %v2236 = vpop.f32.mrb[0].mxu0
      %v2237 = vadd.f32 0.0, %v2236
      %v2238 = vpop.f32.mrb[0].mxu0
      %2239 = vmatprep.mubr.f32.mxu0 0.0
      %2240 = vmatmul.mubr.f32.gmra.mrb[0].mxu0 %v496
      %v2241 = vpop.f32.mrb[0].mxu0
      %v2242 = vpop.f32.mrb[0].mxu0
      %2243 = vmatprep.mubr.f32.mxu0 0.0
      %2244 = vmatmul.mubr.f32.gmra.mrb[0].mxu0 %v498
      %v2245 = vpop.f32.mrb[0].mxu0
      %v2246 = vadd.f32 0.0, %v2245
      %v2247 = vpop.f32.mrb[0].mxu0
      %2248 = vmatprep.mubr.f32.mxu0 0.0
      %2249 = vmatmul.mubr.f32.gmra.mrb[0].mxu0 %v500
      %v2250 = vpop.f32.mrb[0].mxu0
      %v2251 = vadd.f32 0.0, %v2250
      %v2252 = vpop.f32.mrb[0].mxu0
      %2253 = vmatprep.mubr.f32.mxu0 0.0
      %2254 = vmatmul.mubr.f32.gmra.mrb[0].mxu0 %v502
      %v2255 = vpop.f32.mrb[0].mxu0
      %v2256 = vpop.f32.mrb[0].mxu0
      %2257 = vmatprep.mubr.f32.mxu0 0.0
      %2258 = vmatmul.mubr.f32.gmra.mrb[0].mxu0 %v504
      %v2259 = vpop.f32.mrb[0].mxu0
      %v2260 = vadd.f32 0.0, %v2259
      %v2261 = vpop.f32.mrb[0].mxu0
      %2262 = vmatprep.mubr.f32.mxu0 0.0
      %2263 = vmatmul.mubr.f32.gmra.mrb[0].mxu0 %v506
      %v2264 = vpop.f32.mrb[0].mxu0
      %v2265 = vadd.f32 0.0, %v2264
      %v2266 = vpop.f32.mrb[0].mxu0
      %2267 = vmatprep.mubr.f32.mxu0 0.0
      %2268 = vmatmul.mubr.f32.gmra.mrb[0].mxu0 %v508
      %v2269 = vpop.f32.mrb[0].mxu0
      %v2270 = vpop.f32.mrb[0].mxu0
      %2271 = vmatprep.mubr.f32.mxu0 0.0
      %2272 = vmatmul.mubr.f32.gmra.mrb[0].mxu0 %v510
      %v2273 = vpop.f32.mrb[0].mxu0
      %v2274 = vadd.f32 0.0, %v2273
      %v2275 = vpop.f32.mrb[0].mxu0
      %2276 = vmatprep.mubr.f32.mxu0 0.0
      %2277 = vmatmul.mubr.f32.gmra.mrb[0].mxu0 %v512
      %v2278 = vpop.f32.mrb[0].mxu0
      %v2279 = vadd.f32 0.0, %v2278
      %v2280 = vpop.f32.mrb[0].mxu0
      %2281 = vmatprep.mubr.f32.mxu0 0.0
      %2282 = vmatmul.mubr.f32.gmra.mrb[0].mxu0 %v514
      %v2283 = vpop.f32.mrb[0].mxu0
      %v2284 = vpop.f32.mrb[0].mxu0
      %2285 = vmatprep.mubr.f32.mxu0 0.0
      %2286 = vmatmul.mubr.f32.gmra.mrb[0].mxu0 %v516
      %v2287 = vpop.f32.mrb[0].mxu0
      %v2288 = vadd.f32 0.0, %v2287
      %v2289 = vpop.f32.mrb[0].mxu0
      %2290 = vmatprep.mubr.f32.mxu0 0.0
      %2291 = vmatmul.mubr.f32.gmra.mrb[0].mxu0 %v518
      %v2292 = vpop.f32.mrb[0].mxu0
      %v2293 = vadd.f32 0.0, %v2292
      %v2294 = vpop.f32.mrb[0].mxu0
      %2295 = vmatprep.mubr.f32.mxu0 0.0
      %2296 = vmatmul.mubr.f32.gmra.mrb[0].mxu0 %v520
      %v2297 = vpop.f32.mrb[0].mxu0
      %v2298 = vpop.f32.mrb[0].mxu0
      %2299 = vmatprep.mubr.f32.mxu0 0.0
      %2300 = vmatmul.mubr.f32.gmra.mrb[0].mxu0 %v522
      %v2301 = vpop.f32.mrb[0].mxu0
      %v2302 = vadd.f32 0.0, %v2301
      %v2303 = vpop.f32.mrb[0].mxu0
      %2304 = vmatprep.mubr.f32.mxu0 0.0
      %2305 = vmatmul.mubr.f32.gmra.mrb[0].mxu0 %v524
      %v2306 = vpop.f32.mrb[0].mxu0
      %v2307 = vadd.f32 0.0, %v2306
      %v2308 = vpop.f32.mrb[0].mxu0
      %2309 = vmatprep.mubr.f32.mxu0 0.0
      %2310 = vmatmul.mubr.f32.gmra.mrb[0].mxu0 %v526
      %v2311 = vpop.f32.mrb[0].mxu0
      %v2312 = vpop.f32.mrb[0].mxu0
      %2313 = vmatprep.mubr.f32.mxu0 0.0
      %2314 = vmatmul.mubr.f32.gmra.mrb[0].mxu0 %v528
      %v2315 = vpop.f32.mrb[0].mxu0
      %v2316 = vadd.f32 0.0, %v2315
      %v2317 = vpop.f32.mrb[0].mxu0
      %2318 = vmatprep.mubr.f32.mxu0 0.0
      %2319 = vmatmul.mubr.f32.gmra.mrb[0].mxu0 %v530
      %v2320 = vpop.f32.mrb[0].mxu0
      %v2321 = vadd.f32 0.0, %v2320
      %v2322 = vpop.f32.mrb[0].mxu0
      %2323 = vmatprep.mubr.f32.mxu0 0.0
      %2324 = vmatmul.mubr.f32.gmra.mrb[0].mxu0 %v532
      %v2325 = vpop.f32.mrb[0].mxu0
      %v2326 = vpop.f32.mrb[0].mxu0
      %2327 = vmatprep.mubr.f32.mxu0 0.0
      %2328 = vmatmul.mubr.f32.gmra.mrb[0].mxu0 %v534
      %v2329 = vpop.f32.mrb[0].mxu0
      %v2330 = vadd.f32 0.0, %v2329
      %v2331 = vpop.f32.mrb[0].mxu0
      %2332 = vmatprep.mubr.f32.mxu0 0.0
      %2333 = vmatmul.mubr.f32.gmra.mrb[0].mxu0 %v536
      %v2334 = vpop.f32.mrb[0].mxu0
      %v2335 = vadd.f32 0.0, %v2334
      %v2336 = vpop.f32.mrb[0].mxu0
      %2337 = vmatprep.mubr.f32.mxu0 0.0
      %2338 = vmatmul.mubr.f32.gmra.mrb[0].mxu0 %v538
      %v2339 = vpop.f32.mrb[0].mxu0
      %v2340 = vpop.f32.mrb[0].mxu0
      %2341 = vmatprep.mubr.f32.mxu0 0.0
      %2342 = vmatmul.mubr.f32.gmra.mrb[0].mxu0 %v540
      %v2343 = vpop.f32.mrb[0].mxu0
      %v2344 = vadd.f32 0.0, %v2343
      %v2345 = vpop.f32.mrb[0].mxu0
      %2346 = vmatprep.mubr.f32.mxu0 0.0
      %2347 = vmatmul.mubr.f32.gmra.mrb[0].mxu0 %v542
      %v2348 = vpop.f32.mrb[0].mxu0
      %v2349 = vadd.f32 0.0, %v2348
      %v2350 = vpop.f32.mrb[0].mxu0
      %2351 = vmatprep.mubr.f32.mxu0 0.0
      %2352 = vmatmul.mubr.f32.gmra.mrb[0].mxu0 %v544
      %v2353 = vpop.f32.mrb[0].mxu0
      %v2354 = vpop.f32.mrb[0].mxu0
      %2355 = vmatprep.mubr.f32.mxu0 0.0
      %2356 = vmatmul.mubr.f32.gmra.mrb[0].mxu0 %v546
      %v2357 = vpop.f32.mrb[0].mxu0
      %v2358 = vadd.f32 0.0, %v2357
      %v2359 = vpop.f32.mrb[0].mxu0
      %2360 = vmatprep.mubr.f32.mxu0 0.0
      %2361 = vmatmul.mubr.f32.gmra.mrb[0].mxu0 %v548
      %v2362 = vpop.f32.mrb[0].mxu0
      %v2363 = vadd.f32 0.0, %v2362
      %v2364 = vpop.f32.mrb[0].mxu0
      %2365 = vmatprep.mubr.f32.mxu0 0.0
      %2366 = vmatmul.mubr.f32.gmra.mrb[0].mxu0 %v550
      %v2367 = vpop.f32.mrb[0].mxu0
      %v2368 = vpop.f32.mrb[0].mxu0
      %2369 = vmatprep.mubr.f32.mxu0 0.0
      %2370 = vmatmul.mubr.f32.gmra.mrb[0].mxu0 %v552
      %v2371 = vpop.f32.mrb[0].mxu0
      %v2372 = vadd.f32 0.0, %v2371
      %v2373 = vpop.f32.mrb[0].mxu0
      %2374 = vmatprep.mubr.f32.mxu0 0.0
      %2375 = vmatmul.mubr.f32.gmra.mrb[0].mxu0 %v554
      %v2376 = vpop.f32.mrb[0].mxu0
      %v2377 = vadd.f32 0.0, %v2376
      %v2378 = vpop.f32.mrb[0].mxu0
      %2379 = vmatprep.mubr.f32.mxu0 0.0
      %2380 = vmatmul.mubr.f32.gmra.mrb[0].mxu0 %v556
      %v2381 = vpop.f32.mrb[0].mxu0
      %v2382 = vpop.f32.mrb[0].mxu0
      %2383 = vmatprep.mubr.f32.mxu0 0.0
      %2384 = vmatmul.mubr.f32.gmra.mrb[0].mxu0 %v558
      %v2385 = vpop.f32.mrb[0].mxu0
      %v2386 = vadd.f32 0.0, %v2385
      %v2387 = vpop.f32.mrb[0].mxu0
      %2388 = vmatprep.mubr.f32.mxu0 0.0
      %2389 = vmatmul.mubr.f32.gmra.mrb[0].mxu0 %v560
      %v2390 = vpop.f32.mrb[0].mxu0
      %v2391 = vadd.f32 0.0, %v2390
      %v2392 = vpop.f32.mrb[0].mxu0
      %2393 = vmatprep.mubr.f32.mxu0 0.0
      %2394 = vmatmul.mubr.f32.gmra.mrb[0].mxu0 %v562
      %v2395 = vpop.f32.mrb[0].mxu0
      %v2396 = vpop.f32.mrb[0].mxu0
      %2397 = vmatprep.mubr.f32.mxu0 0.0
      %2398 = vmatmul.mubr.f32.gmra.mrb[0].mxu0 %v2122
      %v2399 = vpop.f32.mrb[0].mxu0
      %v2400 = vadd.f32 0.0, %v2399
      %v2401 = vpop.f32.mrb[0].mxu0
      %2402 = vmatprep.mubr.f32.mxu0 0.0
      %2403 = vmatmul.mubr.f32.gmra.mrb[0].mxu0 %v2124
      %v2404 = vpop.f32.mrb[0].mxu0
      %v2405 = vadd.f32 0.0, %v2404
      %v2406 = vpop.f32.mrb[0].mxu0
      %2407 = vmatprep.mubr.f32.mxu0 0.0
      %2408 = vmatmul.mubr.f32.gmra.mrb[0].mxu0 %v2126
      %v2409 = vpop.f32.mrb[0].mxu0
      %v2410 = vpop.f32.mrb[0].mxu0
      %2411 = vmatprep.mubr.f32.mxu0 0.0
      %2412 = vmatmul.mubr.f32.gmra.mrb[0].mxu0 %v2128
      %v2413 = vpop.f32.mrb[0].mxu0
      %v2414 = vadd.f32 0.0, %v2413
      %v2415 = vpop.f32.mrb[0].mxu0
      %2416 = vmatprep.mubr.f32.mxu0 0.0
      %2417 = vmatmul.mubr.f32.gmra.mrb[0].mxu0 %v2130
      %v2418 = vpop.f32.mrb[0].mxu0
      %v2419 = vadd.f32 0.0, %v2418
      %v2420 = vpop.f32.mrb[0].mxu0
      %2421 = vmatprep.mubr.f32.mxu0 0.0
      %2422 = vmatmul.mubr.f32.gmra.mrb[0].mxu0 %v2132
      %v2423 = vpop.f32.mrb[0].mxu0
      %v2424 = vpop.f32.mrb[0].mxu0
      %2425 = vdwg.mxu0
      %v2426 = vadd.f32 %v2075, %v2204
      %v2427 = vadd.f32 %v2076, %v2209
      %v2428 = vadd.f32 %v2077, %v2218
      %v2429 = vadd.f32 %v2078, %v2223
      %v2430 = vadd.f32 %v2079, %v2232
      %v2431 = vadd.f32 %v2080, %v2237
      %v2432 = vadd.f32 %v2081, %v2246
      %v2433 = vadd.f32 %v2082, %v2251
      %v2434 = vadd.f32 %v2083, %v2260
      %v2435 = vadd.f32 %v2084, %v2265
      %v2436 = vadd.f32 %v2085, %v2274
      %v2437 = vadd.f32 %v2086, %v2279
      %v2438 = vadd.f32 %v2087, %v2288
      %v2439 = vadd.f32 %v2088, %v2293
      %v2440 = vadd.f32 %v2089, %v2302
      %v2441 = vadd.f32 %v2090, %v2307
      %v2442 = vadd.f32 %v2091, %v2316
      %v2443 = vadd.f32 %v2092, %v2321
      %v2444 = vadd.f32 %v2093, %v2330
      %v2445 = vadd.f32 %v2094, %v2335
      %v2446 = vadd.f32 %v2095, %v2344
      %v2447 = vadd.f32 %v2096, %v2349
      %v2448 = vadd.f32 %v2097, %v2358
      %v2449 = vadd.f32 %v2098, %v2363
      %v2450 = vadd.f32 %v2099, %v2372
      %v2451 = vadd.f32 %v2100, %v2377
      %v2452 = vadd.f32 %v2101, %v2386
      %v2453 = vadd.f32 %v2102, %v2391
      %v2454 = vadd.f32 %v2103, %v2400
      %v2455 = vadd.f32 %v2104, %v2405
      %v2456 = vadd.f32 %v2105, %v2414
      %v2457 = vadd.f32 %v2106, %v2419
      %s2458 = scalar_lea.vmem %s1, 20
      %v2459 = vld [vmem:[%s2458] sm:$0xf]
      %v2460 = vrot.slane %v305, 4
      %v2461 = vsel %vm564, %v1342, %v2460
      %v2462 = vrot.slane %v306, 4
      %v2463 = vsel %vm564, %v2460, %v2462
      %v2464 = vrot.slane %v307, 4
      %v2465 = vsel %vm564, %v2462, %v2464
      %v2466 = vrot.slane %v308, 4
      %v2467 = vsel %vm564, %v2464, %v2466
      %v2468 = vrot.slane %v309, 4
      %v2469 = vsel %vm564, %v2466, %v2468
      %v2470 = vrot.slane %v310, 4
      %v2471 = vsel %vm564, %v2468, %v2470
      %v2472 = vsel %vm467, %v2461, 0
      %v2474 = vsel %vm467, %v2463, 0
      %v2476 = vsel %vm467, %v2465, 0
      %v2478 = vsel %vm467, %v2467, 0
      %v2480 = vsel %vm467, %v2469, 0
      %v2482 = vsel %vm467, %v2471, 0
      %v2485 = vsel %vm564, %v2459, 0
      %2487 = vmatprep.subr.mxu0 0.0
      %2488 = vmatpush1.msra.mxu0 %v2485
      %2489 = vmatprep.subr.mxu0 0.0
      %2490 = vmatpush1.msra.mxu0 0.0
      %2491 = vmatprep.subr.mxu0 0.0
      %2492 = vmatpush1.msra.mxu0 0.0
      %2493 = vmatprep.subr.mxu0 0.0
      %2494 = vmatpush1.msra.mxu0 0.0
      %2495 = vmatprep.subr.mxu0 0.0
      %2496 = vmatpush1.msra.mxu0 0.0
      %2497 = vmatprep.subr.mxu0 0.0
      %2498 = vmatpush1.msra.mxu0 0.0
      %2499 = vmatprep.subr.mxu0 0.0
      %2500 = vmatpush1.msra.mxu0 0.0
      %2501 = vmatprep.subr.mxu0 0.0
      %2502 = vmatpush1.msra.mxu0 0.0
      %2503 = vmatprep.subr.mxu0 0.0
      %2504 = vmatpush1.msra.mxu0 0.0
      %2505 = vmatprep.subr.mxu0 0.0
      %2506 = vmatpush1.msra.mxu0 0.0
      %2507 = vmatprep.subr.mxu0 0.0
      %2508 = vmatpush1.msra.mxu0 0.0
      %2509 = vmatprep.subr.mxu0 0.0
      %2510 = vmatpush1.msra.mxu0 0.0
      %2511 = vmatprep.subr.mxu0 0.0
      %2512 = vmatpush1.msra.mxu0 0.0
      %2513 = vmatprep.subr.mxu0 0.0
      %2514 = vmatpush1.msra.mxu0 0.0
      %2515 = vmatprep.subr.mxu0 0.0
      %2516 = vmatpush1.msra.mxu0 0.0
      %2517 = vmatprep.subr.mxu0 0.0
      %2518 = vmatpush1.msra.mxu0 0.0
      %2519 = vmatprep.subr.mxu0 0.0
      %2520 = vmatpush1.msra.mxu0 0.0
      %2521 = vmatprep.subr.mxu0 0.0
      %2522 = vmatpush1.msra.mxu0 0.0
      %2523 = vmatprep.subr.mxu0 0.0
      %2524 = vmatpush1.msra.mxu0 0.0
      %2525 = vmatprep.subr.mxu0 0.0
      %2526 = vmatpush1.msra.mxu0 0.0
      %2527 = vmatprep.subr.mxu0 0.0
      %2528 = vmatpush1.msra.mxu0 0.0
      %2529 = vmatprep.subr.mxu0 0.0
      %2530 = vmatpush1.msra.mxu0 0.0
      %2531 = vmatprep.subr.mxu0 0.0
      %2532 = vmatpush1.msra.mxu0 0.0
      %2533 = vmatprep.subr.mxu0 0.0
      %2534 = vmatpush1.msra.mxu0 0.0
      %2535 = vmatprep.subr.mxu0 0.0
      %2536 = vmatpush1.msra.mxu0 0.0
      %2537 = vmatprep.subr.mxu0 0.0
      %2538 = vmatpush1.msra.mxu0 0.0
      %2539 = vmatprep.subr.mxu0 0.0
      %2540 = vmatpush1.msra.mxu0 0.0
      %2541 = vmatprep.subr.mxu0 0.0
      %2542 = vmatpush1.msra.mxu0 0.0
      %2543 = vmatprep.subr.mxu0 0.0
      %2544 = vmatpush1.msra.mxu0 0.0
      %2545 = vmatprep.subr.mxu0 0.0
      %2546 = vmatpush1.msra.mxu0 0.0
      %2547 = vmatprep.subr.mxu0 0.0
      %2548 = vmatpush1.msra.mxu0 0.0
      %2549 = vmatprep.subr.mxu0 0.0
      %2550 = vmatpush1.msra.mxu0 0.0
      %2551 = vmatprep.mubr.f32.mxu0 0.0
      %2552 = vmatmul.mubr.f32.gmra.mrb[0].mxu0 %v1356
      %v2553 = vpop.f32.mrb[0].mxu0
      %v2554 = vadd.f32 0.0, %v2553
      %v2555 = vpop.f32.mrb[0].mxu0
      %2556 = vmatprep.mubr.f32.mxu0 0.0
      %2557 = vmatmul.mubr.f32.gmra.mrb[0].mxu0 %v1358
      %v2558 = vpop.f32.mrb[0].mxu0
      %v2559 = vadd.f32 0.0, %v2558
      %v2560 = vpop.f32.mrb[0].mxu0
      %2561 = vmatprep.mubr.f32.mxu0 0.0
      %2562 = vmatmul.mubr.f32.gmra.mrb[0].mxu0 %v1360
      %v2563 = vpop.f32.mrb[0].mxu0
      %v2564 = vpop.f32.mrb[0].mxu0
      %2565 = vmatprep.mubr.f32.mxu0 0.0
      %2566 = vmatmul.mubr.f32.gmra.mrb[0].mxu0 %v1362
      %v2567 = vpop.f32.mrb[0].mxu0
      %v2568 = vadd.f32 0.0, %v2567
      %v2569 = vpop.f32.mrb[0].mxu0
      %2570 = vmatprep.mubr.f32.mxu0 0.0
      %2571 = vmatmul.mubr.f32.gmra.mrb[0].mxu0 %v1364
      %v2572 = vpop.f32.mrb[0].mxu0
      %v2573 = vadd.f32 0.0, %v2572
      %v2574 = vpop.f32.mrb[0].mxu0
      %2575 = vmatprep.mubr.f32.mxu0 0.0
      %2576 = vmatmul.mubr.f32.gmra.mrb[0].mxu0 %v1366
      %v2577 = vpop.f32.mrb[0].mxu0
      %v2578 = vpop.f32.mrb[0].mxu0
      %2579 = vmatprep.mubr.f32.mxu0 0.0
      %2580 = vmatmul.mubr.f32.gmra.mrb[0].mxu0 %v1368
      %v2581 = vpop.f32.mrb[0].mxu0
      %v2582 = vadd.f32 0.0, %v2581
      %v2583 = vpop.f32.mrb[0].mxu0
      %2584 = vmatprep.mubr.f32.mxu0 0.0
      %2585 = vmatmul.mubr.f32.gmra.mrb[0].mxu0 %v1370
      %v2586 = vpop.f32.mrb[0].mxu0
      %v2587 = vadd.f32 0.0, %v2586
      %v2588 = vpop.f32.mrb[0].mxu0
      %2589 = vmatprep.mubr.f32.mxu0 0.0
      %2590 = vmatmul.mubr.f32.gmra.mrb[0].mxu0 %v1372
      %v2591 = vpop.f32.mrb[0].mxu0
      %v2592 = vpop.f32.mrb[0].mxu0
      %2593 = vmatprep.mubr.f32.mxu0 0.0
      %2594 = vmatmul.mubr.f32.gmra.mrb[0].mxu0 %v1374
      %v2595 = vpop.f32.mrb[0].mxu0
      %v2596 = vadd.f32 0.0, %v2595
      %v2597 = vpop.f32.mrb[0].mxu0
      %2598 = vmatprep.mubr.f32.mxu0 0.0
      %2599 = vmatmul.mubr.f32.gmra.mrb[0].mxu0 %v1376
      %v2600 = vpop.f32.mrb[0].mxu0
      %v2601 = vadd.f32 0.0, %v2600
      %v2602 = vpop.f32.mrb[0].mxu0
      %2603 = vmatprep.mubr.f32.mxu0 0.0
      %2604 = vmatmul.mubr.f32.gmra.mrb[0].mxu0 %v1378
      %v2605 = vpop.f32.mrb[0].mxu0
      %v2606 = vpop.f32.mrb[0].mxu0
      %2607 = vmatprep.mubr.f32.mxu0 0.0
      %2608 = vmatmul.mubr.f32.gmra.mrb[0].mxu0 %v1380
      %v2609 = vpop.f32.mrb[0].mxu0
      %v2610 = vadd.f32 0.0, %v2609
      %v2611 = vpop.f32.mrb[0].mxu0
      %2612 = vmatprep.mubr.f32.mxu0 0.0
      %2613 = vmatmul.mubr.f32.gmra.mrb[0].mxu0 %v1382
      %v2614 = vpop.f32.mrb[0].mxu0
      %v2615 = vadd.f32 0.0, %v2614
      %v2616 = vpop.f32.mrb[0].mxu0
      %2617 = vmatprep.mubr.f32.mxu0 0.0
      %2618 = vmatmul.mubr.f32.gmra.mrb[0].mxu0 %v1384
      %v2619 = vpop.f32.mrb[0].mxu0
      %v2620 = vpop.f32.mrb[0].mxu0
      %2621 = vmatprep.mubr.f32.mxu0 0.0
      %2622 = vmatmul.mubr.f32.gmra.mrb[0].mxu0 %v1386
      %v2623 = vpop.f32.mrb[0].mxu0
      %v2624 = vadd.f32 0.0, %v2623
      %v2625 = vpop.f32.mrb[0].mxu0
      %2626 = vmatprep.mubr.f32.mxu0 0.0
      %2627 = vmatmul.mubr.f32.gmra.mrb[0].mxu0 %v1388
      %v2628 = vpop.f32.mrb[0].mxu0
      %v2629 = vadd.f32 0.0, %v2628
      %v2630 = vpop.f32.mrb[0].mxu0
      %2631 = vmatprep.mubr.f32.mxu0 0.0
      %2632 = vmatmul.mubr.f32.gmra.mrb[0].mxu0 %v1390
      %v2633 = vpop.f32.mrb[0].mxu0
      %v2634 = vpop.f32.mrb[0].mxu0
      %2635 = vmatprep.mubr.f32.mxu0 0.0
      %2636 = vmatmul.mubr.f32.gmra.mrb[0].mxu0 %v1392
      %v2637 = vpop.f32.mrb[0].mxu0
      %v2638 = vadd.f32 0.0, %v2637
      %v2639 = vpop.f32.mrb[0].mxu0
      %2640 = vmatprep.mubr.f32.mxu0 0.0
      %2641 = vmatmul.mubr.f32.gmra.mrb[0].mxu0 %v1394
      %v2642 = vpop.f32.mrb[0].mxu0
      %v2643 = vadd.f32 0.0, %v2642
      %v2644 = vpop.f32.mrb[0].mxu0
      %2645 = vmatprep.mubr.f32.mxu0 0.0
      %2646 = vmatmul.mubr.f32.gmra.mrb[0].mxu0 %v1396
      %v2647 = vpop.f32.mrb[0].mxu0
      %v2648 = vpop.f32.mrb[0].mxu0
      %2649 = vmatprep.mubr.f32.mxu0 0.0
      %2650 = vmatmul.mubr.f32.gmra.mrb[0].mxu0 %v1398
      %v2651 = vpop.f32.mrb[0].mxu0
      %v2652 = vadd.f32 0.0, %v2651
      %v2653 = vpop.f32.mrb[0].mxu0
      %2654 = vmatprep.mubr.f32.mxu0 0.0
      %2655 = vmatmul.mubr.f32.gmra.mrb[0].mxu0 %v1400
      %v2656 = vpop.f32.mrb[0].mxu0
      %v2657 = vadd.f32 0.0, %v2656
      %v2658 = vpop.f32.mrb[0].mxu0
      %2659 = vmatprep.mubr.f32.mxu0 0.0
      %2660 = vmatmul.mubr.f32.gmra.mrb[0].mxu0 %v1402
      %v2661 = vpop.f32.mrb[0].mxu0
      %v2662 = vpop.f32.mrb[0].mxu0
      %2663 = vmatprep.mubr.f32.mxu0 0.0
      %2664 = vmatmul.mubr.f32.gmra.mrb[0].mxu0 %v1404
      %v2665 = vpop.f32.mrb[0].mxu0
      %v2666 = vadd.f32 0.0, %v2665
      %v2667 = vpop.f32.mrb[0].mxu0
      %2668 = vmatprep.mubr.f32.mxu0 0.0
      %2669 = vmatmul.mubr.f32.gmra.mrb[0].mxu0 %v1406
      %v2670 = vpop.f32.mrb[0].mxu0
      %v2671 = vadd.f32 0.0, %v2670
      %v2672 = vpop.f32.mrb[0].mxu0
      %2673 = vmatprep.mubr.f32.mxu0 0.0
      %2674 = vmatmul.mubr.f32.gmra.mrb[0].mxu0 %v1408
      %v2675 = vpop.f32.mrb[0].mxu0
      %v2676 = vpop.f32.mrb[0].mxu0
      %2677 = vmatprep.mubr.f32.mxu0 0.0
      %2678 = vmatmul.mubr.f32.gmra.mrb[0].mxu0 %v1410
      %v2679 = vpop.f32.mrb[0].mxu0
      %v2680 = vadd.f32 0.0, %v2679
      %v2681 = vpop.f32.mrb[0].mxu0
      %2682 = vmatprep.mubr.f32.mxu0 0.0
      %2683 = vmatmul.mubr.f32.gmra.mrb[0].mxu0 %v1412
      %v2684 = vpop.f32.mrb[0].mxu0
      %v2685 = vadd.f32 0.0, %v2684
      %v2686 = vpop.f32.mrb[0].mxu0
      %2687 = vmatprep.mubr.f32.mxu0 0.0
      %2688 = vmatmul.mubr.f32.gmra.mrb[0].mxu0 %v1414
      %v2689 = vpop.f32.mrb[0].mxu0
      %v2690 = vpop.f32.mrb[0].mxu0
      %2691 = vmatprep.mubr.f32.mxu0 0.0
      %2692 = vmatmul.mubr.f32.gmra.mrb[0].mxu0 %v1416
      %v2693 = vpop.f32.mrb[0].mxu0
      %v2694 = vadd.f32 0.0, %v2693
      %v2695 = vpop.f32.mrb[0].mxu0
      %2696 = vmatprep.mubr.f32.mxu0 0.0
      %2697 = vmatmul.mubr.f32.gmra.mrb[0].mxu0 %v1418
      %v2698 = vpop.f32.mrb[0].mxu0
      %v2699 = vadd.f32 0.0, %v2698
      %v2700 = vpop.f32.mrb[0].mxu0
      %2701 = vmatprep.mubr.f32.mxu0 0.0
      %2702 = vmatmul.mubr.f32.gmra.mrb[0].mxu0 %v1420
      %v2703 = vpop.f32.mrb[0].mxu0
      %v2704 = vpop.f32.mrb[0].mxu0
      %2705 = vmatprep.mubr.f32.mxu0 0.0
      %2706 = vmatmul.mubr.f32.gmra.mrb[0].mxu0 %v1422
      %v2707 = vpop.f32.mrb[0].mxu0
      %v2708 = vadd.f32 0.0, %v2707
      %v2709 = vpop.f32.mrb[0].mxu0
      %2710 = vmatprep.mubr.f32.mxu0 0.0
      %2711 = vmatmul.mubr.f32.gmra.mrb[0].mxu0 %v1424
      %v2712 = vpop.f32.mrb[0].mxu0
      %v2713 = vadd.f32 0.0, %v2712
      %v2714 = vpop.f32.mrb[0].mxu0
      %2715 = vmatprep.mubr.f32.mxu0 0.0
      %2716 = vmatmul.mubr.f32.gmra.mrb[0].mxu0 %v1426
      %v2717 = vpop.f32.mrb[0].mxu0
      %v2718 = vpop.f32.mrb[0].mxu0
      %2719 = vmatprep.mubr.f32.mxu0 0.0
      %2720 = vmatmul.mubr.f32.gmra.mrb[0].mxu0 %v1428
      %v2721 = vpop.f32.mrb[0].mxu0
      %v2722 = vadd.f32 0.0, %v2721
      %v2723 = vpop.f32.mrb[0].mxu0
      %2724 = vmatprep.mubr.f32.mxu0 0.0
      %2725 = vmatmul.mubr.f32.gmra.mrb[0].mxu0 %v1430
      %v2726 = vpop.f32.mrb[0].mxu0
      %v2727 = vadd.f32 0.0, %v2726
      %v2728 = vpop.f32.mrb[0].mxu0
      %2729 = vmatprep.mubr.f32.mxu0 0.0
      %2730 = vmatmul.mubr.f32.gmra.mrb[0].mxu0 %v1432
      %v2731 = vpop.f32.mrb[0].mxu0
      %v2732 = vpop.f32.mrb[0].mxu0
      %2733 = vmatprep.mubr.f32.mxu0 0.0
      %2734 = vmatmul.mubr.f32.gmra.mrb[0].mxu0 %v1434
      %v2735 = vpop.f32.mrb[0].mxu0
      %v2736 = vadd.f32 0.0, %v2735
      %v2737 = vpop.f32.mrb[0].mxu0
      %2738 = vmatprep.mubr.f32.mxu0 0.0
      %2739 = vmatmul.mubr.f32.gmra.mrb[0].mxu0 %v1436
      %v2740 = vpop.f32.mrb[0].mxu0
      %v2741 = vadd.f32 0.0, %v2740
      %v2742 = vpop.f32.mrb[0].mxu0
      %2743 = vmatprep.mubr.f32.mxu0 0.0
      %2744 = vmatmul.mubr.f32.gmra.mrb[0].mxu0 %v1438
      %v2745 = vpop.f32.mrb[0].mxu0
      %v2746 = vpop.f32.mrb[0].mxu0
      %2747 = vmatprep.mubr.f32.mxu0 0.0
      %2748 = vmatmul.mubr.f32.gmra.mrb[0].mxu0 %v2472
      %v2749 = vpop.f32.mrb[0].mxu0
      %v2750 = vadd.f32 0.0, %v2749
      %v2751 = vpop.f32.mrb[0].mxu0
      %2752 = vmatprep.mubr.f32.mxu0 0.0
      %2753 = vmatmul.mubr.f32.gmra.mrb[0].mxu0 %v2474
      %v2754 = vpop.f32.mrb[0].mxu0
      %v2755 = vadd.f32 0.0, %v2754
      %v2756 = vpop.f32.mrb[0].mxu0
      %2757 = vmatprep.mubr.f32.mxu0 0.0
      %2758 = vmatmul.mubr.f32.gmra.mrb[0].mxu0 %v2476
      %v2759 = vpop.f32.mrb[0].mxu0
      %v2760 = vpop.f32.mrb[0].mxu0
      %2761 = vmatprep.mubr.f32.mxu0 0.0
      %2762 = vmatmul.mubr.f32.gmra.mrb[0].mxu0 %v2478
      %v2763 = vpop.f32.mrb[0].mxu0
      %v2764 = vadd.f32 0.0, %v2763
      %v2765 = vpop.f32.mrb[0].mxu0
      %2766 = vmatprep.mubr.f32.mxu0 0.0
      %2767 = vmatmul.mubr.f32.gmra.mrb[0].mxu0 %v2480
      %v2768 = vpop.f32.mrb[0].mxu0
      %v2769 = vadd.f32 0.0, %v2768
      %v2770 = vpop.f32.mrb[0].mxu0
      %2771 = vmatprep.mubr.f32.mxu0 0.0
      %2772 = vmatmul.mubr.f32.gmra.mrb[0].mxu0 %v2482
      %v2773 = vpop.f32.mrb[0].mxu0
      %v2774 = vpop.f32.mrb[0].mxu0
      %2775 = vdwg.mxu0
      %v2776 = vadd.f32 %v2426, %v2554
      %v2777 = vadd.f32 %v2427, %v2559
      %v2778 = vadd.f32 %v2428, %v2568
      %v2779 = vadd.f32 %v2429, %v2573
      %v2780 = vadd.f32 %v2430, %v2582
      %v2781 = vadd.f32 %v2431, %v2587
      %v2782 = vadd.f32 %v2432, %v2596
      %v2783 = vadd.f32 %v2433, %v2601
      %v2784 = vadd.f32 %v2434, %v2610
      %v2785 = vadd.f32 %v2435, %v2615
      %v2786 = vadd.f32 %v2436, %v2624
      %v2787 = vadd.f32 %v2437, %v2629
      %v2788 = vadd.f32 %v2438, %v2638
      %v2789 = vadd.f32 %v2439, %v2643
      %v2790 = vadd.f32 %v2440, %v2652
      %v2791 = vadd.f32 %v2441, %v2657
      %v2792 = vadd.f32 %v2442, %v2666
      %v2793 = vadd.f32 %v2443, %v2671
      %v2794 = vadd.f32 %v2444, %v2680
      %v2795 = vadd.f32 %v2445, %v2685
      %v2796 = vadd.f32 %v2446, %v2694
      %v2797 = vadd.f32 %v2447, %v2699
      %v2798 = vadd.f32 %v2448, %v2708
      %v2799 = vadd.f32 %v2449, %v2713
      %v2800 = vadd.f32 %v2450, %v2722
      %v2801 = vadd.f32 %v2451, %v2727
      %v2802 = vadd.f32 %v2452, %v2736
      %v2803 = vadd.f32 %v2453, %v2741
      %v2804 = vadd.f32 %v2454, %v2750
      %v2805 = vadd.f32 %v2455, %v2755
      %v2806 = vadd.f32 %v2456, %v2764
      %v2807 = vadd.f32 %v2457, %v2769
      %s2808 = scalar_lea.vmem %s1, 24
      %v2809 = vld [vmem:[%s2808] sm:$0xf]
      %v2810 = vsel %vm467, %v310, 0
      %v2813 = vsel %vm467, %v311, 0
      %v2816 = vsel %vm467, %v312, 0
      %v2819 = vsel %vm467, %v313, 0
      %v2822 = vsel %vm467, %v314, 0
      %v2825 = vsel %vm467, %v315, 0
      %v2828 = vsel %vm564, %v2809, 0
      %2830 = vmatprep.subr.mxu0 0.0
      %2831 = vmatpush1.msra.mxu0 %v2828
      %2832 = vmatprep.subr.mxu0 0.0
      %2833 = vmatpush1.msra.mxu0 0.0
      %2834 = vmatprep.subr.mxu0 0.0
      %2835 = vmatpush1.msra.mxu0 0.0
      %2836 = vmatprep.subr.mxu0 0.0
      %2837 = vmatpush1.msra.mxu0 0.0
      %2838 = vmatprep.subr.mxu0 0.0
      %2839 = vmatpush1.msra.mxu0 0.0
      %2840 = vmatprep.subr.mxu0 0.0
      %2841 = vmatpush1.msra.mxu0 0.0
      %2842 = vmatprep.subr.mxu0 0.0
      %2843 = vmatpush1.msra.mxu0 0.0
      %2844 = vmatprep.subr.mxu0 0.0
      %2845 = vmatpush1.msra.mxu0 0.0
      %2846 = vmatprep.subr.mxu0 0.0
      %2847 = vmatpush1.msra.mxu0 0.0
      %2848 = vmatprep.subr.mxu0 0.0
      %2849 = vmatpush1.msra.mxu0 0.0
      %2850 = vmatprep.subr.mxu0 0.0
      %2851 = vmatpush1.msra.mxu0 0.0
      %2852 = vmatprep.subr.mxu0 0.0
      %2853 = vmatpush1.msra.mxu0 0.0
      %2854 = vmatprep.subr.mxu0 0.0
      %2855 = vmatpush1.msra.mxu0 0.0
      %2856 = vmatprep.subr.mxu0 0.0
      %2857 = vmatpush1.msra.mxu0 0.0
      %2858 = vmatprep.subr.mxu0 0.0
      %2859 = vmatpush1.msra.mxu0 0.0
      %2860 = vmatprep.subr.mxu0 0.0
      %2861 = vmatpush1.msra.mxu0 0.0
      %2862 = vmatprep.subr.mxu0 0.0
      %2863 = vmatpush1.msra.mxu0 0.0
      %2864 = vmatprep.subr.mxu0 0.0
      %2865 = vmatpush1.msra.mxu0 0.0
      %2866 = vmatprep.subr.mxu0 0.0
      %2867 = vmatpush1.msra.mxu0 0.0
      %2868 = vmatprep.subr.mxu0 0.0
      %2869 = vmatpush1.msra.mxu0 0.0
      %2870 = vmatprep.subr.mxu0 0.0
      %2871 = vmatpush1.msra.mxu0 0.0
      %2872 = vmatprep.subr.mxu0 0.0
      %2873 = vmatpush1.msra.mxu0 0.0
      %2874 = vmatprep.subr.mxu0 0.0
      %2875 = vmatpush1.msra.mxu0 0.0
      %2876 = vmatprep.subr.mxu0 0.0
      %2877 = vmatpush1.msra.mxu0 0.0
      %2878 = vmatprep.subr.mxu0 0.0
      %2879 = vmatpush1.msra.mxu0 0.0
      %2880 = vmatprep.subr.mxu0 0.0
      %2881 = vmatpush1.msra.mxu0 0.0
      %2882 = vmatprep.subr.mxu0 0.0
      %2883 = vmatpush1.msra.mxu0 0.0
      %2884 = vmatprep.subr.mxu0 0.0
      %2885 = vmatpush1.msra.mxu0 0.0
      %2886 = vmatprep.subr.mxu0 0.0
      %2887 = vmatpush1.msra.mxu0 0.0
      %2888 = vmatprep.subr.mxu0 0.0
      %2889 = vmatpush1.msra.mxu0 0.0
      %2890 = vmatprep.subr.mxu0 0.0
      %2891 = vmatpush1.msra.mxu0 0.0
      %2892 = vmatprep.subr.mxu0 0.0
      %2893 = vmatpush1.msra.mxu0 0.0
      %2894 = vmatprep.mubr.f32.mxu0 0.0
      %2895 = vmatmul.mubr.f32.gmra.mrb[0].mxu0 %v881
      %v2896 = vpop.f32.mrb[0].mxu0
      %v2897 = vadd.f32 0.0, %v2896
      %v2898 = vpop.f32.mrb[0].mxu0
      %2899 = vmatprep.mubr.f32.mxu0 0.0
      %2900 = vmatmul.mubr.f32.gmra.mrb[0].mxu0 %v883
      %v2901 = vpop.f32.mrb[0].mxu0
      %v2902 = vadd.f32 0.0, %v2901
      %v2903 = vpop.f32.mrb[0].mxu0
      %2904 = vmatprep.mubr.f32.mxu0 0.0
      %2905 = vmatmul.mubr.f32.gmra.mrb[0].mxu0 %v885
      %v2906 = vpop.f32.mrb[0].mxu0
      %v2907 = vpop.f32.mrb[0].mxu0
      %2908 = vmatprep.mubr.f32.mxu0 0.0
      %2909 = vmatmul.mubr.f32.gmra.mrb[0].mxu0 %v887
      %v2910 = vpop.f32.mrb[0].mxu0
      %v2911 = vadd.f32 0.0, %v2910
      %v2912 = vpop.f32.mrb[0].mxu0
      %2913 = vmatprep.mubr.f32.mxu0 0.0
      %2914 = vmatmul.mubr.f32.gmra.mrb[0].mxu0 %v889
      %v2915 = vpop.f32.mrb[0].mxu0
      %v2916 = vadd.f32 0.0, %v2915
      %v2917 = vpop.f32.mrb[0].mxu0
      %2918 = vmatprep.mubr.f32.mxu0 0.0
      %2919 = vmatmul.mubr.f32.gmra.mrb[0].mxu0 %v891
      %v2920 = vpop.f32.mrb[0].mxu0
      %v2921 = vpop.f32.mrb[0].mxu0
      %2922 = vmatprep.mubr.f32.mxu0 0.0
      %2923 = vmatmul.mubr.f32.gmra.mrb[0].mxu0 %v893
      %v2924 = vpop.f32.mrb[0].mxu0
      %v2925 = vadd.f32 0.0, %v2924
      %v2926 = vpop.f32.mrb[0].mxu0
      %2927 = vmatprep.mubr.f32.mxu0 0.0
      %2928 = vmatmul.mubr.f32.gmra.mrb[0].mxu0 %v895
      %v2929 = vpop.f32.mrb[0].mxu0
      %v2930 = vadd.f32 0.0, %v2929
      %v2931 = vpop.f32.mrb[0].mxu0
      %2932 = vmatprep.mubr.f32.mxu0 0.0
      %2933 = vmatmul.mubr.f32.gmra.mrb[0].mxu0 %v897
      %v2934 = vpop.f32.mrb[0].mxu0
      %v2935 = vpop.f32.mrb[0].mxu0
      %2936 = vmatprep.mubr.f32.mxu0 0.0
      %2937 = vmatmul.mubr.f32.gmra.mrb[0].mxu0 %v899
      %v2938 = vpop.f32.mrb[0].mxu0
      %v2939 = vadd.f32 0.0, %v2938
      %v2940 = vpop.f32.mrb[0].mxu0
      %2941 = vmatprep.mubr.f32.mxu0 0.0
      %2942 = vmatmul.mubr.f32.gmra.mrb[0].mxu0 %v901
      %v2943 = vpop.f32.mrb[0].mxu0
      %v2944 = vadd.f32 0.0, %v2943
      %v2945 = vpop.f32.mrb[0].mxu0
      %2946 = vmatprep.mubr.f32.mxu0 0.0
      %2947 = vmatmul.mubr.f32.gmra.mrb[0].mxu0 %v903
      %v2948 = vpop.f32.mrb[0].mxu0
      %v2949 = vpop.f32.mrb[0].mxu0
      %2950 = vmatprep.mubr.f32.mxu0 0.0
      %2951 = vmatmul.mubr.f32.gmra.mrb[0].mxu0 %v905
      %v2952 = vpop.f32.mrb[0].mxu0
      %v2953 = vadd.f32 0.0, %v2952
      %v2954 = vpop.f32.mrb[0].mxu0
      %2955 = vmatprep.mubr.f32.mxu0 0.0
      %2956 = vmatmul.mubr.f32.gmra.mrb[0].mxu0 %v907
      %v2957 = vpop.f32.mrb[0].mxu0
      %v2958 = vadd.f32 0.0, %v2957
      %v2959 = vpop.f32.mrb[0].mxu0
      %2960 = vmatprep.mubr.f32.mxu0 0.0
      %2961 = vmatmul.mubr.f32.gmra.mrb[0].mxu0 %v909
      %v2962 = vpop.f32.mrb[0].mxu0
      %v2963 = vpop.f32.mrb[0].mxu0
      %2964 = vmatprep.mubr.f32.mxu0 0.0
      %2965 = vmatmul.mubr.f32.gmra.mrb[0].mxu0 %v911
      %v2966 = vpop.f32.mrb[0].mxu0
      %v2967 = vadd.f32 0.0, %v2966
      %v2968 = vpop.f32.mrb[0].mxu0
      %2969 = vmatprep.mubr.f32.mxu0 0.0
      %2970 = vmatmul.mubr.f32.gmra.mrb[0].mxu0 %v913
      %v2971 = vpop.f32.mrb[0].mxu0
      %v2972 = vadd.f32 0.0, %v2971
      %v2973 = vpop.f32.mrb[0].mxu0
      %2974 = vmatprep.mubr.f32.mxu0 0.0
      %2975 = vmatmul.mubr.f32.gmra.mrb[0].mxu0 %v915
      %v2976 = vpop.f32.mrb[0].mxu0
      %v2977 = vpop.f32.mrb[0].mxu0
      %2978 = vmatprep.mubr.f32.mxu0 0.0
      %2979 = vmatmul.mubr.f32.gmra.mrb[0].mxu0 %v917
      %v2980 = vpop.f32.mrb[0].mxu0
      %v2981 = vadd.f32 0.0, %v2980
      %v2982 = vpop.f32.mrb[0].mxu0
      %2983 = vmatprep.mubr.f32.mxu0 0.0
      %2984 = vmatmul.mubr.f32.gmra.mrb[0].mxu0 %v919
      %v2985 = vpop.f32.mrb[0].mxu0
      %v2986 = vadd.f32 0.0, %v2985
      %v2987 = vpop.f32.mrb[0].mxu0
      %2988 = vmatprep.mubr.f32.mxu0 0.0
      %2989 = vmatmul.mubr.f32.gmra.mrb[0].mxu0 %v921
      %v2990 = vpop.f32.mrb[0].mxu0
      %v2991 = vpop.f32.mrb[0].mxu0
      %2992 = vmatprep.mubr.f32.mxu0 0.0
      %2993 = vmatmul.mubr.f32.gmra.mrb[0].mxu0 %v923
      %v2994 = vpop.f32.mrb[0].mxu0
      %v2995 = vadd.f32 0.0, %v2994
      %v2996 = vpop.f32.mrb[0].mxu0
      %2997 = vmatprep.mubr.f32.mxu0 0.0
      %2998 = vmatmul.mubr.f32.gmra.mrb[0].mxu0 %v925
      %v2999 = vpop.f32.mrb[0].mxu0
      %v3000 = vadd.f32 0.0, %v2999
      %v3001 = vpop.f32.mrb[0].mxu0
      %3002 = vmatprep.mubr.f32.mxu0 0.0
      %3003 = vmatmul.mubr.f32.gmra.mrb[0].mxu0 %v927
      %v3004 = vpop.f32.mrb[0].mxu0
      %v3005 = vpop.f32.mrb[0].mxu0
      %3006 = vmatprep.mubr.f32.mxu0 0.0
      %3007 = vmatmul.mubr.f32.gmra.mrb[0].mxu0 %v929
      %v3008 = vpop.f32.mrb[0].mxu0
      %v3009 = vadd.f32 0.0, %v3008
      %v3010 = vpop.f32.mrb[0].mxu0
      %3011 = vmatprep.mubr.f32.mxu0 0.0
      %3012 = vmatmul.mubr.f32.gmra.mrb[0].mxu0 %v931
      %v3013 = vpop.f32.mrb[0].mxu0
      %v3014 = vadd.f32 0.0, %v3013
      %v3015 = vpop.f32.mrb[0].mxu0
      %3016 = vmatprep.mubr.f32.mxu0 0.0
      %3017 = vmatmul.mubr.f32.gmra.mrb[0].mxu0 %v933
      %v3018 = vpop.f32.mrb[0].mxu0
      %v3019 = vpop.f32.mrb[0].mxu0
      %3020 = vmatprep.mubr.f32.mxu0 0.0
      %3021 = vmatmul.mubr.f32.gmra.mrb[0].mxu0 %v935
      %v3022 = vpop.f32.mrb[0].mxu0
      %v3023 = vadd.f32 0.0, %v3022
      %v3024 = vpop.f32.mrb[0].mxu0
      %3025 = vmatprep.mubr.f32.mxu0 0.0
      %3026 = vmatmul.mubr.f32.gmra.mrb[0].mxu0 %v937
      %v3027 = vpop.f32.mrb[0].mxu0
      %v3028 = vadd.f32 0.0, %v3027
      %v3029 = vpop.f32.mrb[0].mxu0
      %3030 = vmatprep.mubr.f32.mxu0 0.0
      %3031 = vmatmul.mubr.f32.gmra.mrb[0].mxu0 %v939
      %v3032 = vpop.f32.mrb[0].mxu0
      %v3033 = vpop.f32.mrb[0].mxu0
      %3034 = vmatprep.mubr.f32.mxu0 0.0
      %3035 = vmatmul.mubr.f32.gmra.mrb[0].mxu0 %v941
      %v3036 = vpop.f32.mrb[0].mxu0
      %v3037 = vadd.f32 0.0, %v3036
      %v3038 = vpop.f32.mrb[0].mxu0
      %3039 = vmatprep.mubr.f32.mxu0 0.0
      %3040 = vmatmul.mubr.f32.gmra.mrb[0].mxu0 %v943
      %v3041 = vpop.f32.mrb[0].mxu0
      %v3042 = vadd.f32 0.0, %v3041
      %v3043 = vpop.f32.mrb[0].mxu0
      %3044 = vmatprep.mubr.f32.mxu0 0.0
      %3045 = vmatmul.mubr.f32.gmra.mrb[0].mxu0 %v945
      %v3046 = vpop.f32.mrb[0].mxu0
      %v3047 = vpop.f32.mrb[0].mxu0
      %3048 = vmatprep.mubr.f32.mxu0 0.0
      %3049 = vmatmul.mubr.f32.gmra.mrb[0].mxu0 %v947
      %v3050 = vpop.f32.mrb[0].mxu0
      %v3051 = vadd.f32 0.0, %v3050
      %v3052 = vpop.f32.mrb[0].mxu0
      %3053 = vmatprep.mubr.f32.mxu0 0.0
      %3054 = vmatmul.mubr.f32.gmra.mrb[0].mxu0 %v949
      %v3055 = vpop.f32.mrb[0].mxu0
      %v3056 = vadd.f32 0.0, %v3055
      %v3057 = vpop.f32.mrb[0].mxu0
      %3058 = vmatprep.mubr.f32.mxu0 0.0
      %3059 = vmatmul.mubr.f32.gmra.mrb[0].mxu0 %v951
      %v3060 = vpop.f32.mrb[0].mxu0
      %v3061 = vpop.f32.mrb[0].mxu0
      %3062 = vmatprep.mubr.f32.mxu0 0.0
      %3063 = vmatmul.mubr.f32.gmra.mrb[0].mxu0 %v1766
      %v3064 = vpop.f32.mrb[0].mxu0
      %v3065 = vadd.f32 0.0, %v3064
      %v3066 = vpop.f32.mrb[0].mxu0
      %3067 = vmatprep.mubr.f32.mxu0 0.0
      %3068 = vmatmul.mubr.f32.gmra.mrb[0].mxu0 %v1769
      %v3069 = vpop.f32.mrb[0].mxu0
      %v3070 = vadd.f32 0.0, %v3069
      %v3071 = vpop.f32.mrb[0].mxu0
      %3072 = vmatprep.mubr.f32.mxu0 0.0
      %3073 = vmatmul.mubr.f32.gmra.mrb[0].mxu0 %v1772
      %v3074 = vpop.f32.mrb[0].mxu0
      %v3075 = vpop.f32.mrb[0].mxu0
      %3076 = vmatprep.mubr.f32.mxu0 0.0
      %3077 = vmatmul.mubr.f32.gmra.mrb[0].mxu0 %v1775
      %v3078 = vpop.f32.mrb[0].mxu0
      %v3079 = vadd.f32 0.0, %v3078
      %v3080 = vpop.f32.mrb[0].mxu0
      %3081 = vmatprep.mubr.f32.mxu0 0.0
      %3082 = vmatmul.mubr.f32.gmra.mrb[0].mxu0 %v1778
      %v3083 = vpop.f32.mrb[0].mxu0
      %v3084 = vadd.f32 0.0, %v3083
      %v3085 = vpop.f32.mrb[0].mxu0
      %3086 = vmatprep.mubr.f32.mxu0 0.0
      %3087 = vmatmul.mubr.f32.gmra.mrb[0].mxu0 %v1781
      %v3088 = vpop.f32.mrb[0].mxu0
      %v3089 = vpop.f32.mrb[0].mxu0
      %3090 = vmatprep.mubr.f32.mxu0 0.0
      %3091 = vmatmul.mubr.f32.gmra.mrb[0].mxu0 %v2810
      %v3092 = vpop.f32.mrb[0].mxu0
      %v3093 = vadd.f32 0.0, %v3092
      %v3094 = vpop.f32.mrb[0].mxu0
      %3095 = vmatprep.mubr.f32.mxu0 0.0
      %3096 = vmatmul.mubr.f32.gmra.mrb[0].mxu0 %v2813
      %v3097 = vpop.f32.mrb[0].mxu0
      %v3098 = vadd.f32 0.0, %v3097
      %v3099 = vpop.f32.mrb[0].mxu0
      %3100 = vmatprep.mubr.f32.mxu0 0.0
      %3101 = vmatmul.mubr.f32.gmra.mrb[0].mxu0 %v2816
      %v3102 = vpop.f32.mrb[0].mxu0
      %v3103 = vpop.f32.mrb[0].mxu0
      %3104 = vmatprep.mubr.f32.mxu0 0.0
      %3105 = vmatmul.mubr.f32.gmra.mrb[0].mxu0 %v2819
      %v3106 = vpop.f32.mrb[0].mxu0
      %v3107 = vadd.f32 0.0, %v3106
      %v3108 = vpop.f32.mrb[0].mxu0
      %3109 = vmatprep.mubr.f32.mxu0 0.0
      %3110 = vmatmul.mubr.f32.gmra.mrb[0].mxu0 %v2822
      %v3111 = vpop.f32.mrb[0].mxu0
      %v3112 = vadd.f32 0.0, %v3111
      %v3113 = vpop.f32.mrb[0].mxu0
      %3114 = vmatprep.mubr.f32.mxu0 0.0
      %3115 = vmatmul.mubr.f32.gmra.mrb[0].mxu0 %v2825
      %v3116 = vpop.f32.mrb[0].mxu0
      %v3117 = vpop.f32.mrb[0].mxu0
      %3118 = vdwg.mxu0
      %v3119 = vadd.f32 %v2776, %v2897
      %v3120 = vadd.f32 %v2777, %v2902
      %v3121 = vadd.f32 %v2778, %v2911
      %v3122 = vadd.f32 %v2779, %v2916
      %v3123 = vadd.f32 %v2780, %v2925
      %v3124 = vadd.f32 %v2781, %v2930
      %v3125 = vadd.f32 %v2782, %v2939
      %v3126 = vadd.f32 %v2783, %v2944
      %v3127 = vadd.f32 %v2784, %v2953
      %v3128 = vadd.f32 %v2785, %v2958
      %v3129 = vadd.f32 %v2786, %v2967
      %v3130 = vadd.f32 %v2787, %v2972
      %v3131 = vadd.f32 %v2788, %v2981
      %v3132 = vadd.f32 %v2789, %v2986
      %v3133 = vadd.f32 %v2790, %v2995
      %v3134 = vadd.f32 %v2791, %v3000
      %v3135 = vadd.f32 %v2792, %v3009
      %v3136 = vadd.f32 %v2793, %v3014
      %v3137 = vadd.f32 %v2794, %v3023
      %v3138 = vadd.f32 %v2795, %v3028
      %v3139 = vadd.f32 %v2796, %v3037
      %v3140 = vadd.f32 %v2797, %v3042
      %v3141 = vadd.f32 %v2798, %v3051
      %v3142 = vadd.f32 %v2799, %v3056
      %v3143 = vadd.f32 %v2800, %v3065
      %v3144 = vadd.f32 %v2801, %v3070
      %v3145 = vadd.f32 %v2802, %v3079
      %v3146 = vadd.f32 %v2803, %v3084
      %v3147 = vadd.f32 %v2804, %v3093
      %v3148 = vadd.f32 %v2805, %v3098
      %v3149 = vadd.f32 %v2806, %v3107
      %v3150 = vadd.f32 %v2807, %v3112
      %s3151 = scalar_lea.vmem %s1, 28
      %v3152 = vld [vmem:[%s3151] sm:$0xf]
      %v3154 = vrot.slane %v311, 2
      %v3155 = vsel %vm369, %v2120, %v3154
      %v3156 = vrot.slane %v312, 2
      %v3157 = vsel %vm369, %v3154, %v3156
      %v3158 = vrot.slane %v313, 2
      %v3159 = vsel %vm369, %v3156, %v3158
      %v3160 = vrot.slane %v314, 2
      %v3161 = vsel %vm369, %v3158, %v3160
      %v3162 = vrot.slane %v315, 2
      %v3163 = vsel %vm369, %v3160, %v3162
      %v3164 = vrot.slane %v316, 2
      %v3165 = vsel %vm369, %v3162, %v3164
      %v3166 = vsel %vm467, %v3155, 0
      %v3168 = vsel %vm467, %v3157, 0
      %v3170 = vsel %vm467, %v3159, 0
      %v3172 = vsel %vm467, %v3161, 0
      %v3174 = vsel %vm467, %v3163, 0
      %v3176 = vsel %vm467, %v3165, 0
      %v3179 = vsel %vm564, %v3152, 0
      %3181 = vmatprep.subr.mxu0 0.0
      %3182 = vmatpush1.msra.mxu0 %v3179
      %3183 = vmatprep.subr.mxu0 0.0
      %3184 = vmatpush1.msra.mxu0 0.0
      %3185 = vmatprep.subr.mxu0 0.0
      %3186 = vmatpush1.msra.mxu0 0.0
      %3187 = vmatprep.subr.mxu0 0.0
      %3188 = vmatpush1.msra.mxu0 0.0
      %3189 = vmatprep.subr.mxu0 0.0
      %3190 = vmatpush1.msra.mxu0 0.0
      %3191 = vmatprep.subr.mxu0 0.0
      %3192 = vmatpush1.msra.mxu0 0.0
      %3193 = vmatprep.subr.mxu0 0.0
      %3194 = vmatpush1.msra.mxu0 0.0
      %3195 = vmatprep.subr.mxu0 0.0
      %3196 = vmatpush1.msra.mxu0 0.0
      %3197 = vmatprep.subr.mxu0 0.0
      %3198 = vmatpush1.msra.mxu0 0.0
      %3199 = vmatprep.subr.mxu0 0.0
      %3200 = vmatpush1.msra.mxu0 0.0
      %3201 = vmatprep.subr.mxu0 0.0
      %3202 = vmatpush1.msra.mxu0 0.0
      %3203 = vmatprep.subr.mxu0 0.0
      %3204 = vmatpush1.msra.mxu0 0.0
      %3205 = vmatprep.subr.mxu0 0.0
      %3206 = vmatpush1.msra.mxu0 0.0
      %3207 = vmatprep.subr.mxu0 0.0
      %3208 = vmatpush1.msra.mxu0 0.0
      %3209 = vmatprep.subr.mxu0 0.0
      %3210 = vmatpush1.msra.mxu0 0.0
      %3211 = vmatprep.subr.mxu0 0.0
      %3212 = vmatpush1.msra.mxu0 0.0
      %3213 = vmatprep.subr.mxu0 0.0
      %3214 = vmatpush1.msra.mxu0 0.0
      %3215 = vmatprep.subr.mxu0 0.0
      %3216 = vmatpush1.msra.mxu0 0.0
      %3217 = vmatprep.subr.mxu0 0.0
      %3218 = vmatpush1.msra.mxu0 0.0
      %3219 = vmatprep.subr.mxu0 0.0
      %3220 = vmatpush1.msra.mxu0 0.0
      %3221 = vmatprep.subr.mxu0 0.0
      %3222 = vmatpush1.msra.mxu0 0.0
      %3223 = vmatprep.subr.mxu0 0.0
      %3224 = vmatpush1.msra.mxu0 0.0
      %3225 = vmatprep.subr.mxu0 0.0
      %3226 = vmatpush1.msra.mxu0 0.0
      %3227 = vmatprep.subr.mxu0 0.0
      %3228 = vmatpush1.msra.mxu0 0.0
      %3229 = vmatprep.subr.mxu0 0.0
      %3230 = vmatpush1.msra.mxu0 0.0
      %3231 = vmatprep.subr.mxu0 0.0
      %3232 = vmatpush1.msra.mxu0 0.0
      %3233 = vmatprep.subr.mxu0 0.0
      %3234 = vmatpush1.msra.mxu0 0.0
      %3235 = vmatprep.subr.mxu0 0.0
      %3236 = vmatpush1.msra.mxu0 0.0
      %3237 = vmatprep.subr.mxu0 0.0
      %3238 = vmatpush1.msra.mxu0 0.0
      %3239 = vmatprep.subr.mxu0 0.0
      %3240 = vmatpush1.msra.mxu0 0.0
      %3241 = vmatprep.subr.mxu0 0.0
      %3242 = vmatpush1.msra.mxu0 0.0
      %3243 = vmatprep.subr.mxu0 0.0
      %3244 = vmatpush1.msra.mxu0 0.0
      %3245 = vmatprep.mubr.f32.mxu0 0.0
      %3246 = vmatmul.mubr.f32.gmra.mrb[0].mxu0 %v492
      %v3247 = vpop.f32.mrb[0].mxu0
      %v3248 = vadd.f32 0.0, %v3247
      %v3249 = vpop.f32.mrb[0].mxu0
      %3250 = vmatprep.mubr.f32.mxu0 0.0
      %3251 = vmatmul.mubr.f32.gmra.mrb[0].mxu0 %v494
      %v3252 = vpop.f32.mrb[0].mxu0
      %v3253 = vadd.f32 0.0, %v3252
      %v3254 = vpop.f32.mrb[0].mxu0
      %3255 = vmatprep.mubr.f32.mxu0 0.0
      %3256 = vmatmul.mubr.f32.gmra.mrb[0].mxu0 %v496
      %v3257 = vpop.f32.mrb[0].mxu0
      %v3258 = vpop.f32.mrb[0].mxu0
      %3259 = vmatprep.mubr.f32.mxu0 0.0
      %3260 = vmatmul.mubr.f32.gmra.mrb[0].mxu0 %v498
      %v3261 = vpop.f32.mrb[0].mxu0
      %v3262 = vadd.f32 0.0, %v3261
      %v3263 = vpop.f32.mrb[0].mxu0
      %3264 = vmatprep.mubr.f32.mxu0 0.0
      %3265 = vmatmul.mubr.f32.gmra.mrb[0].mxu0 %v500
      %v3266 = vpop.f32.mrb[0].mxu0
      %v3267 = vadd.f32 0.0, %v3266
      %v3268 = vpop.f32.mrb[0].mxu0
      %3269 = vmatprep.mubr.f32.mxu0 0.0
      %3270 = vmatmul.mubr.f32.gmra.mrb[0].mxu0 %v502
      %v3271 = vpop.f32.mrb[0].mxu0
      %v3272 = vpop.f32.mrb[0].mxu0
      %3273 = vmatprep.mubr.f32.mxu0 0.0
      %3274 = vmatmul.mubr.f32.gmra.mrb[0].mxu0 %v504
      %v3275 = vpop.f32.mrb[0].mxu0
      %v3276 = vadd.f32 0.0, %v3275
      %v3277 = vpop.f32.mrb[0].mxu0
      %3278 = vmatprep.mubr.f32.mxu0 0.0
      %3279 = vmatmul.mubr.f32.gmra.mrb[0].mxu0 %v506
      %v3280 = vpop.f32.mrb[0].mxu0
      %v3281 = vadd.f32 0.0, %v3280
      %v3282 = vpop.f32.mrb[0].mxu0
      %3283 = vmatprep.mubr.f32.mxu0 0.0
      %3284 = vmatmul.mubr.f32.gmra.mrb[0].mxu0 %v508
      %v3285 = vpop.f32.mrb[0].mxu0
      %v3286 = vpop.f32.mrb[0].mxu0
      %3287 = vmatprep.mubr.f32.mxu0 0.0
      %3288 = vmatmul.mubr.f32.gmra.mrb[0].mxu0 %v510
      %v3289 = vpop.f32.mrb[0].mxu0
      %v3290 = vadd.f32 0.0, %v3289
      %v3291 = vpop.f32.mrb[0].mxu0
      %3292 = vmatprep.mubr.f32.mxu0 0.0
      %3293 = vmatmul.mubr.f32.gmra.mrb[0].mxu0 %v512
      %v3294 = vpop.f32.mrb[0].mxu0
      %v3295 = vadd.f32 0.0, %v3294
      %v3296 = vpop.f32.mrb[0].mxu0
      %3297 = vmatprep.mubr.f32.mxu0 0.0
      %3298 = vmatmul.mubr.f32.gmra.mrb[0].mxu0 %v514
      %v3299 = vpop.f32.mrb[0].mxu0
      %v3300 = vpop.f32.mrb[0].mxu0
      %3301 = vmatprep.mubr.f32.mxu0 0.0
      %3302 = vmatmul.mubr.f32.gmra.mrb[0].mxu0 %v516
      %v3303 = vpop.f32.mrb[0].mxu0
      %v3304 = vadd.f32 0.0, %v3303
      %v3305 = vpop.f32.mrb[0].mxu0
      %3306 = vmatprep.mubr.f32.mxu0 0.0
      %3307 = vmatmul.mubr.f32.gmra.mrb[0].mxu0 %v518
      %v3308 = vpop.f32.mrb[0].mxu0
      %v3309 = vadd.f32 0.0, %v3308
      %v3310 = vpop.f32.mrb[0].mxu0
      %3311 = vmatprep.mubr.f32.mxu0 0.0
      %3312 = vmatmul.mubr.f32.gmra.mrb[0].mxu0 %v520
      %v3313 = vpop.f32.mrb[0].mxu0
      %v3314 = vpop.f32.mrb[0].mxu0
      %3315 = vmatprep.mubr.f32.mxu0 0.0
      %3316 = vmatmul.mubr.f32.gmra.mrb[0].mxu0 %v522
      %v3317 = vpop.f32.mrb[0].mxu0
      %v3318 = vadd.f32 0.0, %v3317
      %v3319 = vpop.f32.mrb[0].mxu0
      %3320 = vmatprep.mubr.f32.mxu0 0.0
      %3321 = vmatmul.mubr.f32.gmra.mrb[0].mxu0 %v524
      %v3322 = vpop.f32.mrb[0].mxu0
      %v3323 = vadd.f32 0.0, %v3322
      %v3324 = vpop.f32.mrb[0].mxu0
      %3325 = vmatprep.mubr.f32.mxu0 0.0
      %3326 = vmatmul.mubr.f32.gmra.mrb[0].mxu0 %v526
      %v3327 = vpop.f32.mrb[0].mxu0
      %v3328 = vpop.f32.mrb[0].mxu0
      %3329 = vmatprep.mubr.f32.mxu0 0.0
      %3330 = vmatmul.mubr.f32.gmra.mrb[0].mxu0 %v528
      %v3331 = vpop.f32.mrb[0].mxu0
      %v3332 = vadd.f32 0.0, %v3331
      %v3333 = vpop.f32.mrb[0].mxu0
      %3334 = vmatprep.mubr.f32.mxu0 0.0
      %3335 = vmatmul.mubr.f32.gmra.mrb[0].mxu0 %v530
      %v3336 = vpop.f32.mrb[0].mxu0
      %v3337 = vadd.f32 0.0, %v3336
      %v3338 = vpop.f32.mrb[0].mxu0
      %3339 = vmatprep.mubr.f32.mxu0 0.0
      %3340 = vmatmul.mubr.f32.gmra.mrb[0].mxu0 %v532
      %v3341 = vpop.f32.mrb[0].mxu0
      %v3342 = vpop.f32.mrb[0].mxu0
      %3343 = vmatprep.mubr.f32.mxu0 0.0
      %3344 = vmatmul.mubr.f32.gmra.mrb[0].mxu0 %v534
      %v3345 = vpop.f32.mrb[0].mxu0
      %v3346 = vadd.f32 0.0, %v3345
      %v3347 = vpop.f32.mrb[0].mxu0
      %3348 = vmatprep.mubr.f32.mxu0 0.0
      %3349 = vmatmul.mubr.f32.gmra.mrb[0].mxu0 %v536
      %v3350 = vpop.f32.mrb[0].mxu0
      %v3351 = vadd.f32 0.0, %v3350
      %v3352 = vpop.f32.mrb[0].mxu0
      %3353 = vmatprep.mubr.f32.mxu0 0.0
      %3354 = vmatmul.mubr.f32.gmra.mrb[0].mxu0 %v538
      %v3355 = vpop.f32.mrb[0].mxu0
      %v3356 = vpop.f32.mrb[0].mxu0
      %3357 = vmatprep.mubr.f32.mxu0 0.0
      %3358 = vmatmul.mubr.f32.gmra.mrb[0].mxu0 %v540
      %v3359 = vpop.f32.mrb[0].mxu0
      %v3360 = vadd.f32 0.0, %v3359
      %v3361 = vpop.f32.mrb[0].mxu0
      %3362 = vmatprep.mubr.f32.mxu0 0.0
      %3363 = vmatmul.mubr.f32.gmra.mrb[0].mxu0 %v542
      %v3364 = vpop.f32.mrb[0].mxu0
      %v3365 = vadd.f32 0.0, %v3364
      %v3366 = vpop.f32.mrb[0].mxu0
      %3367 = vmatprep.mubr.f32.mxu0 0.0
      %3368 = vmatmul.mubr.f32.gmra.mrb[0].mxu0 %v544
      %v3369 = vpop.f32.mrb[0].mxu0
      %v3370 = vpop.f32.mrb[0].mxu0
      %3371 = vmatprep.mubr.f32.mxu0 0.0
      %3372 = vmatmul.mubr.f32.gmra.mrb[0].mxu0 %v546
      %v3373 = vpop.f32.mrb[0].mxu0
      %v3374 = vadd.f32 0.0, %v3373
      %v3375 = vpop.f32.mrb[0].mxu0
      %3376 = vmatprep.mubr.f32.mxu0 0.0
      %3377 = vmatmul.mubr.f32.gmra.mrb[0].mxu0 %v548
      %v3378 = vpop.f32.mrb[0].mxu0
      %v3379 = vadd.f32 0.0, %v3378
      %v3380 = vpop.f32.mrb[0].mxu0
      %3381 = vmatprep.mubr.f32.mxu0 0.0
      %3382 = vmatmul.mubr.f32.gmra.mrb[0].mxu0 %v550
      %v3383 = vpop.f32.mrb[0].mxu0
      %v3384 = vpop.f32.mrb[0].mxu0
      %3385 = vmatprep.mubr.f32.mxu0 0.0
      %3386 = vmatmul.mubr.f32.gmra.mrb[0].mxu0 %v552
      %v3387 = vpop.f32.mrb[0].mxu0
      %v3388 = vadd.f32 0.0, %v3387
      %v3389 = vpop.f32.mrb[0].mxu0
      %3390 = vmatprep.mubr.f32.mxu0 0.0
      %3391 = vmatmul.mubr.f32.gmra.mrb[0].mxu0 %v554
      %v3392 = vpop.f32.mrb[0].mxu0
      %v3393 = vadd.f32 0.0, %v3392
      %v3394 = vpop.f32.mrb[0].mxu0
      %3395 = vmatprep.mubr.f32.mxu0 0.0
      %3396 = vmatmul.mubr.f32.gmra.mrb[0].mxu0 %v556
      %v3397 = vpop.f32.mrb[0].mxu0
      %v3398 = vpop.f32.mrb[0].mxu0
      %3399 = vmatprep.mubr.f32.mxu0 0.0
      %3400 = vmatmul.mubr.f32.gmra.mrb[0].mxu0 %v558
      %v3401 = vpop.f32.mrb[0].mxu0
      %v3402 = vadd.f32 0.0, %v3401
      %v3403 = vpop.f32.mrb[0].mxu0
      %3404 = vmatprep.mubr.f32.mxu0 0.0
      %3405 = vmatmul.mubr.f32.gmra.mrb[0].mxu0 %v560
      %v3406 = vpop.f32.mrb[0].mxu0
      %v3407 = vadd.f32 0.0, %v3406
      %v3408 = vpop.f32.mrb[0].mxu0
      %3409 = vmatprep.mubr.f32.mxu0 0.0
      %3410 = vmatmul.mubr.f32.gmra.mrb[0].mxu0 %v562
      %v3411 = vpop.f32.mrb[0].mxu0
      %v3412 = vpop.f32.mrb[0].mxu0
      %3413 = vmatprep.mubr.f32.mxu0 0.0
      %3414 = vmatmul.mubr.f32.gmra.mrb[0].mxu0 %v2122
      %v3415 = vpop.f32.mrb[0].mxu0
      %v3416 = vadd.f32 0.0, %v3415
      %v3417 = vpop.f32.mrb[0].mxu0
      %3418 = vmatprep.mubr.f32.mxu0 0.0
      %3419 = vmatmul.mubr.f32.gmra.mrb[0].mxu0 %v2124
      %v3420 = vpop.f32.mrb[0].mxu0
      %v3421 = vadd.f32 0.0, %v3420
      %v3422 = vpop.f32.mrb[0].mxu0
      %3423 = vmatprep.mubr.f32.mxu0 0.0
      %3424 = vmatmul.mubr.f32.gmra.mrb[0].mxu0 %v2126
      %v3425 = vpop.f32.mrb[0].mxu0
      %v3426 = vpop.f32.mrb[0].mxu0
      %3427 = vmatprep.mubr.f32.mxu0 0.0
      %3428 = vmatmul.mubr.f32.gmra.mrb[0].mxu0 %v2128
      %v3429 = vpop.f32.mrb[0].mxu0
      %v3430 = vadd.f32 0.0, %v3429
      %v3431 = vpop.f32.mrb[0].mxu0
      %3432 = vmatprep.mubr.f32.mxu0 0.0
      %3433 = vmatmul.mubr.f32.gmra.mrb[0].mxu0 %v2130
      %v3434 = vpop.f32.mrb[0].mxu0
      %v3435 = vadd.f32 0.0, %v3434
      %v3436 = vpop.f32.mrb[0].mxu0
      %3437 = vmatprep.mubr.f32.mxu0 0.0
      %3438 = vmatmul.mubr.f32.gmra.mrb[0].mxu0 %v2132
      %v3439 = vpop.f32.mrb[0].mxu0
      %v3440 = vpop.f32.mrb[0].mxu0
      %3441 = vmatprep.mubr.f32.mxu0 0.0
      %3442 = vmatmul.mubr.f32.gmra.mrb[0].mxu0 %v3166
      %v3443 = vpop.f32.mrb[0].mxu0
      %v3444 = vadd.f32 0.0, %v3443
      %v3445 = vpop.f32.mrb[0].mxu0
      %3446 = vmatprep.mubr.f32.mxu0 0.0
      %3447 = vmatmul.mubr.f32.gmra.mrb[0].mxu0 %v3168
      %v3448 = vpop.f32.mrb[0].mxu0
      %v3449 = vadd.f32 0.0, %v3448
      %v3450 = vpop.f32.mrb[0].mxu0
      %3451 = vmatprep.mubr.f32.mxu0 0.0
      %3452 = vmatmul.mubr.f32.gmra.mrb[0].mxu0 %v3170
      %v3453 = vpop.f32.mrb[0].mxu0
      %v3454 = vpop.f32.mrb[0].mxu0
      %3455 = vmatprep.mubr.f32.mxu0 0.0
      %3456 = vmatmul.mubr.f32.gmra.mrb[0].mxu0 %v3172
      %v3457 = vpop.f32.mrb[0].mxu0
      %v3458 = vadd.f32 0.0, %v3457
      %v3459 = vpop.f32.mrb[0].mxu0
      %3460 = vmatprep.mubr.f32.mxu0 0.0
      %3461 = vmatmul.mubr.f32.gmra.mrb[0].mxu0 %v3174
      %v3462 = vpop.f32.mrb[0].mxu0
      %v3463 = vadd.f32 0.0, %v3462
      %v3464 = vpop.f32.mrb[0].mxu0
      %3465 = vmatprep.mubr.f32.mxu0 0.0
      %3466 = vmatmul.mubr.f32.gmra.mrb[0].mxu0 %v3176
      %v3467 = vpop.f32.mrb[0].mxu0
      %v3468 = vpop.f32.mrb[0].mxu0
      %3469 = vdwg.mxu0
      %v3470 = vadd.f32 %v3119, %v3248
      %v3471 = vadd.f32 %v3120, %v3253
      %v3472 = vadd.f32 %v3121, %v3262
      %v3473 = vadd.f32 %v3122, %v3267
      %v3474 = vadd.f32 %v3123, %v3276
      %v3475 = vadd.f32 %v3124, %v3281
      %v3476 = vadd.f32 %v3125, %v3290
      %v3477 = vadd.f32 %v3126, %v3295
      %v3478 = vadd.f32 %v3127, %v3304
      %v3479 = vadd.f32 %v3128, %v3309
      %v3480 = vadd.f32 %v3129, %v3318
      %v3481 = vadd.f32 %v3130, %v3323
      %v3482 = vadd.f32 %v3131, %v3332
      %v3483 = vadd.f32 %v3132, %v3337
      %v3484 = vadd.f32 %v3133, %v3346
      %v3485 = vadd.f32 %v3134, %v3351
      %v3486 = vadd.f32 %v3135, %v3360
      %v3487 = vadd.f32 %v3136, %v3365
      %v3488 = vadd.f32 %v3137, %v3374
      %v3489 = vadd.f32 %v3138, %v3379
      %v3490 = vadd.f32 %v3139, %v3388
      %v3491 = vadd.f32 %v3140, %v3393
      %v3492 = vadd.f32 %v3141, %v3402
      %v3493 = vadd.f32 %v3142, %v3407
      %v3494 = vadd.f32 %v3143, %v3416
      %v3495 = vadd.f32 %v3144, %v3421
      %v3496 = vadd.f32 %v3145, %v3430
      %v3497 = vadd.f32 %v3146, %v3435
      %v3498 = vadd.f32 %v3147, %v3444
      %v3499 = vadd.f32 %v3148, %v3449
      %v3500 = vadd.f32 %v3149, %v3458
      %v3501 = vadd.f32 %v3150, %v3463
      %s3502 = scalar_lea.vmem %s1, 32
      %v3503 = vld [vmem:[%s3502] sm:$0xf]
      %v3504 = vrot.slane %v311, 4
      %v3505 = vsel %vm564, %v2470, %v3504
      %v3506 = vrot.slane %v312, 4
      %v3507 = vsel %vm564, %v3504, %v3506
      %v3508 = vrot.slane %v313, 4
      %v3509 = vsel %vm564, %v3506, %v3508
      %v3510 = vrot.slane %v314, 4
      %v3511 = vsel %vm564, %v3508, %v3510
      %v3512 = vrot.slane %v315, 4
      %v3513 = vsel %vm564, %v3510, %v3512
      %v3514 = vrot.slane %v316, 4
      %v3515 = vsel %vm564, %v3512, %v3514
      %v3516 = vsel %vm467, %v3505, 0
      %v3518 = vsel %vm467, %v3507, 0
      %v3520 = vsel %vm467, %v3509, 0
      %v3522 = vsel %vm467, %v3511, 0
      %v3524 = vsel %vm467, %v3513, 0
      %v3526 = vsel %vm467, %v3515, 0
      %v3529 = vsel %vm564, %v3503, 0
      %3531 = vmatprep.subr.mxu0 0.0
      %3532 = vmatpush1.msra.mxu0 %v3529
      %3533 = vmatprep.subr.mxu0 0.0
      %3534 = vmatpush1.msra.mxu0 0.0
      %3535 = vmatprep.subr.mxu0 0.0
      %3536 = vmatpush1.msra.mxu0 0.0
      %3537 = vmatprep.subr.mxu0 0.0
      %3538 = vmatpush1.msra.mxu0 0.0
      %3539 = vmatprep.subr.mxu0 0.0
      %3540 = vmatpush1.msra.mxu0 0.0
      %3541 = vmatprep.subr.mxu0 0.0
      %3542 = vmatpush1.msra.mxu0 0.0
      %3543 = vmatprep.subr.mxu0 0.0
      %3544 = vmatpush1.msra.mxu0 0.0
      %3545 = vmatprep.subr.mxu0 0.0
      %3546 = vmatpush1.msra.mxu0 0.0
      %3547 = vmatprep.subr.mxu0 0.0
      %3548 = vmatpush1.msra.mxu0 0.0
      %3549 = vmatprep.subr.mxu0 0.0
      %3550 = vmatpush1.msra.mxu0 0.0
      %3551 = vmatprep.subr.mxu0 0.0
      %3552 = vmatpush1.msra.mxu0 0.0
      %3553 = vmatprep.subr.mxu0 0.0
      %3554 = vmatpush1.msra.mxu0 0.0
      %3555 = vmatprep.subr.mxu0 0.0
      %3556 = vmatpush1.msra.mxu0 0.0
      %3557 = vmatprep.subr.mxu0 0.0
      %3558 = vmatpush1.msra.mxu0 0.0
      %3559 = vmatprep.subr.mxu0 0.0
      %3560 = vmatpush1.msra.mxu0 0.0
      %3561 = vmatprep.subr.mxu0 0.0
      %3562 = vmatpush1.msra.mxu0 0.0
      %3563 = vmatprep.subr.mxu0 0.0
      %3564 = vmatpush1.msra.mxu0 0.0
      %3565 = vmatprep.subr.mxu0 0.0
      %3566 = vmatpush1.msra.mxu0 0.0
      %3567 = vmatprep.subr.mxu0 0.0
      %3568 = vmatpush1.msra.mxu0 0.0
      %3569 = vmatprep.subr.mxu0 0.0
      %3570 = vmatpush1.msra.mxu0 0.0
      %3571 = vmatprep.subr.mxu0 0.0
      %3572 = vmatpush1.msra.mxu0 0.0
      %3573 = vmatprep.subr.mxu0 0.0
      %3574 = vmatpush1.msra.mxu0 0.0
      %3575 = vmatprep.subr.mxu0 0.0
      %3576 = vmatpush1.msra.mxu0 0.0
      %3577 = vmatprep.subr.mxu0 0.0
      %3578 = vmatpush1.msra.mxu0 0.0
      %3579 = vmatprep.subr.mxu0 0.0
      %3580 = vmatpush1.msra.mxu0 0.0
      %3581 = vmatprep.subr.mxu0 0.0
      %3582 = vmatpush1.msra.mxu0 0.0
      %3583 = vmatprep.subr.mxu0 0.0
      %3584 = vmatpush1.msra.mxu0 0.0
      %3585 = vmatprep.subr.mxu0 0.0
      %3586 = vmatpush1.msra.mxu0 0.0
      %3587 = vmatprep.subr.mxu0 0.0
      %3588 = vmatpush1.msra.mxu0 0.0
      %3589 = vmatprep.subr.mxu0 0.0
      %3590 = vmatpush1.msra.mxu0 0.0
      %3591 = vmatprep.subr.mxu0 0.0
      %3592 = vmatpush1.msra.mxu0 0.0
      %3593 = vmatprep.subr.mxu0 0.0
      %3594 = vmatpush1.msra.mxu0 0.0
      %3595 = vmatprep.mubr.f32.mxu0 0.0
      %3596 = vmatmul.mubr.f32.gmra.mrb[0].mxu0 %v1368
      %v3597 = vpop.f32.mrb[0].mxu0
      %v3598 = vadd.f32 0.0, %v3597
      %v3599 = vpop.f32.mrb[0].mxu0
      %3600 = vmatprep.mubr.f32.mxu0 0.0
      %3601 = vmatmul.mubr.f32.gmra.mrb[0].mxu0 %v1370
      %v3602 = vpop.f32.mrb[0].mxu0
      %v3603 = vadd.f32 0.0, %v3602
      %v3604 = vpop.f32.mrb[0].mxu0
      %3605 = vmatprep.mubr.f32.mxu0 0.0
      %3606 = vmatmul.mubr.f32.gmra.mrb[0].mxu0 %v1372
      %v3607 = vpop.f32.mrb[0].mxu0
      %v3608 = vpop.f32.mrb[0].mxu0
      %3609 = vmatprep.mubr.f32.mxu0 0.0
      %3610 = vmatmul.mubr.f32.gmra.mrb[0].mxu0 %v1374
      %v3611 = vpop.f32.mrb[0].mxu0
      %v3612 = vadd.f32 0.0, %v3611
      %v3613 = vpop.f32.mrb[0].mxu0
      %3614 = vmatprep.mubr.f32.mxu0 0.0
      %3615 = vmatmul.mubr.f32.gmra.mrb[0].mxu0 %v1376
      %v3616 = vpop.f32.mrb[0].mxu0
      %v3617 = vadd.f32 0.0, %v3616
      %v3618 = vpop.f32.mrb[0].mxu0
      %3619 = vmatprep.mubr.f32.mxu0 0.0
      %3620 = vmatmul.mubr.f32.gmra.mrb[0].mxu0 %v1378
      %v3621 = vpop.f32.mrb[0].mxu0
      %v3622 = vpop.f32.mrb[0].mxu0
      %3623 = vmatprep.mubr.f32.mxu0 0.0
      %3624 = vmatmul.mubr.f32.gmra.mrb[0].mxu0 %v1380
      %v3625 = vpop.f32.mrb[0].mxu0
      %v3626 = vadd.f32 0.0, %v3625
      %v3627 = vpop.f32.mrb[0].mxu0
      %3628 = vmatprep.mubr.f32.mxu0 0.0
      %3629 = vmatmul.mubr.f32.gmra.mrb[0].mxu0 %v1382
      %v3630 = vpop.f32.mrb[0].mxu0
      %v3631 = vadd.f32 0.0, %v3630
      %v3632 = vpop.f32.mrb[0].mxu0
      %3633 = vmatprep.mubr.f32.mxu0 0.0
      %3634 = vmatmul.mubr.f32.gmra.mrb[0].mxu0 %v1384
      %v3635 = vpop.f32.mrb[0].mxu0
      %v3636 = vpop.f32.mrb[0].mxu0
      %3637 = vmatprep.mubr.f32.mxu0 0.0
      %3638 = vmatmul.mubr.f32.gmra.mrb[0].mxu0 %v1386
      %v3639 = vpop.f32.mrb[0].mxu0
      %v3640 = vadd.f32 0.0, %v3639
      %v3641 = vpop.f32.mrb[0].mxu0
      %3642 = vmatprep.mubr.f32.mxu0 0.0
      %3643 = vmatmul.mubr.f32.gmra.mrb[0].mxu0 %v1388
      %v3644 = vpop.f32.mrb[0].mxu0
      %v3645 = vadd.f32 0.0, %v3644
      %v3646 = vpop.f32.mrb[0].mxu0
      %3647 = vmatprep.mubr.f32.mxu0 0.0
      %3648 = vmatmul.mubr.f32.gmra.mrb[0].mxu0 %v1390
      %v3649 = vpop.f32.mrb[0].mxu0
      %v3650 = vpop.f32.mrb[0].mxu0
      %3651 = vmatprep.mubr.f32.mxu0 0.0
      %3652 = vmatmul.mubr.f32.gmra.mrb[0].mxu0 %v1392
      %v3653 = vpop.f32.mrb[0].mxu0
      %v3654 = vadd.f32 0.0, %v3653
      %v3655 = vpop.f32.mrb[0].mxu0
      %3656 = vmatprep.mubr.f32.mxu0 0.0
      %3657 = vmatmul.mubr.f32.gmra.mrb[0].mxu0 %v1394
      %v3658 = vpop.f32.mrb[0].mxu0
      %v3659 = vadd.f32 0.0, %v3658
      %v3660 = vpop.f32.mrb[0].mxu0
      %3661 = vmatprep.mubr.f32.mxu0 0.0
      %3662 = vmatmul.mubr.f32.gmra.mrb[0].mxu0 %v1396
      %v3663 = vpop.f32.mrb[0].mxu0
      %v3664 = vpop.f32.mrb[0].mxu0
      %3665 = vmatprep.mubr.f32.mxu0 0.0
      %3666 = vmatmul.mubr.f32.gmra.mrb[0].mxu0 %v1398
      %v3667 = vpop.f32.mrb[0].mxu0
      %v3668 = vadd.f32 0.0, %v3667
      %v3669 = vpop.f32.mrb[0].mxu0
      %3670 = vmatprep.mubr.f32.mxu0 0.0
      %3671 = vmatmul.mubr.f32.gmra.mrb[0].mxu0 %v1400
      %v3672 = vpop.f32.mrb[0].mxu0
      %v3673 = vadd.f32 0.0, %v3672
      %v3674 = vpop.f32.mrb[0].mxu0
      %3675 = vmatprep.mubr.f32.mxu0 0.0
      %3676 = vmatmul.mubr.f32.gmra.mrb[0].mxu0 %v1402
      %v3677 = vpop.f32.mrb[0].mxu0
      %v3678 = vpop.f32.mrb[0].mxu0
      %3679 = vmatprep.mubr.f32.mxu0 0.0
      %3680 = vmatmul.mubr.f32.gmra.mrb[0].mxu0 %v1404
      %v3681 = vpop.f32.mrb[0].mxu0
      %v3682 = vadd.f32 0.0, %v3681
      %v3683 = vpop.f32.mrb[0].mxu0
      %3684 = vmatprep.mubr.f32.mxu0 0.0
      %3685 = vmatmul.mubr.f32.gmra.mrb[0].mxu0 %v1406
      %v3686 = vpop.f32.mrb[0].mxu0
      %v3687 = vadd.f32 0.0, %v3686
      %v3688 = vpop.f32.mrb[0].mxu0
      %3689 = vmatprep.mubr.f32.mxu0 0.0
      %3690 = vmatmul.mubr.f32.gmra.mrb[0].mxu0 %v1408
      %v3691 = vpop.f32.mrb[0].mxu0
      %v3692 = vpop.f32.mrb[0].mxu0
      %3693 = vmatprep.mubr.f32.mxu0 0.0
      %3694 = vmatmul.mubr.f32.gmra.mrb[0].mxu0 %v1410
      %v3695 = vpop.f32.mrb[0].mxu0
      %v3696 = vadd.f32 0.0, %v3695
      %v3697 = vpop.f32.mrb[0].mxu0
      %3698 = vmatprep.mubr.f32.mxu0 0.0
      %3699 = vmatmul.mubr.f32.gmra.mrb[0].mxu0 %v1412
      %v3700 = vpop.f32.mrb[0].mxu0
      %v3701 = vadd.f32 0.0, %v3700
      %v3702 = vpop.f32.mrb[0].mxu0
      %3703 = vmatprep.mubr.f32.mxu0 0.0
      %3704 = vmatmul.mubr.f32.gmra.mrb[0].mxu0 %v1414
      %v3705 = vpop.f32.mrb[0].mxu0
      %v3706 = vpop.f32.mrb[0].mxu0
      %3707 = vmatprep.mubr.f32.mxu0 0.0
      %3708 = vmatmul.mubr.f32.gmra.mrb[0].mxu0 %v1416
      %v3709 = vpop.f32.mrb[0].mxu0
      %v3710 = vadd.f32 0.0, %v3709
      %v3711 = vpop.f32.mrb[0].mxu0
      %3712 = vmatprep.mubr.f32.mxu0 0.0
      %3713 = vmatmul.mubr.f32.gmra.mrb[0].mxu0 %v1418
      %v3714 = vpop.f32.mrb[0].mxu0
      %v3715 = vadd.f32 0.0, %v3714
      %v3716 = vpop.f32.mrb[0].mxu0
      %3717 = vmatprep.mubr.f32.mxu0 0.0
      %3718 = vmatmul.mubr.f32.gmra.mrb[0].mxu0 %v1420
      %v3719 = vpop.f32.mrb[0].mxu0
      %v3720 = vpop.f32.mrb[0].mxu0
      %3721 = vmatprep.mubr.f32.mxu0 0.0
      %3722 = vmatmul.mubr.f32.gmra.mrb[0].mxu0 %v1422
      %v3723 = vpop.f32.mrb[0].mxu0
      %v3724 = vadd.f32 0.0, %v3723
      %v3725 = vpop.f32.mrb[0].mxu0
      %3726 = vmatprep.mubr.f32.mxu0 0.0
      %3727 = vmatmul.mubr.f32.gmra.mrb[0].mxu0 %v1424
      %v3728 = vpop.f32.mrb[0].mxu0
      %v3729 = vadd.f32 0.0, %v3728
      %v3730 = vpop.f32.mrb[0].mxu0
      %3731 = vmatprep.mubr.f32.mxu0 0.0
      %3732 = vmatmul.mubr.f32.gmra.mrb[0].mxu0 %v1426
      %v3733 = vpop.f32.mrb[0].mxu0
      %v3734 = vpop.f32.mrb[0].mxu0
      %3735 = vmatprep.mubr.f32.mxu0 0.0
      %3736 = vmatmul.mubr.f32.gmra.mrb[0].mxu0 %v1428
      %v3737 = vpop.f32.mrb[0].mxu0
      %v3738 = vadd.f32 0.0, %v3737
      %v3739 = vpop.f32.mrb[0].mxu0
      %3740 = vmatprep.mubr.f32.mxu0 0.0
      %3741 = vmatmul.mubr.f32.gmra.mrb[0].mxu0 %v1430
      %v3742 = vpop.f32.mrb[0].mxu0
      %v3743 = vadd.f32 0.0, %v3742
      %v3744 = vpop.f32.mrb[0].mxu0
      %3745 = vmatprep.mubr.f32.mxu0 0.0
      %3746 = vmatmul.mubr.f32.gmra.mrb[0].mxu0 %v1432
      %v3747 = vpop.f32.mrb[0].mxu0
      %v3748 = vpop.f32.mrb[0].mxu0
      %3749 = vmatprep.mubr.f32.mxu0 0.0
      %3750 = vmatmul.mubr.f32.gmra.mrb[0].mxu0 %v1434
      %v3751 = vpop.f32.mrb[0].mxu0
      %v3752 = vadd.f32 0.0, %v3751
      %v3753 = vpop.f32.mrb[0].mxu0
      %3754 = vmatprep.mubr.f32.mxu0 0.0
      %3755 = vmatmul.mubr.f32.gmra.mrb[0].mxu0 %v1436
      %v3756 = vpop.f32.mrb[0].mxu0
      %v3757 = vadd.f32 0.0, %v3756
      %v3758 = vpop.f32.mrb[0].mxu0
      %3759 = vmatprep.mubr.f32.mxu0 0.0
      %3760 = vmatmul.mubr.f32.gmra.mrb[0].mxu0 %v1438
      %v3761 = vpop.f32.mrb[0].mxu0
      %v3762 = vpop.f32.mrb[0].mxu0
      %3763 = vmatprep.mubr.f32.mxu0 0.0
      %3764 = vmatmul.mubr.f32.gmra.mrb[0].mxu0 %v2472
      %v3765 = vpop.f32.mrb[0].mxu0
      %v3766 = vadd.f32 0.0, %v3765
      %v3767 = vpop.f32.mrb[0].mxu0
      %3768 = vmatprep.mubr.f32.mxu0 0.0
      %3769 = vmatmul.mubr.f32.gmra.mrb[0].mxu0 %v2474
      %v3770 = vpop.f32.mrb[0].mxu0
      %v3771 = vadd.f32 0.0, %v3770
      %v3772 = vpop.f32.mrb[0].mxu0
      %3773 = vmatprep.mubr.f32.mxu0 0.0
      %3774 = vmatmul.mubr.f32.gmra.mrb[0].mxu0 %v2476
      %v3775 = vpop.f32.mrb[0].mxu0
      %v3776 = vpop.f32.mrb[0].mxu0
      %3777 = vmatprep.mubr.f32.mxu0 0.0
      %3778 = vmatmul.mubr.f32.gmra.mrb[0].mxu0 %v2478
      %v3779 = vpop.f32.mrb[0].mxu0
      %v3780 = vadd.f32 0.0, %v3779
      %v3781 = vpop.f32.mrb[0].mxu0
      %3782 = vmatprep.mubr.f32.mxu0 0.0
      %3783 = vmatmul.mubr.f32.gmra.mrb[0].mxu0 %v2480
      %v3784 = vpop.f32.mrb[0].mxu0
      %v3785 = vadd.f32 0.0, %v3784
      %v3786 = vpop.f32.mrb[0].mxu0
      %3787 = vmatprep.mubr.f32.mxu0 0.0
      %3788 = vmatmul.mubr.f32.gmra.mrb[0].mxu0 %v2482
      %v3789 = vpop.f32.mrb[0].mxu0
      %v3790 = vpop.f32.mrb[0].mxu0
      %3791 = vmatprep.mubr.f32.mxu0 0.0
      %3792 = vmatmul.mubr.f32.gmra.mrb[0].mxu0 %v3516
      %v3793 = vpop.f32.mrb[0].mxu0
      %v3794 = vadd.f32 0.0, %v3793
      %v3795 = vpop.f32.mrb[0].mxu0
      %3796 = vmatprep.mubr.f32.mxu0 0.0
      %3797 = vmatmul.mubr.f32.gmra.mrb[0].mxu0 %v3518
      %v3798 = vpop.f32.mrb[0].mxu0
      %v3799 = vadd.f32 0.0, %v3798
      %v3800 = vpop.f32.mrb[0].mxu0
      %3801 = vmatprep.mubr.f32.mxu0 0.0
      %3802 = vmatmul.mubr.f32.gmra.mrb[0].mxu0 %v3520
      %v3803 = vpop.f32.mrb[0].mxu0
      %v3804 = vpop.f32.mrb[0].mxu0
      %3805 = vmatprep.mubr.f32.mxu0 0.0
      %3806 = vmatmul.mubr.f32.gmra.mrb[0].mxu0 %v3522
      %v3807 = vpop.f32.mrb[0].mxu0
      %v3808 = vadd.f32 0.0, %v3807
      %v3809 = vpop.f32.mrb[0].mxu0
      %3810 = vmatprep.mubr.f32.mxu0 0.0
      %3811 = vmatmul.mubr.f32.gmra.mrb[0].mxu0 %v3524
      %v3812 = vpop.f32.mrb[0].mxu0
      %v3813 = vadd.f32 0.0, %v3812
      %v3814 = vpop.f32.mrb[0].mxu0
      %3815 = vmatprep.mubr.f32.mxu0 0.0
      %3816 = vmatmul.mubr.f32.gmra.mrb[0].mxu0 %v3526
      %v3817 = vpop.f32.mrb[0].mxu0
      %v3818 = vpop.f32.mrb[0].mxu0
      %3819 = vdwg.mxu0
      %v3820 = vadd.f32 %v3470, %v3598
      %v3821 = vadd.f32 %v3471, %v3603
      %v3822 = vadd.f32 %v3472, %v3612
      %v3823 = vadd.f32 %v3473, %v3617
      %v3824 = vadd.f32 %v3474, %v3626
      %v3825 = vadd.f32 %v3475, %v3631
      %v3826 = vadd.f32 %v3476, %v3640
      %v3827 = vadd.f32 %v3477, %v3645
      %v3828 = vadd.f32 %v3478, %v3654
      %v3829 = vadd.f32 %v3479, %v3659
      %v3830 = vadd.f32 %v3480, %v3668
      %v3831 = vadd.f32 %v3481, %v3673
      %v3832 = vadd.f32 %v3482, %v3682
      %v3833 = vadd.f32 %v3483, %v3687
      %v3834 = vadd.f32 %v3484, %v3696
      %v3835 = vadd.f32 %v3485, %v3701
      %v3836 = vadd.f32 %v3486, %v3710
      %v3837 = vadd.f32 %v3487, %v3715
      %v3838 = vadd.f32 %v3488, %v3724
      %v3839 = vadd.f32 %v3489, %v3729
      %v3840 = vadd.f32 %v3490, %v3738
      %v3841 = vadd.f32 %v3491, %v3743
      %v3842 = vadd.f32 %v3492, %v3752
      %v3843 = vadd.f32 %v3493, %v3757
      %v3844 = vadd.f32 %v3494, %v3766
      %v3845 = vadd.f32 %v3495, %v3771
      %v3846 = vadd.f32 %v3496, %v3780
      %v3847 = vadd.f32 %v3497, %v3785
      %v3848 = vadd.f32 %v3498, %v3794
      %v3849 = vadd.f32 %v3499, %v3799
      %v3850 = vadd.f32 %v3500, %v3808
      %v3851 = vadd.f32 %v3501, %v3813
      %v3852 = vld [vmem:[%s2] sm:$0x1]
      %v3854 = vlaneseq
      %v3855 = vshrl.u32 %v3854, 7
      %v3856 = vsub.s32 0, %v3855
      %v3857 = vrot.slane %v3852, %v3856
      %v3859 = vadd.f32 %v3820, %v3857
      %v3860 = vadd.f32 %v3821, %v3857
      %v3861 = vadd.f32 %v3822, %v3857
      %v3862 = vadd.f32 %v3823, %v3857
      %v3863 = vadd.f32 %v3824, %v3857
      %v3864 = vadd.f32 %v3825, %v3857
      %v3865 = vadd.f32 %v3826, %v3857
      %v3866 = vadd.f32 %v3827, %v3857
      %v3867 = vadd.f32 %v3828, %v3857
      %v3868 = vadd.f32 %v3829, %v3857
      %v3869 = vadd.f32 %v3830, %v3857
      %v3870 = vadd.f32 %v3831, %v3857
      %v3871 = vadd.f32 %v3832, %v3857
      %v3872 = vadd.f32 %v3833, %v3857
      %v3873 = vadd.f32 %v3834, %v3857
      %v3874 = vadd.f32 %v3835, %v3857
      %v3875 = vadd.f32 %v3836, %v3857
      %v3876 = vadd.f32 %v3837, %v3857
      %v3877 = vadd.f32 %v3838, %v3857
      %v3878 = vadd.f32 %v3839, %v3857
      %v3879 = vadd.f32 %v3840, %v3857
      %v3880 = vadd.f32 %v3841, %v3857
      %v3881 = vadd.f32 %v3842, %v3857
      %v3882 = vadd.f32 %v3843, %v3857
      %v3883 = vadd.f32 %v3844, %v3857
      %v3884 = vadd.f32 %v3845, %v3857
      %v3885 = vadd.f32 %v3846, %v3857
      %v3886 = vadd.f32 %v3847, %v3857
      %v3887 = vadd.f32 %v3848, %v3857
      %v3888 = vadd.f32 %v3849, %v3857
      %v3889 = vadd.f32 %v3850, %v3857
      %v3890 = vadd.f32 %v3851, %v3857
      %v3891 = vxor.u32 %v3859, 2147483648
      %v3892 = vxor.u32 %v3860, 2147483648
      %v3893 = vxor.u32 %v3861, 2147483648
      %v3894 = vxor.u32 %v3862, 2147483648
      %v3895 = vxor.u32 %v3863, 2147483648
      %v3896 = vxor.u32 %v3864, 2147483648
      %v3897 = vxor.u32 %v3865, 2147483648
      %v3898 = vxor.u32 %v3866, 2147483648
      %v3899 = vxor.u32 %v3867, 2147483648
      %v3900 = vxor.u32 %v3868, 2147483648
      %v3901 = vxor.u32 %v3869, 2147483648
      %v3902 = vxor.u32 %v3870, 2147483648
      %v3903 = vxor.u32 %v3871, 2147483648
      %v3904 = vxor.u32 %v3872, 2147483648
      %v3905 = vxor.u32 %v3873, 2147483648
      %v3906 = vxor.u32 %v3874, 2147483648
      %v3907 = vxor.u32 %v3875, 2147483648
      %v3908 = vxor.u32 %v3876, 2147483648
      %v3909 = vxor.u32 %v3877, 2147483648
      %v3910 = vxor.u32 %v3878, 2147483648
      %v3911 = vxor.u32 %v3879, 2147483648
      %v3912 = vxor.u32 %v3880, 2147483648
      %v3913 = vxor.u32 %v3881, 2147483648
      %v3914 = vxor.u32 %v3882, 2147483648
      %v3915 = vxor.u32 %v3883, 2147483648
      %v3916 = vxor.u32 %v3884, 2147483648
      %v3917 = vxor.u32 %v3885, 2147483648
      %v3918 = vxor.u32 %v3886, 2147483648
      %v3919 = vxor.u32 %v3887, 2147483648
      %v3920 = vxor.u32 %v3888, 2147483648
      %v3921 = vxor.u32 %v3889, 2147483648
      %v3922 = vxor.u32 %v3890, 2147483648
      %v3923 = vmul.f32 %v3891, 1.442695
      %v3924 = vpow.pop %v3923
      %v3925 = vmul.f32 %v3892, 1.442695
      %v3926 = vpow.pop %v3925
      %v3927 = vmul.f32 %v3893, 1.442695
      %v3928 = vpow.pop %v3927
      %v3929 = vmul.f32 %v3894, 1.442695
      %v3930 = vpow.pop %v3929
      %v3931 = vmul.f32 %v3895, 1.442695
      %v3932 = vpow.pop %v3931
      %v3933 = vmul.f32 %v3896, 1.442695
      %v3934 = vpow.pop %v3933
      %v3935 = vmul.f32 %v3897, 1.442695
      %v3936 = vpow.pop %v3935
      %v3937 = vmul.f32 %v3898, 1.442695
      %v3938 = vpow.pop %v3937
      %v3939 = vmul.f32 %v3899, 1.442695
      %v3940 = vpow.pop %v3939
      %v3941 = vmul.f32 %v3900, 1.442695
      %v3942 = vpow.pop %v3941
      %v3943 = vmul.f32 %v3901, 1.442695
      %v3944 = vpow.pop %v3943
      %v3945 = vmul.f32 %v3902, 1.442695
      %v3946 = vpow.pop %v3945
      %v3947 = vmul.f32 %v3903, 1.442695
      %v3948 = vpow.pop %v3947
      %v3949 = vmul.f32 %v3904, 1.442695
      %v3950 = vpow.pop %v3949
      %v3951 = vmul.f32 %v3905, 1.442695
      %v3952 = vpow.pop %v3951
      %v3953 = vmul.f32 %v3906, 1.442695
      %v3954 = vpow.pop %v3953
      %v3955 = vmul.f32 %v3907, 1.442695
      %v3956 = vpow.pop %v3955
      %v3957 = vmul.f32 %v3908, 1.442695
      %v3958 = vpow.pop %v3957
      %v3959 = vmul.f32 %v3909, 1.442695
      %v3960 = vpow.pop %v3959
      %v3961 = vmul.f32 %v3910, 1.442695
      %v3962 = vpow.pop %v3961
      %v3963 = vmul.f32 %v3911, 1.442695
      %v3964 = vpow.pop %v3963
      %v3965 = vmul.f32 %v3912, 1.442695
      %v3966 = vpow.pop %v3965
      %v3967 = vmul.f32 %v3913, 1.442695
      %v3968 = vpow.pop %v3967
      %v3969 = vmul.f32 %v3914, 1.442695
      %v3970 = vpow.pop %v3969
      %v3971 = vmul.f32 %v3915, 1.442695
      %v3972 = vpow.pop %v3971
      %v3973 = vmul.f32 %v3916, 1.442695
      %v3974 = vpow.pop %v3973
      %v3975 = vmul.f32 %v3917, 1.442695
      %v3976 = vpow.pop %v3975
      %v3977 = vmul.f32 %v3918, 1.442695
      %v3978 = vpow.pop %v3977
      %v3979 = vmul.f32 %v3919, 1.442695
      %v3980 = vpow.pop %v3979
      %v3981 = vmul.f32 %v3920, 1.442695
      %v3982 = vpow.pop %v3981
      %v3983 = vmul.f32 %v3921, 1.442695
      %v3984 = vpow.pop %v3983
      %v3985 = vmul.f32 %v3922, 1.442695
      %v3986 = vpow.pop %v3985
      %v3987 = vadd.f32 %v3924, 1.0
      %v3988 = vadd.f32 %v3926, 1.0
      %v3989 = vadd.f32 %v3928, 1.0
      %v3990 = vadd.f32 %v3930, 1.0
      %v3991 = vadd.f32 %v3932, 1.0
      %v3992 = vadd.f32 %v3934, 1.0
      %v3993 = vadd.f32 %v3936, 1.0
      %v3994 = vadd.f32 %v3938, 1.0
      %v3995 = vadd.f32 %v3940, 1.0
      %v3996 = vadd.f32 %v3942, 1.0
      %v3997 = vadd.f32 %v3944, 1.0
      %v3998 = vadd.f32 %v3946, 1.0
      %v3999 = vadd.f32 %v3948, 1.0
      %v4000 = vadd.f32 %v3950, 1.0
      %v4001 = vadd.f32 %v3952, 1.0
      %v4002 = vadd.f32 %v3954, 1.0
      %v4003 = vadd.f32 %v3956, 1.0
      %v4004 = vadd.f32 %v3958, 1.0
      %v4005 = vadd.f32 %v3960, 1.0
      %v4006 = vadd.f32 %v3962, 1.0
      %v4007 = vadd.f32 %v3964, 1.0
      %v4008 = vadd.f32 %v3966, 1.0
      %v4009 = vadd.f32 %v3968, 1.0
      %v4010 = vadd.f32 %v3970, 1.0
      %v4011 = vadd.f32 %v3972, 1.0
      %v4012 = vadd.f32 %v3974, 1.0
      %v4013 = vadd.f32 %v3976, 1.0
      %v4014 = vadd.f32 %v3978, 1.0
      %v4015 = vadd.f32 %v3980, 1.0
      %v4016 = vadd.f32 %v3982, 1.0
      %v4017 = vadd.f32 %v3984, 1.0
      %v4018 = vadd.f32 %v3986, 1.0
      %v4019 = vrcp.pop %v3987
      %v4020 = vmul.f32 1.0, %v4019
      %v4021 = vrcp.pop %v3988
      %v4022 = vmul.f32 1.0, %v4021
      %v4023 = vrcp.pop %v3989
      %v4024 = vmul.f32 1.0, %v4023
      %v4025 = vrcp.pop %v3990
      %v4026 = vmul.f32 1.0, %v4025
      %v4027 = vrcp.pop %v3991
      %v4028 = vmul.f32 1.0, %v4027
      %v4029 = vrcp.pop %v3992
      %v4030 = vmul.f32 1.0, %v4029
      %v4031 = vrcp.pop %v3993
      %v4032 = vmul.f32 1.0, %v4031
      %v4033 = vrcp.pop %v3994
      %v4034 = vmul.f32 1.0, %v4033
      %v4035 = vrcp.pop %v3995
      %v4036 = vmul.f32 1.0, %v4035
      %v4037 = vrcp.pop %v3996
      %v4038 = vmul.f32 1.0, %v4037
      %v4039 = vrcp.pop %v3997
      %v4040 = vmul.f32 1.0, %v4039
      %v4041 = vrcp.pop %v3998
      %v4042 = vmul.f32 1.0, %v4041
      %v4043 = vrcp.pop %v3999
      %v4044 = vmul.f32 1.0, %v4043
      %v4045 = vrcp.pop %v4000
      %v4046 = vmul.f32 1.0, %v4045
      %v4047 = vrcp.pop %v4001
      %v4048 = vmul.f32 1.0, %v4047
      %v4049 = vrcp.pop %v4002
      %v4050 = vmul.f32 1.0, %v4049
      %v4051 = vrcp.pop %v4003
      %v4052 = vmul.f32 1.0, %v4051
      %v4053 = vrcp.pop %v4004
      %v4054 = vmul.f32 1.0, %v4053
      %v4055 = vrcp.pop %v4005
      %v4056 = vmul.f32 1.0, %v4055
      %v4057 = vrcp.pop %v4006
      %v4058 = vmul.f32 1.0, %v4057
      %v4059 = vrcp.pop %v4007
      %v4060 = vmul.f32 1.0, %v4059
      %v4061 = vrcp.pop %v4008
      %v4062 = vmul.f32 1.0, %v4061
      %v4063 = vrcp.pop %v4009
      %v4064 = vmul.f32 1.0, %v4063
      %v4065 = vrcp.pop %v4010
      %v4066 = vmul.f32 1.0, %v4065
      %v4067 = vrcp.pop %v4011
      %v4068 = vmul.f32 1.0, %v4067
      %v4069 = vrcp.pop %v4012
      %v4070 = vmul.f32 1.0, %v4069
      %v4071 = vrcp.pop %v4013
      %v4072 = vmul.f32 1.0, %v4071
      %v4073 = vrcp.pop %v4014
      %v4074 = vmul.f32 1.0, %v4073
      %v4075 = vrcp.pop %v4015
      %v4076 = vmul.f32 1.0, %v4075
      %v4077 = vrcp.pop %v4016
      %v4078 = vmul.f32 1.0, %v4077
      %v4079 = vrcp.pop %v4017
      %v4080 = vmul.f32 1.0, %v4079
      %v4081 = vrcp.pop %v4018
      %v4082 = vmul.f32 1.0, %v4081
      %v4115 = vmul.f32 %v4020, %v384
      %v4116 = vmul.f32 %v4022, %v386
      %v4117 = vmul.f32 %v4024, %v390
      %v4118 = vmul.f32 %v4026, %v392
      %v4119 = vmul.f32 %v4028, %v396
      %v4120 = vmul.f32 %v4030, %v398
      %v4121 = vmul.f32 %v4032, %v402
      %v4122 = vmul.f32 %v4034, %v404
      %v4123 = vmul.f32 %v4036, %v408
      %v4124 = vmul.f32 %v4038, %v410
      %v4125 = vmul.f32 %v4040, %v414
      %v4126 = vmul.f32 %v4042, %v416
      %v4127 = vmul.f32 %v4044, %v420
      %v4128 = vmul.f32 %v4046, %v422
      %v4129 = vmul.f32 %v4048, %v426
      %v4130 = vmul.f32 %v4050, %v428
      %v4131 = vmul.f32 %v4052, %v432
      %v4132 = vmul.f32 %v4054, %v434
      %v4133 = vmul.f32 %v4056, %v438
      %v4134 = vmul.f32 %v4058, %v440
      %v4135 = vmul.f32 %v4060, %v444
      %v4136 = vmul.f32 %v4062, %v446
      %v4137 = vmul.f32 %v4064, %v450
      %v4138 = vmul.f32 %v4066, %v452
      %v4139 = vmul.f32 %v4068, %v456
      %v4140 = vmul.f32 %v4070, %v458
      %v4141 = vmul.f32 %v4072, %v462
      %v4142 = vmul.f32 %v4074, %v464
      %v4143 = vmul.f32 %v4076, %v2111
      %v4144 = vmul.f32 %v4078, %v2113
      %v4145 = vmul.f32 %v4080, %v2117
      %v4146 = vmul.f32 %v4082, %v2119
      %v4147 = vmul.f32 %v4115, %v384
      %v4148 = vmul.f32 %v4116, %v386
      %v4149 = vmul.f32 %v4117, %v390
      %v4150 = vmul.f32 %v4118, %v392
      %v4151 = vmul.f32 %v4119, %v396
      %v4152 = vmul.f32 %v4120, %v398
      %v4153 = vmul.f32 %v4121, %v402
      %v4154 = vmul.f32 %v4122, %v404
      %v4155 = vmul.f32 %v4123, %v408
      %v4156 = vmul.f32 %v4124, %v410
      %v4157 = vmul.f32 %v4125, %v414
      %v4158 = vmul.f32 %v4126, %v416
      %v4159 = vmul.f32 %v4127, %v420
      %v4160 = vmul.f32 %v4128, %v422
      %v4161 = vmul.f32 %v4129, %v426
      %v4162 = vmul.f32 %v4130, %v428
      %v4163 = vmul.f32 %v4131, %v432
      %v4164 = vmul.f32 %v4132, %v434
      %v4165 = vmul.f32 %v4133, %v438
      %v4166 = vmul.f32 %v4134, %v440
      %v4167 = vmul.f32 %v4135, %v444
      %v4168 = vmul.f32 %v4136, %v446
      %v4169 = vmul.f32 %v4137, %v450
      %v4170 = vmul.f32 %v4138, %v452
      %v4171 = vmul.f32 %v4139, %v456
      %v4172 = vmul.f32 %v4140, %v458
      %v4173 = vmul.f32 %v4141, %v462
      %v4174 = vmul.f32 %v4142, %v464
      %v4175 = vmul.f32 %v4143, %v2111
      %v4176 = vmul.f32 %v4144, %v2113
      %v4177 = vmul.f32 %v4145, %v2117
      %v4178 = vmul.f32 %v4146, %v2119
      %4179 = vst.msk [vmem:[%s243] sm:$0xff] %vm467, %v4115
      %4180 = vst.msk [vmem:[%s243 + $0x8] sm:$0xff] %vm467, %v4116
      %4181 = vst.msk [vmem:[%s243 + $0x10] sm:$0xff] %vm467, %v4117
      %4182 = vst.msk [vmem:[%s243 + $0x18] sm:$0xff] %vm467, %v4118
      %4183 = vst.msk [vmem:[%s243 + $0x20] sm:$0xff] %vm467, %v4119
      %4184 = vst.msk [vmem:[%s243 + $0x28] sm:$0xff] %vm467, %v4120
      %4185 = vst.msk [vmem:[%s243 + $0x30] sm:$0xff] %vm467, %v4121
      %4186 = vst.msk [vmem:[%s243 + $0x38] sm:$0xff] %vm467, %v4122
      %4187 = vst.msk [vmem:[%s243 + $0x40] sm:$0xff] %vm467, %v4123
      %4188 = vst.msk [vmem:[%s243 + $0x48] sm:$0xff] %vm467, %v4124
      %4189 = vst.msk [vmem:[%s243 + $0x50] sm:$0xff] %vm467, %v4125
      %4190 = vst.msk [vmem:[%s243 + $0x58] sm:$0xff] %vm467, %v4126
      %4191 = vst.msk [vmem:[%s243 + $0x60] sm:$0xff] %vm467, %v4127
      %4192 = vst.msk [vmem:[%s243 + $0x68] sm:$0xff] %vm467, %v4128
      %4193 = vst.msk [vmem:[%s243 + $0x70] sm:$0xff] %vm467, %v4129
      %4194 = vst.msk [vmem:[%s243 + $0x78] sm:$0xff] %vm467, %v4130
      %4195 = vst.msk [vmem:[%s243 + $0x80] sm:$0xff] %vm467, %v4131
      %4196 = vst.msk [vmem:[%s243 + $0x88] sm:$0xff] %vm467, %v4132
      %4197 = vst.msk [vmem:[%s243 + $0x90] sm:$0xff] %vm467, %v4133
      %4198 = vst.msk [vmem:[%s243 + $0x98] sm:$0xff] %vm467, %v4134
      %4199 = vst.msk [vmem:[%s243 + $0xa0] sm:$0xff] %vm467, %v4135
      %4200 = vst.msk [vmem:[%s243 + $0xa8] sm:$0xff] %vm467, %v4136
      %4201 = vst.msk [vmem:[%s243 + $0xb0] sm:$0xff] %vm467, %v4137
      %4202 = vst.msk [vmem:[%s243 + $0xb8] sm:$0xff] %vm467, %v4138
      %4203 = vst.msk [vmem:[%s243 + $0xc0] sm:$0xff] %vm467, %v4139
      %4204 = vst.msk [vmem:[%s243 + $0xc8] sm:$0xff] %vm467, %v4140
      %4205 = vst.msk [vmem:[%s243 + $0xd0] sm:$0xff] %vm467, %v4141
      %4206 = vst.msk [vmem:[%s243 + $0xd8] sm:$0xff] %vm467, %v4142
      %4207 = vst.msk [vmem:[%s243 + $0xe0] sm:$0xff] %vm467, %v4143
      %4208 = vst.msk [vmem:[%s243 + $0xe8] sm:$0xff] %vm467, %v4144
      %4209 = vst.msk [vmem:[%s243 + $0xf0] sm:$0xff] %vm467, %v4145
      %4210 = vst.msk [vmem:[%s243 + $0xf8] sm:$0xff] %vm467, %v4146
      %4211 = vst.msk [vmem:[%s254] sm:$0xff] %vm467, %v4147
      %4212 = vst.msk [vmem:[%s254 + $0x8] sm:$0xff] %vm467, %v4148
      %4213 = vst.msk [vmem:[%s254 + $0x10] sm:$0xff] %vm467, %v4149
      %4214 = vst.msk [vmem:[%s254 + $0x18] sm:$0xff] %vm467, %v4150
      %4215 = vst.msk [vmem:[%s254 + $0x20] sm:$0xff] %vm467, %v4151
      %4216 = vst.msk [vmem:[%s254 + $0x28] sm:$0xff] %vm467, %v4152
      %4217 = vst.msk [vmem:[%s254 + $0x30] sm:$0xff] %vm467, %v4153
      %4218 = vst.msk [vmem:[%s254 + $0x38] sm:$0xff] %vm467, %v4154
      %4219 = vst.msk [vmem:[%s254 + $0x40] sm:$0xff] %vm467, %v4155
      %4220 = vst.msk [vmem:[%s254 + $0x48] sm:$0xff] %vm467, %v4156
      %4221 = vst.msk [vmem:[%s254 + $0x50] sm:$0xff] %vm467, %v4157
      %4222 = vst.msk [vmem:[%s254 + $0x58] sm:$0xff] %vm467, %v4158
      %4223 = vst.msk [vmem:[%s254 + $0x60] sm:$0xff] %vm467, %v4159
      %4224 = vst.msk [vmem:[%s254 + $0x68] sm:$0xff] %vm467, %v4160
      %4225 = vst.msk [vmem:[%s254 + $0x70] sm:$0xff] %vm467, %v4161
      %4226 = vst.msk [vmem:[%s254 + $0x78] sm:$0xff] %vm467, %v4162
      %4227 = vst.msk [vmem:[%s254 + $0x80] sm:$0xff] %vm467, %v4163
      %4228 = vst.msk [vmem:[%s254 + $0x88] sm:$0xff] %vm467, %v4164
      %4229 = vst.msk [vmem:[%s254 + $0x90] sm:$0xff] %vm467, %v4165
      %4230 = vst.msk [vmem:[%s254 + $0x98] sm:$0xff] %vm467, %v4166
      %4231 = vst.msk [vmem:[%s254 + $0xa0] sm:$0xff] %vm467, %v4167
      %4232 = vst.msk [vmem:[%s254 + $0xa8] sm:$0xff] %vm467, %v4168
      %4233 = vst.msk [vmem:[%s254 + $0xb0] sm:$0xff] %vm467, %v4169
      %4234 = vst.msk [vmem:[%s254 + $0xb8] sm:$0xff] %vm467, %v4170
      %4235 = vst.msk [vmem:[%s254 + $0xc0] sm:$0xff] %vm467, %v4171
      %4236 = vst.msk [vmem:[%s254 + $0xc8] sm:$0xff] %vm467, %v4172
      %4237 = vst.msk [vmem:[%s254 + $0xd0] sm:$0xff] %vm467, %v4173
      %4238 = vst.msk [vmem:[%s254 + $0xd8] sm:$0xff] %vm467, %v4174
      %4239 = vst.msk [vmem:[%s254 + $0xe0] sm:$0xff] %vm467, %v4175
      %4240 = vst.msk [vmem:[%s254 + $0xe8] sm:$0xff] %vm467, %v4176
      %4241 = vst.msk [vmem:[%s254 + $0xf0] sm:$0xff] %vm467, %v4177
      %4242 = vst.msk [vmem:[%s254 + $0xf8] sm:$0xff] %vm467, %v4178
      %s4243 = smul.u32 16, %s21
      %p4244 = scmp.lt.s32.totalorder %s20, 1
      %s4245 = scalar_select %p4244, %s20, 1
      %p4246 = scmp.lt.s32.totalorder %s4243, 15
      %s4247 = scalar_select %p4246, %s4243, 15
      %s4248 = smul.addr %s4247, 2
      %s4249 = smul.addr %s4245, 32
      %s4250 = sadd.s32 %s4248, %s4249
      %s4251 = smul.addr %s4250, 8
      %s4252 = scalar_lea.vmem %s3, %s4251
      %s4253 = smul.u32 16, %s21
      %p4254 = scmp.lt.s32.totalorder %s20, 1
      %s4255 = scalar_select %p4254, %s20, 1
      %p4256 = scmp.lt.s32.totalorder %s4253, 15
      %s4257 = scalar_select %p4256, %s4253, 15
      %s4258 = smul.addr %s4257, 2
      %s4259 = smul.addr %s4255, 32
      %s4260 = sadd.s32 %s4258, %s4259
      %s4261 = smul.addr %s4260, 8
      %s4262 = scalar_lea.vmem %s4, %s4261
      // Predicated region
      $region33: #{tpu_custom_call.1} parent=31 // pred_check
        %p4263 = pneg %p118
      $region34: #{tpu_custom_call.1} parent=31 // pred_check_branch
        %4265 = sbr.rel (%p4263) target = $region36
      $region35: #{tpu_custom_call.1} parent=31 // pred_region
        %s4266 = smul.u32 16, %s21
      $region36: #{tpu_custom_call.1} parent=31 // pred_fallthru
        _
      // Predicated region
      $region37: #{tpu_custom_call.1} parent=31 // pred_check
        %p4267 = pneg %p146
      $region38: #{tpu_custom_call.1} parent=31 // pred_check_branch
        %4269 = sbr.rel (%p4267) target = $region40
      $region39: #{tpu_custom_call.1} parent=31 // pred_region
        %s4270 = smul.u32 16, %s21
      $region40: #{tpu_custom_call.1} parent=31 // pred_fallthru
        _
    $region32: #{tpu_custom_call.1} parent=5 // pred_fallthru
      _
    %p4271 = scmp.le.s32.totalorder 2, %s11
    // Predicated region
    $region41: #{tpu_custom_call.1} parent=5 // pred_check
      %p4272 = pneg %p4271
    $region42: #{tpu_custom_call.1} parent=5 // pred_check_branch
      %4274 = sbr.rel (%p4272) target = $region44
    $region43: #{tpu_custom_call.1} parent=5 // pred_region
      %s4275 = ssub.s32 %s11, 2
      // Predicated region
      $region45: #{tpu_custom_call.1} parent=43 // pred_check
        %p4276 = pneg %p124
      $region46: #{tpu_custom_call.1} parent=43 // pred_check_branch
        %4278 = sbr.rel (%p4276) target = $region48
      $region47: #{tpu_custom_call.1} parent=43 // pred_region
        %s4279 = smul.u32 16, %s23
        %p4280 = scmp.lt.s32.totalorder %s22, 1
        %s4281 = scalar_select %p4280, %s22, 1
        %p4282 = scmp.lt.s32.totalorder %s4279, 15
        %s4283 = scalar_select %p4282, %s4279, 15
        %s4284 = smul.addr %s4283, 2
        %s4285 = smul.addr %s4281, 32
        %s4286 = sadd.s32 %s4284, %s4285
        %s4287 = smul.addr %s4286, 8
        %s4288 = scalar_lea.vmem %s3, %s4287
      $region48: #{tpu_custom_call.1} parent=43 // pred_fallthru
        _
      // Predicated region
      $region49: #{tpu_custom_call.1} parent=43 // pred_check
        %p4289 = pneg %p152
      $region50: #{tpu_custom_call.1} parent=43 // pred_check_branch
        %4291 = sbr.rel (%p4289) target = $region52
      $region51: #{tpu_custom_call.1} parent=43 // pred_region
        %s4292 = smul.u32 16, %s23
        %p4293 = scmp.lt.s32.totalorder %s22, 1
        %s4294 = scalar_select %p4293, %s22, 1
        %p4295 = scmp.lt.s32.totalorder %s4292, 15
        %s4296 = scalar_select %p4295, %s4292, 15
        %s4297 = smul.addr %s4296, 2
        %s4298 = smul.addr %s4294, 32
        %s4299 = sadd.s32 %s4297, %s4298
        %s4300 = smul.addr %s4299, 8
        %s4301 = scalar_lea.vmem %s4, %s4300
      $region52: #{tpu_custom_call.1} parent=43 // pred_fallthru
        _
    $region44: #{tpu_custom_call.1} parent=5 // pred_fallthru
      _
  $region6: #{tpu_custom_call.1} parent=0 // loop_footer
    %s15 = sadd.s32 1, %s11
  $region7: #{tpu_custom_call.1} parent=0 // loop_footer_branch
    %10 = sbr.rel target = $region3
  $region8: #{tpu_custom_call.1} parent=0 // loop_exit
    _

</llo_original>
